<compile_context>
chip_gen: v6e
topology: v6e:2x2x1
jax: 0.10.0
libtpu: 0.0.40
codegen_flags: <defaults>
</compile_context>

<pallas_src>
import functools
import math

import jax
import jax.numpy as jnp
from jax.experimental import pallas as pl
from jax.experimental.pallas import tpu as pltpu

_MASK_VALUE = -1e30  # large-negative additive mask (exp underflows to 0 in f32)


# ----------------------------------------------------------------------------
# Small helpers
# ----------------------------------------------------------------------------
def _bf16(w):
    return w.astype(jnp.bfloat16)


def _const_spec(shape):
    """BlockSpec for a weight/bias that is identical for every grid step.

    Single-buffered when the installed Pallas supports pipeline_mode: a
    constant-index block gains nothing from double buffering, it only doubles
    VMEM residency.
    """
    index_map = lambda *_: (0,) * len(shape)
    if hasattr(pl, "Buffered"):
        try:
            return pl.BlockSpec(shape, index_map, pipeline_mode=pl.Buffered(1))
        except TypeError:
            pass
    return pl.BlockSpec(shape, index_map)


def _vmem_limit_bytes(weight_bf16_elems, f32_act_elems):
    """Scoped-VMEM request: weights (single-buffered) + activations + headroom,
    clamped to the physical per-core VMEM of this TPU generation."""
    need = 2 * int(weight_bf16_elems) + 4 * int(f32_act_elems) + (8 << 20)
    need = max(need, 32 << 20)
    try:
        cap = int(pltpu.get_tpu_info().vmem_capacity_bytes)
    except Exception:
        cap = 64 << 20  # v7x per-TC VMEM; safe lower bound for v5e/v6e too
    return min(need, cap)


def _pick_q_tile(s, q_block=128):
    return q_block if (s % q_block == 0 and s >= q_block) else s


# ----------------------------------------------------------------------------
# In-kernel building blocks (one batch element / one query tile, VMEM resident)
# ----------------------------------------------------------------------------
def _layer_norm(x, gamma, beta):
    mean = jnp.mean(x, axis=-1, keepdims=True)
    xc = x - mean
    var = jnp.mean(xc * xc, axis=-1, keepdims=True)
    return xc * jax.lax.rsqrt(var + 1e-5) * gamma + beta


def _ffn(x, w1_ref, b1, w2_ref, b2, *, f_block=2048):
    """Linear -> ReLU -> Linear, bf16 MXU inputs, f32 accumulation.

    For large F the hidden dimension is chunked with a fori_loop so the (S, F)
    intermediate never exceeds (S, f_block) live elements.
    """
    s, e = x.shape
    f = w1_ref.shape[1]
    x_b = x.astype(jnp.bfloat16)
    if f <= f_block or (f % f_block) != 0:
        h = jnp.dot(x_b, w1_ref[...], preferred_element_type=jnp.float32) + b1
        h = jnp.maximum(h, 0.0)
        out = jnp.dot(h.astype(jnp.bfloat16), w2_ref[...],
                      preferred_element_type=jnp.float32)
    else:
        n_blk = f // f_block

        def body(j, acc):
            lo = pl.multiple_of(j * f_block, f_block)
            w1b = w1_ref[:, pl.ds(lo, f_block)]
            w2b = w2_ref[pl.ds(lo, f_block), :]
            b1b = jax.lax.dynamic_slice_in_dim(b1, lo, f_block, 1)
            h = jnp.dot(x_b, w1b, preferred_element_type=jnp.float32) + b1b
            h = jnp.maximum(h, 0.0)
            return acc + jnp.dot(h.astype(jnp.bfloat16), w2b,
                                 preferred_element_type=jnp.float32)

        out = jax.lax.fori_loop(0, n_blk, body, jnp.zeros((s, e), jnp.float32))
    return out + b2


def _mha(xq, xkv, wq_ref, wkv_ref, wo_ref, bq, bk, bv, bo, *,
         num_heads, causal, q_offset):
    """Multi-head attention for one query tile.

    xq: (Sq, E) f32 query-side rows, xkv: (Sk, E) f32 key/value-side rows.
    wq: (E, E) bf16, wkv: (E, 2E) bf16 (K|V fused), wo: (E, E) bf16.
    Biases are (1, E) f32 rows of the packed bias array.
    """
    sq, e = xq.shape
    sk = xkv.shape[0]
    dh = e // num_heads
    scale = 1.0 / math.sqrt(dh)

    xq_b = xq.astype(jnp.bfloat16)
    xkv_b = xkv.astype(jnp.bfloat16)

    # Full-width projections (one MXU call for Q, one for fused K|V); the
    # 1/sqrt(dh) scale is folded into Q once.
    q = (jnp.dot(xq_b, wq_ref[...], preferred_element_type=jnp.float32) + bq) * scale
    kv = jnp.dot(xkv_b, wkv_ref[...], preferred_element_type=jnp.float32)
    k = kv[:, :e] + bk
    v = kv[:, e:] + bv

    # Cast once after projection; per-head slices reuse these bf16 buffers
    # (minimizes f32<->bf16 pack/unpack VALU work, important on v5e).
    q_b = q.astype(jnp.bfloat16)
    k_b = k.astype(jnp.bfloat16)
    v_b = v.astype(jnp.bfloat16)

    if causal:
        row = q_offset + jax.lax.broadcasted_iota(jnp.int32, (sq, sk), 0)
        col = jax.lax.broadcasted_iota(jnp.int32, (sq, sk), 1)
        keep = col <= row

    def one_head(qh, kh, vh, wo_h):
        # TODO(synk): for very long Sk, switch to an online-softmax (flash)
        # accumulation over Sk blocks so the (Sq, Sk) tile never materializes.
        sc = jax.lax.dot_general(qh, kh, (((1,), (1,)), ((), ())),
                                 preferred_element_type=jnp.float32)
        if causal:
            sc = jnp.where(keep, sc, _MASK_VALUE)
        sc = sc - jnp.max(sc, axis=-1, keepdims=True)
        p = jnp.exp(sc)
        # EUP approx reciprocal (~1e-3 rel error): acceptable for inference.
        p = p * pl.reciprocal(jnp.sum(p, axis=-1, keepdims=True), approx=True)
        oh = jnp.dot(p.astype(jnp.bfloat16), vh, preferred_element_type=jnp.float32)
        # concat(heads) @ Wo == sum_h head_h @ Wo[h*dh:(h+1)*dh, :]
        return jnp.dot(oh.astype(jnp.bfloat16), wo_h,
                       preferred_element_type=jnp.float32)

    out = jnp.zeros((sq, e), jnp.float32) + bo
    if num_heads <= 8:
        # Small head count: full static unroll (no loop-carried deps).
        for h in range(num_heads):
            lo = h * dh
            out = out + one_head(q_b[:, lo:lo + dh], k_b[:, lo:lo + dh],
                                 v_b[:, lo:lo + dh], wo_ref[pl.ds(lo, dh), :])
    else:
        # Many heads: fori_loop bounds live ranges (avoids vreg-spill growth
        # that a fully unrolled Python loop would cause).
        def body(h, acc):
            lo = pl.multiple_of(h * dh, dh)
            qh = jax.lax.dynamic_slice_in_dim(q_b, lo, dh, 1)
            kh = jax.lax.dynamic_slice_in_dim(k_b, lo, dh, 1)
            vh = jax.lax.dynamic_slice_in_dim(v_b, lo, dh, 1)
            return acc + one_head(qh, kh, vh, wo_ref[pl.ds(lo, dh), :])

        out = jax.lax.fori_loop(0, num_heads, body, out)
    return out


# ----------------------------------------------------------------------------
# Fused per-layer kernels (grid = (batch, Sq tiles))
# ----------------------------------------------------------------------------
def _encoder_layer_kernel(xq_ref, xkv_ref, wq_ref, wkv_ref, wo_ref,
                          w1_ref, w2_ref, bias_ref, b1_ref, o_ref, *, num_heads):
    xq = xq_ref[0]                        # (tq, E) query-tile rows
    xkv = xkv_ref[0]                      # (S, E) full sequence (keys/values)
    bias = bias_ref[...]                  # (7, E): bq,bk,bv,bo,b2,ln_g,ln_b
    bq, bk, bv, bo = bias[0:1], bias[1:2], bias[2:3], bias[3:4]
    b2, g, be = bias[4:5], bias[5:6], bias[6:7]

    a = _mha(xq, xkv, wq_ref, wkv_ref, wo_ref, bq, bk, bv, bo,
             num_heads=num_heads, causal=False, q_offset=0)
    y = _layer_norm(xq + a, g, be)
    z = _ffn(y, w1_ref, b1_ref[...], w2_ref, b2)
    o_ref[0] = _layer_norm(y + z, g, be).astype(o_ref.dtype)


def _decoder_layer_kernel(tq_ref, tf_ref, mem_ref,
                          swq_ref, swkv_ref, swo_ref,
                          cwq_ref, cwkv_ref, cwo_ref,
                          w1_ref, w2_ref, bias_ref, b1_ref, o_ref, *, num_heads):
    tgt_t = tq_ref[0]                     # (tq, E) query-tile rows of tgt
    tgt_f = tf_ref[0]                     # (St, E) full tgt (self-attn K/V)
    mem = mem_ref[0]                      # (Sm, E) encoder memory (cross K/V)
    bias = bias_ref[...]                  # (11, E)
    sbq, sbk, sbv, sbo = bias[0:1], bias[1:2], bias[2:3], bias[3:4]
    cbq, cbk, cbv, cbo = bias[4:5], bias[5:6], bias[6:7], bias[7:8]
    b2, g, be = bias[8:9], bias[9:10], bias[10:11]

    q_off = pl.program_id(1) * tgt_t.shape[0]
    a = _mha(tgt_t, tgt_f, swq_ref, swkv_ref, swo_ref, sbq, sbk, sbv, sbo,
             num_heads=num_heads, causal=True, q_offset=q_off)
    x1 = _layer_norm(tgt_t + a, g, be)
    # NB: the reference PyTorch module uses the ORIGINAL tgt as cross-attn query.
    c = _mha(tgt_t, mem, cwq_ref, cwkv_ref, cwo_ref, cbq, cbk, cbv, cbo,
             num_heads=num_heads, causal=False, q_offset=0)
    x2 = _layer_norm(x1 + c, g, be)
    z = _ffn(x2, w1_ref, b1_ref[...], w2_ref, b2)
    o_ref[0] = _layer_norm(x2 + z, g, be).astype(o_ref.dtype)


# ----------------------------------------------------------------------------
# Pallas wrappers (one pallas_call per transformer layer)
# ----------------------------------------------------------------------------
def encoder_layer(kp, src, num_heads, *, q_block=128):
    b, s, e = src.shape
    assert e % num_heads == 0, "embed_dim must be divisible by num_heads"
    f = kp["w1"].shape[1]
    tq = _pick_q_tile(s, q_block)
    nq = s // tq

    kernel = functools.partial(_encoder_layer_kernel, num_heads=num_heads)
    tile_spec = pl.BlockSpec((1, tq, e), lambda ib, iq: (ib, iq, 0))
    full_spec = pl.BlockSpec((1, s, e), lambda ib, iq: (ib, 0, 0))

    w_elems = 4 * e * e + 2 * e * f
    act_elems = (4 * tq * e + 4 * s * e + 3 * tq * e + 2 * s * e
                 + 2 * tq * s + tq * min(f, 2048) + 4 * tq * e)

    return pl.pallas_call(
        kernel,
        out_shape=jax.ShapeDtypeStruct((b, s, e), jnp.float32),
        grid=(b, nq),
        in_specs=[tile_spec, full_spec,
                  _const_spec((e, e)),        # wq
                  _const_spec((e, 2 * e)),    # wkv (fused K|V)
                  _const_spec((e, e)),        # wo
                  _const_spec((e, f)),        # w1
                  _const_spec((f, e)),        # w2
                  _const_spec((7, e)),        # packed biases + LN params
                  _const_spec((1, f))],       # b1
        out_specs=tile_spec,
        compiler_params=pltpu.CompilerParams(
            dimension_semantics=("parallel", "parallel"),
            vmem_limit_bytes=_vmem_limit_bytes(w_elems, act_elems)),
    )(src, src,
      kp["wq"], kp["wkv"], kp["wo"], kp["w1"], kp["w2"], kp["bias"], kp["b1"])


def decoder_layer(kp, memory, tgt, num_heads, *, q_block=128):
    b, st, e = tgt.shape
    sm = memory.shape[1]
    assert e % num_heads == 0, "embed_dim must be divisible by num_heads"
    f = kp["w1"].shape[1]
    tq = _pick_q_tile(st, q_block)
    nq = st // tq

    kernel = functools.partial(_decoder_layer_kernel, num_heads=num_heads)
    tile_spec = pl.BlockSpec((1, tq, e), lambda ib, iq: (ib, iq, 0))
    tgt_full_spec = pl.BlockSpec((1, st, e), lambda ib, iq: (ib, 0, 0))
    mem_full_spec = pl.BlockSpec((1, sm, e), lambda ib, iq: (ib, 0, 0))

    w_elems = 8 * e * e + 2 * e * f
    act_elems = (4 * tq * e + 4 * st * e + 4 * sm * e + 3 * tq * e
                 + 2 * (st + sm) * e + 2 * tq * max(st, sm)
                 + tq * min(f, 2048) + 6 * tq * e)

    return pl.pallas_call(
        kernel,
        out_shape=jax.ShapeDtypeStruct((b, st, e), jnp.float32),
        grid=(b, nq),
        in_specs=[tile_spec, tgt_full_spec, mem_full_spec,
                  _const_spec((e, e)), _const_spec((e, 2 * e)), _const_spec((e, e)),   # self
                  _const_spec((e, e)), _const_spec((e, 2 * e)), _const_spec((e, e)),   # cross
                  _const_spec((e, f)), _const_spec((f, e)),                            # FFN
                  _const_spec((11, e)), _const_spec((1, f))],                          # biases
        out_specs=tile_spec,
        compiler_params=pltpu.CompilerParams(
            dimension_semantics=("parallel", "parallel"),
            vmem_limit_bytes=_vmem_limit_bytes(w_elems, act_elems)),
    )(tgt, tgt, memory,
      kp["swq"], kp["swkv"], kp["swo"],
      kp["cwq"], kp["cwkv"], kp["cwo"],
      kp["w1"], kp["w2"], kp["bias"], kp["b1"])


def transformer_forward(kernel_params, src, tgt, num_heads):
    memory = src
    for kp in kernel_params["encoders"]:
        memory = encoder_layer(kp, memory, num_heads)
    y = tgt
    for kp in kernel_params["decoders"]:
        y = decoder_layer(kp, memory, y, num_heads)
    return y


# ----------------------------------------------------------------------------
# One-time parameter packing: bf16 weight cast + K|V fusion + bias packing.
# Called ONCE outside the forward, so no per-forward / per-layer casts.
# ----------------------------------------------------------------------------
def pack_params(params):
    def attn_w(a):
        return (_bf16(a["wq"]),
                _bf16(jnp.concatenate([a["wk"], a["wv"]], axis=1)),
                _bf16(a["wo"]))

    encs = []
    for p in params["encoders"]:
        a = p["attn"]
        wq, wkv, wo = attn_w(a)
        encs.append(dict(
            wq=wq, wkv=wkv, wo=wo,
            w1=_bf16(p["w1"]), w2=_bf16(p["w2"]),
            bias=jnp.concatenate([a["bq"], a["bk"], a["bv"], a["bo"],
                                  p["b2"], p["ln_g"], p["ln_b"]], axis=0),
            b1=p["b1"]))
    decs = []
    for p in params["decoders"]:
        sa, ca = p["self_attn"], p["cross_attn"]
        swq, swkv, swo = attn_w(sa)
        cwq, cwkv, cwo = attn_w(ca)
        decs.append(dict(
            swq=swq, swkv=swkv, swo=swo,
            cwq=cwq, cwkv=cwkv, cwo=cwo,
            w1=_bf16(p["w1"]), w2=_bf16(p["w2"]),
            bias=jnp.concatenate([sa["bq"], sa["bk"], sa["bv"], sa["bo"],
                                  ca["bq"], ca["bk"], ca["bv"], ca["bo"],
                                  p["b2"], p["ln_g"], p["ln_b"]], axis=0),
            b1=p["b1"]))
    return dict(encoders=encs, decoders=decs)


# ----------------------------------------------------------------------------
# Deterministic parameter init (shapes follow the PyTorch module's __init__).
# Weights are snapped to the bf16 grid (stored f32) so the bf16 kernel and the
# f32 reference see numerically identical weights.
# ----------------------------------------------------------------------------
def _init_linear(key, d_in, d_out):
    kw, kb = jax.random.split(key)
    bound = 1.0 / math.sqrt(d_in)
    w = jax.random.uniform(kw, (d_in, d_out), jnp.float32, -bound, bound)
    w = w.astype(jnp.bfloat16).astype(jnp.float32)   # bf16-representable values
    b = jax.random.uniform(kb, (1, d_out), jnp.float32, -bound, bound)
    return w, b


def _init_mha(key, e):
    kq, kk, kv, ko = jax.random.split(key, 4)
    wq, bq = _init_linear(kq, e, e)
    wk, bk = _init_linear(kk, e, e)
    wv, bv = _init_linear(kv, e, e)
    wo, bo = _init_linear(ko, e, e)
    return dict(wq=wq, bq=bq, wk=wk, bk=bk, wv=wv, bv=bv, wo=wo, bo=bo)


def _init_encoder(key, e, f):
    k1, k2, k3 = jax.random.split(key, 3)
    w1, b1 = _init_linear(k2, e, f)
    w2, b2 = _init_linear(k3, f, e)
    return dict(attn=_init_mha(k1, e),
                ln_g=jnp.ones((1, e), jnp.float32),
                ln_b=jnp.zeros((1, e), jnp.float32),
                w1=w1, b1=b1, w2=w2, b2=b2)


def _init_decoder(key, e, f):
    k1, k2, k3, k4 = jax.random.split(key, 4)
    w1, b1 = _init_linear(k3, e, f)
    w2, b2 = _init_linear(k4, f, e)
    return dict(self_attn=_init_mha(k1, e),
                cross_attn=_init_mha(k2, e),
                ln_g=jnp.ones((1, e), jnp.float32),
                ln_b=jnp.zeros((1, e), jnp.float32),
                w1=w1, b1=b1, w2=w2, b2=b2)


def init_transformer(key, e, f, num_layers):
    keys = jax.random.split(key, 2 * num_layers)
    encs = [_init_encoder(keys[i], e, f) for i in range(num_layers)]
    decs = [_init_decoder(keys[num_layers + i], e, f) for i in range(num_layers)]
    return dict(encoders=encs, decoders=decs)


# ----------------------------------------------------------------------------
# Pure-JAX f32 reference (numerical sanity check vs the bf16 kernel)
# ----------------------------------------------------------------------------
def _causal_mask(s):
    row = jnp.arange(s)[:, None]
    col = jnp.arange(s)[None, :]
    return jnp.where(col <= row, 0.0, -jnp.inf).astype(jnp.float32)


def _ref_mha(xq, xkv, p, mask, num_heads):
    b, sq, e = xq.shape
    sk = xkv.shape[1]
    dh = e // num_heads
    q = xq @ p["wq"] + p["bq"][0]
    k = xkv @ p["wk"] + p["bk"][0]
    v = xkv @ p["wv"] + p["bv"][0]
    q = q.reshape(b, sq, num_heads, dh).transpose(0, 2, 1, 3) / math.sqrt(dh)
    k = k.reshape(b, sk, num_heads, dh).transpose(0, 2, 1, 3)
    v = v.reshape(b, sk, num_heads, dh).transpose(0, 2, 1, 3)
    s = jnp.einsum("bhqd,bhkd->bhqk", q, k) + mask
    a = jax.nn.softmax(s, axis=-1)
    o = jnp.einsum("bhqk,bhkd->bhqd", a, v)
    o = o.transpose(0, 2, 1, 3).reshape(b, sq, e)
    return o @ p["wo"] + p["bo"][0]


def _ref_ln(x, g, b):
    mean = jnp.mean(x, axis=-1, keepdims=True)
    var = jnp.mean((x - mean) ** 2, axis=-1, keepdims=True)
    return (x - mean) * jax.lax.rsqrt(var + 1e-5) * g[0] + b[0]


def _ref_ffn(x, w1, b1, w2, b2):
    return jnp.maximum(x @ w1 + b1[0], 0.0) @ w2 + b2[0]


def _ref_encoder(p, src, num_heads):
    s = src.shape[1]
    x = _ref_mha(src, src, p["attn"], jnp.zeros((s, s), jnp.float32), num_heads)
    x = _ref_ln(x + src, p["ln_g"], p["ln_b"])
    return _ref_ln(_ref_ffn(x, p["w1"], p["b1"], p["w2"], p["b2"]) + x,
                   p["ln_g"], p["ln_b"])


def _ref_decoder(p, memory, tgt, num_heads):
    st, sm = tgt.shape[1], memory.shape[1]
    a = _ref_mha(tgt, tgt, p["self_attn"], _causal_mask(st), num_heads)
    x1 = _ref_ln(a + tgt, p["ln_g"], p["ln_b"])
    c = _ref_mha(tgt, memory, p["cross_attn"], jnp.zeros((st, sm), jnp.float32),
                 num_heads)
    x2 = _ref_ln(c + x1, p["ln_g"], p["ln_b"])
    return _ref_ln(_ref_ffn(x2, p["w1"], p["b1"], p["w2"], p["b2"]) + x2,
                   p["ln_g"], p["ln_b"])


def ref_transformer(params, src, tgt, num_heads):
    memory = src
    for p in params["encoders"]:
        memory = _ref_encoder(p, memory, num_heads)
    y = tgt
    for p in params["decoders"]:
        y = _ref_decoder(p, memory, y, num_heads)
    return y


# ----------------------------------------------------------------------------
if __name__ == "__main__":
    EMBED_DIM = 128      # multiple of 128 -> lane-dense stores (perf review)
    NUM_HEADS = 4
    DIM_FF = 256
    NUM_LAYERS = 1
    B, S_SRC, S_TGT = 2, 16, 16

    key = jax.random.PRNGKey(0)
    kp_key, ks, kt = jax.random.split(key, 3)
    params = init_transformer(kp_key, EMBED_DIM, DIM_FF, NUM_LAYERS)
    kernel_params = pack_params(params)   # bf16 cast + packing done ONCE
    src = jax.random.normal(ks, (B, S_SRC, EMBED_DIM), jnp.float32)
    tgt = jax.random.normal(kt, (B, S_TGT, EMBED_DIM), jnp.float32)

    fwd = jax.jit(transformer_forward, static_argnums=(3,))
    y = jax.block_until_ready(fwd(kernel_params, src, tgt, NUM_HEADS))

    y_ref = ref_transformer(params, src, tgt, NUM_HEADS)
    assert y.shape == (B, S_TGT, EMBED_DIM)
    assert bool(jnp.all(jnp.isfinite(y)))
    max_err = float(jnp.max(jnp.abs(y - y_ref)))
    # Outputs are LayerNorm'ed (unit scale); bf16 MXU inputs + approx softmax
    # reciprocal give ~1e-2-level abs error.
    assert max_err < 1e-1, f"mismatch vs reference: max|diff|={max_err}"
    print("KERNEL_OK")
</pallas_src>

<mosaic_0001>
module attributes {stable_mosaic.version = 11 : i64} {
  func.func @_encoder_layer_kernel(%arg0: i32, %arg1: i32, %arg2: memref<1x16x128xf32, #tpu.memory_space<vmem>>, %arg3: memref<1x16x128xf32, #tpu.memory_space<vmem>>, %arg4: memref<128x128xbf16, #tpu.memory_space<vmem>>, %arg5: memref<128x256xbf16, #tpu.memory_space<vmem>>, %arg6: memref<128x128xbf16, #tpu.memory_space<vmem>>, %arg7: memref<128x256xbf16, #tpu.memory_space<vmem>>, %arg8: memref<256x128xbf16, #tpu.memory_space<vmem>>, %arg9: memref<7x128xf32, #tpu.memory_space<vmem>>, %arg10: memref<1x256xf32, #tpu.memory_space<vmem>>, %arg11: memref<1x16x128xf32, #tpu.memory_space<vmem>>) attributes {dimension_semantics = [#tpu.dimension_semantics<parallel>, #tpu.dimension_semantics<parallel>], iteration_bounds = array<i64: 2, 1>, scalar_prefetch = 0 : i64, scratch_operands = 0 : i64, tpu.core_type = #tpu.core_type<tc>, window_params = [{transform_indices = @transform_0, window_bounds = array<i64: 1, 16, 128>}, {transform_indices = @transform_1, window_bounds = array<i64: 1, 16, 128>}, {pipeline_mode = #tpu.pipeline_mode<synchronous>, transform_indices = @transform_2, window_bounds = array<i64: 128, 128>}, {pipeline_mode = #tpu.pipeline_mode<synchronous>, transform_indices = @transform_3, window_bounds = array<i64: 128, 256>}, {pipeline_mode = #tpu.pipeline_mode<synchronous>, transform_indices = @transform_4, window_bounds = array<i64: 128, 128>}, {pipeline_mode = #tpu.pipeline_mode<synchronous>, transform_indices = @transform_5, window_bounds = array<i64: 128, 256>}, {pipeline_mode = #tpu.pipeline_mode<synchronous>, transform_indices = @transform_6, window_bounds = array<i64: 256, 128>}, {pipeline_mode = #tpu.pipeline_mode<synchronous>, transform_indices = @transform_7, window_bounds = array<i64: 7, 128>}, {pipeline_mode = #tpu.pipeline_mode<synchronous>, transform_indices = @transform_8, window_bounds = array<i64: 1, 256>}, {transform_indices = @transform_9, window_bounds = array<i64: 1, 16, 128>}]} {
    %c0 = arith.constant 0 : index
    %c0_0 = arith.constant 0 : index
    %c0_1 = arith.constant 0 : index
    %0 = vector.load %arg2[%c0, %c0_0, %c0_1] : memref<1x16x128xf32, #tpu.memory_space<vmem>>, vector<1x16x128xf32>
    %1 = vector.shape_cast %0 : vector<1x16x128xf32> to vector<16x128xf32>
    %c0_2 = arith.constant 0 : index
    %c0_3 = arith.constant 0 : index
    %c0_4 = arith.constant 0 : index
    %2 = vector.load %arg3[%c0_2, %c0_3, %c0_4] : memref<1x16x128xf32, #tpu.memory_space<vmem>>, vector<1x16x128xf32>
    %3 = vector.shape_cast %2 : vector<1x16x128xf32> to vector<16x128xf32>
    %c0_5 = arith.constant 0 : index
    %c0_6 = arith.constant 0 : index
    %4 = vector.load %arg9[%c0_5, %c0_6] : memref<7x128xf32, #tpu.memory_space<vmem>>, vector<7x128xf32>
    %5 = vector.extract_strided_slice %4 {offsets = [0, 0], sizes = [1, 128], strides = [1, 1]} : vector<7x128xf32> to vector<1x128xf32>
    %6 = vector.extract_strided_slice %4 {offsets = [1, 0], sizes = [1, 128], strides = [1, 1]} : vector<7x128xf32> to vector<1x128xf32>
    %7 = vector.extract_strided_slice %4 {offsets = [2, 0], sizes = [1, 128], strides = [1, 1]} : vector<7x128xf32> to vector<1x128xf32>
    %8 = vector.extract_strided_slice %4 {offsets = [3, 0], sizes = [1, 128], strides = [1, 1]} : vector<7x128xf32> to vector<1x128xf32>
    %9 = vector.extract_strided_slice %4 {offsets = [4, 0], sizes = [1, 128], strides = [1, 1]} : vector<7x128xf32> to vector<1x128xf32>
    %10 = vector.extract_strided_slice %4 {offsets = [5, 0], sizes = [1, 128], strides = [1, 1]} : vector<7x128xf32> to vector<1x128xf32>
    %11 = vector.extract_strided_slice %4 {offsets = [6, 0], sizes = [1, 128], strides = [1, 1]} : vector<7x128xf32> to vector<1x128xf32>
    %12 = arith.truncf %1 : vector<16x128xf32> to vector<16x128xbf16>
    %13 = arith.truncf %3 : vector<16x128xf32> to vector<16x128xbf16>
    %c0_7 = arith.constant 0 : index
    %c0_8 = arith.constant 0 : index
    %14 = vector.load %arg4[%c0_7, %c0_8] : memref<128x128xbf16, #tpu.memory_space<vmem>>, vector<128x128xbf16>
    %cst = arith.constant dense<0.000000e+00> : vector<16x128xf32>
    %15 = tpu.matmul %12, %14, %cst {dimension_numbers = #tpu.dot_dimension_numbers<[1], [0], [0], [1], [0, 0, 1, 1], [], []>} : vector<16x128xbf16>, vector<128x128xbf16>, vector<16x128xf32> -> vector<16x128xf32>
    %16 = vector.broadcast %5 : vector<1x128xf32> to vector<16x128xf32>
    %17 = arith.addf %15, %16 : vector<16x128xf32>
    %cst_9 = arith.constant 0.176776692 : f32
    %18 = vector.broadcast %cst_9 : f32 to vector<16x128xf32>
    %19 = arith.mulf %17, %18 : vector<16x128xf32>
    %c0_10 = arith.constant 0 : index
    %c0_11 = arith.constant 0 : index
    %20 = vector.load %arg5[%c0_10, %c0_11] : memref<128x256xbf16, #tpu.memory_space<vmem>>, vector<128x256xbf16>
    %cst_12 = arith.constant dense<0.000000e+00> : vector<16x256xf32>
    %21 = tpu.matmul %13, %20, %cst_12 {dimension_numbers = #tpu.dot_dimension_numbers<[1], [0], [0], [1], [0, 0, 1, 1], [], []>} : vector<16x128xbf16>, vector<128x256xbf16>, vector<16x256xf32> -> vector<16x256xf32>
    %22 = vector.extract_strided_slice %21 {offsets = [0, 0], sizes = [16, 128], strides = [1, 1]} : vector<16x256xf32> to vector<16x128xf32>
    %23 = vector.broadcast %6 : vector<1x128xf32> to vector<16x128xf32>
    %24 = arith.addf %22, %23 : vector<16x128xf32>
    %25 = vector.extract_strided_slice %21 {offsets = [0, 128], sizes = [16, 128], strides = [1, 1]} : vector<16x256xf32> to vector<16x128xf32>
    %26 = vector.broadcast %7 : vector<1x128xf32> to vector<16x128xf32>
    %27 = arith.addf %25, %26 : vector<16x128xf32>
    %28 = arith.truncf %19 : vector<16x128xf32> to vector<16x128xbf16>
    %29 = arith.truncf %24 : vector<16x128xf32> to vector<16x128xbf16>
    %30 = arith.truncf %27 : vector<16x128xf32> to vector<16x128xbf16>
    %cst_13 = arith.constant 0.000000e+00 : f32
    %31 = vector.broadcast %cst_13 : f32 to vector<16x128xf32>
    %32 = vector.broadcast %8 : vector<1x128xf32> to vector<16x128xf32>
    %33 = arith.addf %31, %32 : vector<16x128xf32>
    %34 = vector.extract_strided_slice %28 {offsets = [0, 0], sizes = [16, 32], strides = [1, 1]} : vector<16x128xbf16> to vector<16x32xbf16>
    %35 = vector.extract_strided_slice %29 {offsets = [0, 0], sizes = [16, 32], strides = [1, 1]} : vector<16x128xbf16> to vector<16x32xbf16>
    %36 = vector.extract_strided_slice %30 {offsets = [0, 0], sizes = [16, 32], strides = [1, 1]} : vector<16x128xbf16> to vector<16x32xbf16>
    %c0_14 = arith.constant 0 : index
    %c0_15 = arith.constant 0 : index
    %37 = vector.load %arg6[%c0_14, %c0_15] : memref<128x128xbf16, #tpu.memory_space<vmem>>, vector<32x128xbf16>
    %cst_16 = arith.constant dense<0.000000e+00> : vector<16x16xf32>
    %38 = tpu.matmul %34, %35, %cst_16 {dimension_numbers = #tpu.dot_dimension_numbers<[1], [1], [0], [0], [0, 0, 1, 0], [], []>} : vector<16x32xbf16>, vector<16x32xbf16>, vector<16x16xf32> -> vector<16x16xf32>
    %cst_17 = arith.constant dense<0xFF800000> : vector<16xf32>
    %39 = vector.multi_reduction <maximumf>, %38, %cst_17 [1] : vector<16x16xf32> to vector<16xf32>
    %40 = vector.shape_cast %39 : vector<16xf32> to vector<16x1xf32>
    %41 = vector.broadcast %40 : vector<16x1xf32> to vector<16x16xf32>
    %42 = arith.subf %38, %41 : vector<16x16xf32>
    %43 = math.exp %42 : vector<16x16xf32>
    %cst_18 = arith.constant dense<0.000000e+00> : vector<16xf32>
    %44 = vector.multi_reduction <add>, %43, %cst_18 [1] : vector<16x16xf32> to vector<16xf32>
    %45 = vector.shape_cast %44 : vector<16xf32> to vector<16x1xf32>
    %46 = tpu.reciprocal %45 {approx = true} : vector<16x1xf32> -> vector<16x1xf32>
    %47 = vector.broadcast %46 : vector<16x1xf32> to vector<16x16xf32>
    %48 = arith.mulf %43, %47 : vector<16x16xf32>
    %49 = arith.truncf %48 : vector<16x16xf32> to vector<16x16xbf16>
    %cst_19 = arith.constant dense<0.000000e+00> : vector<16x32xf32>
    %50 = tpu.matmul %49, %36, %cst_19 {dimension_numbers = #tpu.dot_dimension_numbers<[1], [0], [0], [1], [0, 0, 1, 1], [], []>} : vector<16x16xbf16>, vector<16x32xbf16>, vector<16x32xf32> -> vector<16x32xf32>
    %51 = arith.truncf %50 : vector<16x32xf32> to vector<16x32xbf16>
    %cst_20 = arith.constant dense<0.000000e+00> : vector<16x128xf32>
    %52 = tpu.matmul %51, %37, %cst_20 {dimension_numbers = #tpu.dot_dimension_numbers<[1], [0], [0], [1], [0, 0, 1, 1], [], []>} : vector<16x32xbf16>, vector<32x128xbf16>, vector<16x128xf32> -> vector<16x128xf32>
    %53 = arith.addf %33, %52 : vector<16x128xf32>
    %54 = vector.extract_strided_slice %28 {offsets = [0, 32], sizes = [16, 32], strides = [1, 1]} : vector<16x128xbf16> to vector<16x32xbf16>
    %55 = vector.extract_strided_slice %29 {offsets = [0, 32], sizes = [16, 32], strides = [1, 1]} : vector<16x128xbf16> to vector<16x32xbf16>
    %56 = vector.extract_strided_slice %30 {offsets = [0, 32], sizes = [16, 32], strides = [1, 1]} : vector<16x128xbf16> to vector<16x32xbf16>
    %c32 = arith.constant 32 : index
    %c0_21 = arith.constant 0 : index
    %57 = vector.load %arg6[%c32, %c0_21] : memref<128x128xbf16, #tpu.memory_space<vmem>>, vector<32x128xbf16>
    %cst_22 = arith.constant dense<0.000000e+00> : vector<16x16xf32>
    %58 = tpu.matmul %54, %55, %cst_22 {dimension_numbers = #tpu.dot_dimension_numbers<[1], [1], [0], [0], [0, 0, 1, 0], [], []>} : vector<16x32xbf16>, vector<16x32xbf16>, vector<16x16xf32> -> vector<16x16xf32>
    %cst_23 = arith.constant dense<0xFF800000> : vector<16xf32>
    %59 = vector.multi_reduction <maximumf>, %58, %cst_23 [1] : vector<16x16xf32> to vector<16xf32>
    %60 = vector.shape_cast %59 : vector<16xf32> to vector<16x1xf32>
    %61 = vector.broadcast %60 : vector<16x1xf32> to vector<16x16xf32>
    %62 = arith.subf %58, %61 : vector<16x16xf32>
    %63 = math.exp %62 : vector<16x16xf32>
    %cst_24 = arith.constant dense<0.000000e+00> : vector<16xf32>
    %64 = vector.multi_reduction <add>, %63, %cst_24 [1] : vector<16x16xf32> to vector<16xf32>
    %65 = vector.shape_cast %64 : vector<16xf32> to vector<16x1xf32>
    %66 = tpu.reciprocal %65 {approx = true} : vector<16x1xf32> -> vector<16x1xf32>
    %67 = vector.broadcast %66 : vector<16x1xf32> to vector<16x16xf32>
    %68 = arith.mulf %63, %67 : vector<16x16xf32>
    %69 = arith.truncf %68 : vector<16x16xf32> to vector<16x16xbf16>
    %cst_25 = arith.constant dense<0.000000e+00> : vector<16x32xf32>
    %70 = tpu.matmul %69, %56, %cst_25 {dimension_numbers = #tpu.dot_dimension_numbers<[1], [0], [0], [1], [0, 0, 1, 1], [], []>} : vector<16x16xbf16>, vector<16x32xbf16>, vector<16x32xf32> -> vector<16x32xf32>
    %71 = arith.truncf %70 : vector<16x32xf32> to vector<16x32xbf16>
    %cst_26 = arith.constant dense<0.000000e+00> : vector<16x128xf32>
    %72 = tpu.matmul %71, %57, %cst_26 {dimension_numbers = #tpu.dot_dimension_numbers<[1], [0], [0], [1], [0, 0, 1, 1], [], []>} : vector<16x32xbf16>, vector<32x128xbf16>, vector<16x128xf32> -> vector<16x128xf32>
    %73 = arith.addf %53, %72 : vector<16x128xf32>
    %74 = vector.extract_strided_slice %28 {offsets = [0, 64], sizes = [16, 32], strides = [1, 1]} : vector<16x128xbf16> to vector<16x32xbf16>
    %75 = vector.extract_strided_slice %29 {offsets = [0, 64], sizes = [16, 32], strides = [1, 1]} : vector<16x128xbf16> to vector<16x32xbf16>
    %76 = vector.extract_strided_slice %30 {offsets = [0, 64], sizes = [16, 32], strides = [1, 1]} : vector<16x128xbf16> to vector<16x32xbf16>
    %c64 = arith.constant 64 : index
    %c0_27 = arith.constant 0 : index
    %77 = vector.load %arg6[%c64, %c0_27] : memref<128x128xbf16, #tpu.memory_space<vmem>>, vector<32x128xbf16>
    %cst_28 = arith.constant dense<0.000000e+00> : vector<16x16xf32>
    %78 = tpu.matmul %74, %75, %cst_28 {dimension_numbers = #tpu.dot_dimension_numbers<[1], [1], [0], [0], [0, 0, 1, 0], [], []>} : vector<16x32xbf16>, vector<16x32xbf16>, vector<16x16xf32> -> vector<16x16xf32>
    %cst_29 = arith.constant dense<0xFF800000> : vector<16xf32>
    %79 = vector.multi_reduction <maximumf>, %78, %cst_29 [1] : vector<16x16xf32> to vector<16xf32>
    %80 = vector.shape_cast %79 : vector<16xf32> to vector<16x1xf32>
    %81 = vector.broadcast %80 : vector<16x1xf32> to vector<16x16xf32>
    %82 = arith.subf %78, %81 : vector<16x16xf32>
    %83 = math.exp %82 : vector<16x16xf32>
    %cst_30 = arith.constant dense<0.000000e+00> : vector<16xf32>
    %84 = vector.multi_reduction <add>, %83, %cst_30 [1] : vector<16x16xf32> to vector<16xf32>
    %85 = vector.shape_cast %84 : vector<16xf32> to vector<16x1xf32>
    %86 = tpu.reciprocal %85 {approx = true} : vector<16x1xf32> -> vector<16x1xf32>
    %87 = vector.broadcast %86 : vector<16x1xf32> to vector<16x16xf32>
    %88 = arith.mulf %83, %87 : vector<16x16xf32>
    %89 = arith.truncf %88 : vector<16x16xf32> to vector<16x16xbf16>
    %cst_31 = arith.constant dense<0.000000e+00> : vector<16x32xf32>
    %90 = tpu.matmul %89, %76, %cst_31 {dimension_numbers = #tpu.dot_dimension_numbers<[1], [0], [0], [1], [0, 0, 1, 1], [], []>} : vector<16x16xbf16>, vector<16x32xbf16>, vector<16x32xf32> -> vector<16x32xf32>
    %91 = arith.truncf %90 : vector<16x32xf32> to vector<16x32xbf16>
    %cst_32 = arith.constant dense<0.000000e+00> : vector<16x128xf32>
    %92 = tpu.matmul %91, %77, %cst_32 {dimension_numbers = #tpu.dot_dimension_numbers<[1], [0], [0], [1], [0, 0, 1, 1], [], []>} : vector<16x32xbf16>, vector<32x128xbf16>, vector<16x128xf32> -> vector<16x128xf32>
    %93 = arith.addf %73, %92 : vector<16x128xf32>
    %94 = vector.extract_strided_slice %28 {offsets = [0, 96], sizes = [16, 32], strides = [1, 1]} : vector<16x128xbf16> to vector<16x32xbf16>
    %95 = vector.extract_strided_slice %29 {offsets = [0, 96], sizes = [16, 32], strides = [1, 1]} : vector<16x128xbf16> to vector<16x32xbf16>
    %96 = vector.extract_strided_slice %30 {offsets = [0, 96], sizes = [16, 32], strides = [1, 1]} : vector<16x128xbf16> to vector<16x32xbf16>
    %c96 = arith.constant 96 : index
    %c0_33 = arith.constant 0 : index
    %97 = vector.load %arg6[%c96, %c0_33] : memref<128x128xbf16, #tpu.memory_space<vmem>>, vector<32x128xbf16>
    %cst_34 = arith.constant dense<0.000000e+00> : vector<16x16xf32>
    %98 = tpu.matmul %94, %95, %cst_34 {dimension_numbers = #tpu.dot_dimension_numbers<[1], [1], [0], [0], [0, 0, 1, 0], [], []>} : vector<16x32xbf16>, vector<16x32xbf16>, vector<16x16xf32> -> vector<16x16xf32>
    %cst_35 = arith.constant dense<0xFF800000> : vector<16xf32>
    %99 = vector.multi_reduction <maximumf>, %98, %cst_35 [1] : vector<16x16xf32> to vector<16xf32>
    %100 = vector.shape_cast %99 : vector<16xf32> to vector<16x1xf32>
    %101 = vector.broadcast %100 : vector<16x1xf32> to vector<16x16xf32>
    %102 = arith.subf %98, %101 : vector<16x16xf32>
    %103 = math.exp %102 : vector<16x16xf32>
    %cst_36 = arith.constant dense<0.000000e+00> : vector<16xf32>
    %104 = vector.multi_reduction <add>, %103, %cst_36 [1] : vector<16x16xf32> to vector<16xf32>
    %105 = vector.shape_cast %104 : vector<16xf32> to vector<16x1xf32>
    %106 = tpu.reciprocal %105 {approx = true} : vector<16x1xf32> -> vector<16x1xf32>
    %107 = vector.broadcast %106 : vector<16x1xf32> to vector<16x16xf32>
    %108 = arith.mulf %103, %107 : vector<16x16xf32>
    %109 = arith.truncf %108 : vector<16x16xf32> to vector<16x16xbf16>
    %cst_37 = arith.constant dense<0.000000e+00> : vector<16x32xf32>
    %110 = tpu.matmul %109, %96, %cst_37 {dimension_numbers = #tpu.dot_dimension_numbers<[1], [0], [0], [1], [0, 0, 1, 1], [], []>} : vector<16x16xbf16>, vector<16x32xbf16>, vector<16x32xf32> -> vector<16x32xf32>
    %111 = arith.truncf %110 : vector<16x32xf32> to vector<16x32xbf16>
    %cst_38 = arith.constant dense<0.000000e+00> : vector<16x128xf32>
    %112 = tpu.matmul %111, %97, %cst_38 {dimension_numbers = #tpu.dot_dimension_numbers<[1], [0], [0], [1], [0, 0, 1, 1], [], []>} : vector<16x32xbf16>, vector<32x128xbf16>, vector<16x128xf32> -> vector<16x128xf32>
    %113 = arith.addf %93, %112 : vector<16x128xf32>
    %114 = arith.addf %1, %113 : vector<16x128xf32>
    %cst_39 = arith.constant dense<0.000000e+00> : vector<16xf32>
    %115 = vector.multi_reduction <add>, %114, %cst_39 [1] : vector<16x128xf32> to vector<16xf32>
    %116 = vector.shape_cast %115 : vector<16xf32> to vector<16x1xf32>
    %cst_40 = arith.constant 1.280000e+02 : f32
    %117 = vector.broadcast %cst_40 : f32 to vector<16x1xf32>
    %118 = arith.divf %116, %117 : vector<16x1xf32>
    %119 = vector.broadcast %118 : vector<16x1xf32> to vector<16x128xf32>
    %120 = arith.subf %114, %119 : vector<16x128xf32>
    %121 = arith.mulf %120, %120 : vector<16x128xf32>
    %cst_41 = arith.constant dense<0.000000e+00> : vector<16xf32>
    %122 = vector.multi_reduction <add>, %121, %cst_41 [1] : vector<16x128xf32> to vector<16xf32>
    %123 = vector.shape_cast %122 : vector<16xf32> to vector<16x1xf32>
    %cst_42 = arith.constant 1.280000e+02 : f32
    %124 = vector.broadcast %cst_42 : f32 to vector<16x1xf32>
    %125 = arith.divf %123, %124 : vector<16x1xf32>
    %cst_43 = arith.constant 9.99999974E-6 : f32
    %126 = vector.broadcast %cst_43 : f32 to vector<16x1xf32>
    %127 = arith.addf %125, %126 : vector<16x1xf32>
    %128 = math.rsqrt %127 : vector<16x1xf32>
    %129 = vector.broadcast %128 : vector<16x1xf32> to vector<16x128xf32>
    %130 = arith.mulf %120, %129 : vector<16x128xf32>
    %131 = vector.broadcast %10 : vector<1x128xf32> to vector<16x128xf32>
    %132 = arith.mulf %130, %131 : vector<16x128xf32>
    %133 = vector.broadcast %11 : vector<1x128xf32> to vector<16x128xf32>
    %134 = arith.addf %132, %133 : vector<16x128xf32>
    %c0_44 = arith.constant 0 : index
    %c0_45 = arith.constant 0 : index
    %135 = vector.load %arg10[%c0_44, %c0_45] : memref<1x256xf32, #tpu.memory_space<vmem>>, vector<1x256xf32>
    %136 = arith.truncf %134 : vector<16x128xf32> to vector<16x128xbf16>
    %c0_46 = arith.constant 0 : index
    %c0_47 = arith.constant 0 : index
    %137 = vector.load %arg7[%c0_46, %c0_47] : memref<128x256xbf16, #tpu.memory_space<vmem>>, vector<128x256xbf16>
    %cst_48 = arith.constant dense<0.000000e+00> : vector<16x256xf32>
    %138 = tpu.matmul %136, %137, %cst_48 {dimension_numbers = #tpu.dot_dimension_numbers<[1], [0], [0], [1], [0, 0, 1, 1], [], []>} : vector<16x128xbf16>, vector<128x256xbf16>, vector<16x256xf32> -> vector<16x256xf32>
    %139 = vector.broadcast %135 : vector<1x256xf32> to vector<16x256xf32>
    %140 = arith.addf %138, %139 : vector<16x256xf32>
    %cst_49 = arith.constant 0.000000e+00 : f32
    %141 = vector.broadcast %cst_49 : f32 to vector<16x256xf32>
    %142 = arith.maximumf %140, %141 : vector<16x256xf32>
    %143 = arith.truncf %142 : vector<16x256xf32> to vector<16x256xbf16>
    %c0_50 = arith.constant 0 : index
    %c0_51 = arith.constant 0 : index
    %144 = vector.load %arg8[%c0_50, %c0_51] : memref<256x128xbf16, #tpu.memory_space<vmem>>, vector<256x128xbf16>
    %cst_52 = arith.constant dense<0.000000e+00> : vector<16x128xf32>
    %145 = tpu.matmul %143, %144, %cst_52 {dimension_numbers = #tpu.dot_dimension_numbers<[1], [0], [0], [1], [0, 0, 1, 1], [], []>} : vector<16x256xbf16>, vector<256x128xbf16>, vector<16x128xf32> -> vector<16x128xf32>
    %146 = vector.broadcast %9 : vector<1x128xf32> to vector<16x128xf32>
    %147 = arith.addf %145, %146 : vector<16x128xf32>
    %148 = arith.addf %134, %147 : vector<16x128xf32>
    %cst_53 = arith.constant dense<0.000000e+00> : vector<16xf32>
    %149 = vector.multi_reduction <add>, %148, %cst_53 [1] : vector<16x128xf32> to vector<16xf32>
    %150 = vector.shape_cast %149 : vector<16xf32> to vector<16x1xf32>
    %cst_54 = arith.constant 1.280000e+02 : f32
    %151 = vector.broadcast %cst_54 : f32 to vector<16x1xf32>
    %152 = arith.divf %150, %151 : vector<16x1xf32>
    %153 = vector.broadcast %152 : vector<16x1xf32> to vector<16x128xf32>
    %154 = arith.subf %148, %153 : vector<16x128xf32>
    %155 = arith.mulf %154, %154 : vector<16x128xf32>
    %cst_55 = arith.constant dense<0.000000e+00> : vector<16xf32>
    %156 = vector.multi_reduction <add>, %155, %cst_55 [1] : vector<16x128xf32> to vector<16xf32>
    %157 = vector.shape_cast %156 : vector<16xf32> to vector<16x1xf32>
    %cst_56 = arith.constant 1.280000e+02 : f32
    %158 = vector.broadcast %cst_56 : f32 to vector<16x1xf32>
    %159 = arith.divf %157, %158 : vector<16x1xf32>
    %cst_57 = arith.constant 9.99999974E-6 : f32
    %160 = vector.broadcast %cst_57 : f32 to vector<16x1xf32>
    %161 = arith.addf %159, %160 : vector<16x1xf32>
    %162 = math.rsqrt %161 : vector<16x1xf32>
    %163 = vector.broadcast %162 : vector<16x1xf32> to vector<16x128xf32>
    %164 = arith.mulf %154, %163 : vector<16x128xf32>
    %165 = vector.broadcast %10 : vector<1x128xf32> to vector<16x128xf32>
    %166 = arith.mulf %164, %165 : vector<16x128xf32>
    %167 = vector.broadcast %11 : vector<1x128xf32> to vector<16x128xf32>
    %168 = arith.addf %166, %167 : vector<16x128xf32>
    %c0_58 = arith.constant 0 : index
    %c0_59 = arith.constant 0 : index
    %c0_60 = arith.constant 0 : index
    %169 = vector.load %arg11[%c0_58, %c0_59, %c0_60] : memref<1x16x128xf32, #tpu.memory_space<vmem>>, vector<1x16x128xf32>
    %170 = vector.shape_cast %169 : vector<1x16x128xf32> to vector<16x128xf32>
    %171 = vector.shape_cast %168 : vector<16x128xf32> to vector<1x16x128xf32>
    tpu.vector_store %arg11[%c0_58, %c0_59, %c0_60], %171 {strides = array<i32>} : memref<1x16x128xf32, #tpu.memory_space<vmem>>, vector<1x16x128xf32>,
    return
  }
  func.func @transform_0(%arg0: i32, %arg1: i32) -> (i32, i32, i32) {
    %c0_i32 = arith.constant 0 : i32
    %c0_i32_0 = arith.constant 0 : i32
    return %arg0, %arg1, %c0_i32 : i32, i32, i32
  }
  func.func @transform_1(%arg0: i32, %arg1: i32) -> (i32, i32, i32) {
    %c0_i32 = arith.constant 0 : i32
    %c0_i32_0 = arith.constant 0 : i32
    %c0_i32_1 = arith.constant 0 : i32
    return %arg0, %c0_i32, %c0_i32_0 : i32, i32, i32
  }
  func.func @transform_2(%arg0: i32, %arg1: i32) -> (i32, i32) {
    %c0_i32 = arith.constant 0 : i32
    %c0_i32_0 = arith.constant 0 : i32
    %c0_i32_1 = arith.constant 0 : i32
    return %c0_i32, %c0_i32_0 : i32, i32
  }
  func.func @transform_3(%arg0: i32, %arg1: i32) -> (i32, i32) {
    %c0_i32 = arith.constant 0 : i32
    %c0_i32_0 = arith.constant 0 : i32
    %c0_i32_1 = arith.constant 0 : i32
    return %c0_i32, %c0_i32_0 : i32, i32
  }
  func.func @transform_4(%arg0: i32, %arg1: i32) -> (i32, i32) {
    %c0_i32 = arith.constant 0 : i32
    %c0_i32_0 = arith.constant 0 : i32
    %c0_i32_1 = arith.constant 0 : i32
    return %c0_i32, %c0_i32_0 : i32, i32
  }
  func.func @transform_5(%arg0: i32, %arg1: i32) -> (i32, i32) {
    %c0_i32 = arith.constant 0 : i32
    %c0_i32_0 = arith.constant 0 : i32
    %c0_i32_1 = arith.constant 0 : i32
    return %c0_i32, %c0_i32_0 : i32, i32
  }
  func.func @transform_6(%arg0: i32, %arg1: i32) -> (i32, i32) {
    %c0_i32 = arith.constant 0 : i32
    %c0_i32_0 = arith.constant 0 : i32
    %c0_i32_1 = arith.constant 0 : i32
    return %c0_i32, %c0_i32_0 : i32, i32
  }
  func.func @transform_7(%arg0: i32, %arg1: i32) -> (i32, i32) {
    %c0_i32 = arith.constant 0 : i32
    %c0_i32_0 = arith.constant 0 : i32
    %c0_i32_1 = arith.constant 0 : i32
    return %c0_i32, %c0_i32_0 : i32, i32
  }
  func.func @transform_8(%arg0: i32, %arg1: i32) -> (i32, i32) {
    %c0_i32 = arith.constant 0 : i32
    %c0_i32_0 = arith.constant 0 : i32
    %c0_i32_1 = arith.constant 0 : i32
    return %c0_i32, %c0_i32_0 : i32, i32
  }
  func.func @transform_9(%arg0: i32, %arg1: i32) -> (i32, i32, i32) {
    %c0_i32 = arith.constant 0 : i32
    %c0_i32_0 = arith.constant 0 : i32
    return %arg0, %arg1, %c0_i32 : i32, i32, i32
  }
}

module attributes {stable_mosaic.version = 11 : i64} {
  func.func @_decoder_layer_kernel(%arg0: i32, %arg1: i32, %arg2: memref<1x16x128xf32, #tpu.memory_space<vmem>>, %arg3: memref<1x16x128xf32, #tpu.memory_space<vmem>>, %arg4: memref<1x16x128xf32, #tpu.memory_space<vmem>>, %arg5: memref<128x128xbf16, #tpu.memory_space<vmem>>, %arg6: memref<128x256xbf16, #tpu.memory_space<vmem>>, %arg7: memref<128x128xbf16, #tpu.memory_space<vmem>>, %arg8: memref<128x128xbf16, #tpu.memory_space<vmem>>, %arg9: memref<128x256xbf16, #tpu.memory_space<vmem>>, %arg10: memref<128x128xbf16, #tpu.memory_space<vmem>>, %arg11: memref<128x256xbf16, #tpu.memory_space<vmem>>, %arg12: memref<256x128xbf16, #tpu.memory_space<vmem>>, %arg13: memref<11x128xf32, #tpu.memory_space<vmem>>, %arg14: memref<1x256xf32, #tpu.memory_space<vmem>>, %arg15: memref<1x16x128xf32, #tpu.memory_space<vmem>>) attributes {dimension_semantics = [#tpu.dimension_semantics<parallel>, #tpu.dimension_semantics<parallel>], iteration_bounds = array<i64: 2, 1>, scalar_prefetch = 0 : i64, scratch_operands = 0 : i64, tpu.core_type = #tpu.core_type<tc>, window_params = [{transform_indices = @transform_0, window_bounds = array<i64: 1, 16, 128>}, {transform_indices = @transform_1, window_bounds = array<i64: 1, 16, 128>}, {transform_indices = @transform_2, window_bounds = array<i64: 1, 16, 128>}, {pipeline_mode = #tpu.pipeline_mode<synchronous>, transform_indices = @transform_3, window_bounds = array<i64: 128, 128>}, {pipeline_mode = #tpu.pipeline_mode<synchronous>, transform_indices = @transform_4, window_bounds = array<i64: 128, 256>}, {pipeline_mode = #tpu.pipeline_mode<synchronous>, transform_indices = @transform_5, window_bounds = array<i64: 128, 128>}, {pipeline_mode = #tpu.pipeline_mode<synchronous>, transform_indices = @transform_6, window_bounds = array<i64: 128, 128>}, {pipeline_mode = #tpu.pipeline_mode<synchronous>, transform_indices = @transform_7, window_bounds = array<i64: 128, 256>}, {pipeline_mode = #tpu.pipeline_mode<synchronous>, transform_indices = @transform_8, window_bounds = array<i64: 128, 128>}, {pipeline_mode = #tpu.pipeline_mode<synchronous>, transform_indices = @transform_9, window_bounds = array<i64: 128, 256>}, {pipeline_mode = #tpu.pipeline_mode<synchronous>, transform_indices = @transform_10, window_bounds = array<i64: 256, 128>}, {pipeline_mode = #tpu.pipeline_mode<synchronous>, transform_indices = @transform_11, window_bounds = array<i64: 11, 128>}, {pipeline_mode = #tpu.pipeline_mode<synchronous>, transform_indices = @transform_12, window_bounds = array<i64: 1, 256>}, {transform_indices = @transform_13, window_bounds = array<i64: 1, 16, 128>}]} {
    %c0 = arith.constant 0 : index
    %c0_0 = arith.constant 0 : index
    %c0_1 = arith.constant 0 : index
    %0 = vector.load %arg2[%c0, %c0_0, %c0_1] : memref<1x16x128xf32, #tpu.memory_space<vmem>>, vector<1x16x128xf32>
    %1 = vector.shape_cast %0 : vector<1x16x128xf32> to vector<16x128xf32>
    %c0_2 = arith.constant 0 : index
    %c0_3 = arith.constant 0 : index
    %c0_4 = arith.constant 0 : index
    %2 = vector.load %arg3[%c0_2, %c0_3, %c0_4] : memref<1x16x128xf32, #tpu.memory_space<vmem>>, vector<1x16x128xf32>
    %3 = vector.shape_cast %2 : vector<1x16x128xf32> to vector<16x128xf32>
    %c0_5 = arith.constant 0 : index
    %c0_6 = arith.constant 0 : index
    %c0_7 = arith.constant 0 : index
    %4 = vector.load %arg4[%c0_5, %c0_6, %c0_7] : memref<1x16x128xf32, #tpu.memory_space<vmem>>, vector<1x16x128xf32>
    %5 = vector.shape_cast %4 : vector<1x16x128xf32> to vector<16x128xf32>
    %c0_8 = arith.constant 0 : index
    %c0_9 = arith.constant 0 : index
    %6 = vector.load %arg13[%c0_8, %c0_9] : memref<11x128xf32, #tpu.memory_space<vmem>>, vector<11x128xf32>
    %7 = vector.extract_strided_slice %6 {offsets = [0, 0], sizes = [1, 128], strides = [1, 1]} : vector<11x128xf32> to vector<1x128xf32>
    %8 = vector.extract_strided_slice %6 {offsets = [1, 0], sizes = [1, 128], strides = [1, 1]} : vector<11x128xf32> to vector<1x128xf32>
    %9 = vector.extract_strided_slice %6 {offsets = [2, 0], sizes = [1, 128], strides = [1, 1]} : vector<11x128xf32> to vector<1x128xf32>
    %10 = vector.extract_strided_slice %6 {offsets = [3, 0], sizes = [1, 128], strides = [1, 1]} : vector<11x128xf32> to vector<1x128xf32>
    %11 = vector.extract_strided_slice %6 {offsets = [4, 0], sizes = [1, 128], strides = [1, 1]} : vector<11x128xf32> to vector<1x128xf32>
    %12 = vector.extract_strided_slice %6 {offsets = [5, 0], sizes = [1, 128], strides = [1, 1]} : vector<11x128xf32> to vector<1x128xf32>
    %13 = vector.extract_strided_slice %6 {offsets = [6, 0], sizes = [1, 128], strides = [1, 1]} : vector<11x128xf32> to vector<1x128xf32>
    %14 = vector.extract_strided_slice %6 {offsets = [7, 0], sizes = [1, 128], strides = [1, 1]} : vector<11x128xf32> to vector<1x128xf32>
    %15 = vector.extract_strided_slice %6 {offsets = [8, 0], sizes = [1, 128], strides = [1, 1]} : vector<11x128xf32> to vector<1x128xf32>
    %16 = vector.extract_strided_slice %6 {offsets = [9, 0], sizes = [1, 128], strides = [1, 1]} : vector<11x128xf32> to vector<1x128xf32>
    %17 = vector.extract_strided_slice %6 {offsets = [10, 0], sizes = [1, 128], strides = [1, 1]} : vector<11x128xf32> to vector<1x128xf32>
    %c16_i32 = arith.constant 16 : i32
    %18 = arith.muli %arg1, %c16_i32 : i32
    %19 = arith.truncf %1 : vector<16x128xf32> to vector<16x128xbf16>
    %20 = arith.truncf %3 : vector<16x128xf32> to vector<16x128xbf16>
    %c0_10 = arith.constant 0 : index
    %c0_11 = arith.constant 0 : index
    %21 = vector.load %arg5[%c0_10, %c0_11] : memref<128x128xbf16, #tpu.memory_space<vmem>>, vector<128x128xbf16>
    %cst = arith.constant dense<0.000000e+00> : vector<16x128xf32>
    %22 = tpu.matmul %19, %21, %cst {dimension_numbers = #tpu.dot_dimension_numbers<[1], [0], [0], [1], [0, 0, 1, 1], [], []>} : vector<16x128xbf16>, vector<128x128xbf16>, vector<16x128xf32> -> vector<16x128xf32>
    %23 = vector.broadcast %7 : vector<1x128xf32> to vector<16x128xf32>
    %24 = arith.addf %22, %23 : vector<16x128xf32>
    %cst_12 = arith.constant 0.176776692 : f32
    %25 = vector.broadcast %cst_12 : f32 to vector<16x128xf32>
    %26 = arith.mulf %24, %25 : vector<16x128xf32>
    %c0_13 = arith.constant 0 : index
    %c0_14 = arith.constant 0 : index
    %27 = vector.load %arg6[%c0_13, %c0_14] : memref<128x256xbf16, #tpu.memory_space<vmem>>, vector<128x256xbf16>
    %cst_15 = arith.constant dense<0.000000e+00> : vector<16x256xf32>
    %28 = tpu.matmul %20, %27, %cst_15 {dimension_numbers = #tpu.dot_dimension_numbers<[1], [0], [0], [1], [0, 0, 1, 1], [], []>} : vector<16x128xbf16>, vector<128x256xbf16>, vector<16x256xf32> -> vector<16x256xf32>
    %29 = vector.extract_strided_slice %28 {offsets = [0, 0], sizes = [16, 128], strides = [1, 1]} : vector<16x256xf32> to vector<16x128xf32>
    %30 = vector.broadcast %8 : vector<1x128xf32> to vector<16x128xf32>
    %31 = arith.addf %29, %30 : vector<16x128xf32>
    %32 = vector.extract_strided_slice %28 {offsets = [0, 128], sizes = [16, 128], strides = [1, 1]} : vector<16x256xf32> to vector<16x128xf32>
    %33 = vector.broadcast %9 : vector<1x128xf32> to vector<16x128xf32>
    %34 = arith.addf %32, %33 : vector<16x128xf32>
    %35 = arith.truncf %26 : vector<16x128xf32> to vector<16x128xbf16>
    %36 = arith.truncf %31 : vector<16x128xf32> to vector<16x128xbf16>
    %37 = arith.truncf %34 : vector<16x128xf32> to vector<16x128xbf16>
    %38 = tpu.iota {dimensions = array<i32: 0>} : vector<16x16xi32>
    %39 = vector.broadcast %18 : i32 to vector<16x16xi32>
    %40 = arith.addi %39, %38 : vector<16x16xi32>
    %41 = tpu.iota {dimensions = array<i32: 1>} : vector<16x16xi32>
    %42 = arith.cmpi sle, %41, %40 : vector<16x16xi32>
    %cst_16 = arith.constant 0.000000e+00 : f32
    %43 = vector.broadcast %cst_16 : f32 to vector<16x128xf32>
    %44 = vector.broadcast %10 : vector<1x128xf32> to vector<16x128xf32>
    %45 = arith.addf %43, %44 : vector<16x128xf32>
    %46 = vector.extract_strided_slice %35 {offsets = [0, 0], sizes = [16, 32], strides = [1, 1]} : vector<16x128xbf16> to vector<16x32xbf16>
    %47 = vector.extract_strided_slice %36 {offsets = [0, 0], sizes = [16, 32], strides = [1, 1]} : vector<16x128xbf16> to vector<16x32xbf16>
    %48 = vector.extract_strided_slice %37 {offsets = [0, 0], sizes = [16, 32], strides = [1, 1]} : vector<16x128xbf16> to vector<16x32xbf16>
    %c0_17 = arith.constant 0 : index
    %c0_18 = arith.constant 0 : index
    %49 = vector.load %arg7[%c0_17, %c0_18] : memref<128x128xbf16, #tpu.memory_space<vmem>>, vector<32x128xbf16>
    %cst_19 = arith.constant dense<0.000000e+00> : vector<16x16xf32>
    %50 = tpu.matmul %46, %47, %cst_19 {dimension_numbers = #tpu.dot_dimension_numbers<[1], [1], [0], [0], [0, 0, 1, 0], [], []>} : vector<16x32xbf16>, vector<16x32xbf16>, vector<16x16xf32> -> vector<16x16xf32>
    %cst_20 = arith.constant -1.000000e+30 : f32
    %51 = vector.broadcast %cst_20 : f32 to vector<16x16xf32>
    %52 = arith.select %42, %50, %51 : vector<16x16xi1>, vector<16x16xf32>
    %cst_21 = arith.constant dense<0xFF800000> : vector<16xf32>
    %53 = vector.multi_reduction <maximumf>, %52, %cst_21 [1] : vector<16x16xf32> to vector<16xf32>
    %54 = vector.shape_cast %53 : vector<16xf32> to vector<16x1xf32>
    %55 = vector.broadcast %54 : vector<16x1xf32> to vector<16x16xf32>
    %56 = arith.subf %52, %55 : vector<16x16xf32>
    %57 = math.exp %56 : vector<16x16xf32>
    %cst_22 = arith.constant dense<0.000000e+00> : vector<16xf32>
    %58 = vector.multi_reduction <add>, %57, %cst_22 [1] : vector<16x16xf32> to vector<16xf32>
    %59 = vector.shape_cast %58 : vector<16xf32> to vector<16x1xf32>
    %60 = tpu.reciprocal %59 {approx = true} : vector<16x1xf32> -> vector<16x1xf32>
    %61 = vector.broadcast %60 : vector<16x1xf32> to vector<16x16xf32>
    %62 = arith.mulf %57, %61 : vector<16x16xf32>
    %63 = arith.truncf %62 : vector<16x16xf32> to vector<16x16xbf16>
    %cst_23 = arith.constant dense<0.000000e+00> : vector<16x32xf32>
    %64 = tpu.matmul %63, %48, %cst_23 {dimension_numbers = #tpu.dot_dimension_numbers<[1], [0], [0], [1], [0, 0, 1, 1], [], []>} : vector<16x16xbf16>, vector<16x32xbf16>, vector<16x32xf32> -> vector<16x32xf32>
    %65 = arith.truncf %64 : vector<16x32xf32> to vector<16x32xbf16>
    %cst_24 = arith.constant dense<0.000000e+00> : vector<16x128xf32>
    %66 = tpu.matmul %65, %49, %cst_24 {dimension_numbers = #tpu.dot_dimension_numbers<[1], [0], [0], [1], [0, 0, 1, 1], [], []>} : vector<16x32xbf16>, vector<32x128xbf16>, vector<16x128xf32> -> vector<16x128xf32>
    %67 = arith.addf %45, %66 : vector<16x128xf32>
    %68 = vector.extract_strided_slice %35 {offsets = [0, 32], sizes = [16, 32], strides = [1, 1]} : vector<16x128xbf16> to vector<16x32xbf16>
    %69 = vector.extract_strided_slice %36 {offsets = [0, 32], sizes = [16, 32], strides = [1, 1]} : vector<16x128xbf16> to vector<16x32xbf16>
    %70 = vector.extract_strided_slice %37 {offsets = [0, 32], sizes = [16, 32], strides = [1, 1]} : vector<16x128xbf16> to vector<16x32xbf16>
    %c32 = arith.constant 32 : index
    %c0_25 = arith.constant 0 : index
    %71 = vector.load %arg7[%c32, %c0_25] : memref<128x128xbf16, #tpu.memory_space<vmem>>, vector<32x128xbf16>
    %cst_26 = arith.constant dense<0.000000e+00> : vector<16x16xf32>
    %72 = tpu.matmul %68, %69, %cst_26 {dimension_numbers = #tpu.dot_dimension_numbers<[1], [1], [0], [0], [0, 0, 1, 0], [], []>} : vector<16x32xbf16>, vector<16x32xbf16>, vector<16x16xf32> -> vector<16x16xf32>
    %cst_27 = arith.constant -1.000000e+30 : f32
    %73 = vector.broadcast %cst_27 : f32 to vector<16x16xf32>
    %74 = arith.select %42, %72, %73 : vector<16x16xi1>, vector<16x16xf32>
    %cst_28 = arith.constant dense<0xFF800000> : vector<16xf32>
    %75 = vector.multi_reduction <maximumf>, %74, %cst_28 [1] : vector<16x16xf32> to vector<16xf32>
    %76 = vector.shape_cast %75 : vector<16xf32> to vector<16x1xf32>
    %77 = vector.broadcast %76 : vector<16x1xf32> to vector<16x16xf32>
    %78 = arith.subf %74, %77 : vector<16x16xf32>
    %79 = math.exp %78 : vector<16x16xf32>
    %cst_29 = arith.constant dense<0.000000e+00> : vector<16xf32>
    %80 = vector.multi_reduction <add>, %79, %cst_29 [1] : vector<16x16xf32> to vector<16xf32>
    %81 = vector.shape_cast %80 : vector<16xf32> to vector<16x1xf32>
    %82 = tpu.reciprocal %81 {approx = true} : vector<16x1xf32> -> vector<16x1xf32>
    %83 = vector.broadcast %82 : vector<16x1xf32> to vector<16x16xf32>
    %84 = arith.mulf %79, %83 : vector<16x16xf32>
    %85 = arith.truncf %84 : vector<16x16xf32> to vector<16x16xbf16>
    %cst_30 = arith.constant dense<0.000000e+00> : vector<16x32xf32>
    %86 = tpu.matmul %85, %70, %cst_30 {dimension_numbers = #tpu.dot_dimension_numbers<[1], [0], [0], [1], [0, 0, 1, 1], [], []>} : vector<16x16xbf16>, vector<16x32xbf16>, vector<16x32xf32> -> vector<16x32xf32>
    %87 = arith.truncf %86 : vector<16x32xf32> to vector<16x32xbf16>
    %cst_31 = arith.constant dense<0.000000e+00> : vector<16x128xf32>
    %88 = tpu.matmul %87, %71, %cst_31 {dimension_numbers = #tpu.dot_dimension_numbers<[1], [0], [0], [1], [0, 0, 1, 1], [], []>} : vector<16x32xbf16>, vector<32x128xbf16>, vector<16x128xf32> -> vector<16x128xf32>
    %89 = arith.addf %67, %88 : vector<16x128xf32>
    %90 = vector.extract_strided_slice %35 {offsets = [0, 64], sizes = [16, 32], strides = [1, 1]} : vector<16x128xbf16> to vector<16x32xbf16>
    %91 = vector.extract_strided_slice %36 {offsets = [0, 64], sizes = [16, 32], strides = [1, 1]} : vector<16x128xbf16> to vector<16x32xbf16>
    %92 = vector.extract_strided_slice %37 {offsets = [0, 64], sizes = [16, 32], strides = [1, 1]} : vector<16x128xbf16> to vector<16x32xbf16>
    %c64 = arith.constant 64 : index
    %c0_32 = arith.constant 0 : index
    %93 = vector.load %arg7[%c64, %c0_32] : memref<128x128xbf16, #tpu.memory_space<vmem>>, vector<32x128xbf16>
    %cst_33 = arith.constant dense<0.000000e+00> : vector<16x16xf32>
    %94 = tpu.matmul %90, %91, %cst_33 {dimension_numbers = #tpu.dot_dimension_numbers<[1], [1], [0], [0], [0, 0, 1, 0], [], []>} : vector<16x32xbf16>, vector<16x32xbf16>, vector<16x16xf32> -> vector<16x16xf32>
    %cst_34 = arith.constant -1.000000e+30 : f32
    %95 = vector.broadcast %cst_34 : f32 to vector<16x16xf32>
    %96 = arith.select %42, %94, %95 : vector<16x16xi1>, vector<16x16xf32>
    %cst_35 = arith.constant dense<0xFF800000> : vector<16xf32>
    %97 = vector.multi_reduction <maximumf>, %96, %cst_35 [1] : vector<16x16xf32> to vector<16xf32>
    %98 = vector.shape_cast %97 : vector<16xf32> to vector<16x1xf32>
    %99 = vector.broadcast %98 : vector<16x1xf32> to vector<16x16xf32>
    %100 = arith.subf %96, %99 : vector<16x16xf32>
    %101 = math.exp %100 : vector<16x16xf32>
    %cst_36 = arith.constant dense<0.000000e+00> : vector<16xf32>
    %102 = vector.multi_reduction <add>, %101, %cst_36 [1] : vector<16x16xf32> to vector<16xf32>
    %103 = vector.shape_cast %102 : vector<16xf32> to vector<16x1xf32>
    %104 = tpu.reciprocal %103 {approx = true} : vector<16x1xf32> -> vector<16x1xf32>
    %105 = vector.broadcast %104 : vector<16x1xf32> to vector<16x16xf32>
    %106 = arith.mulf %101, %105 : vector<16x16xf32>
    %107 = arith.truncf %106 : vector<16x16xf32> to vector<16x16xbf16>
    %cst_37 = arith.constant dense<0.000000e+00> : vector<16x32xf32>
    %108 = tpu.matmul %107, %92, %cst_37 {dimension_numbers = #tpu.dot_dimension_numbers<[1], [0], [0], [1], [0, 0, 1, 1], [], []>} : vector<16x16xbf16>, vector<16x32xbf16>, vector<16x32xf32> -> vector<16x32xf32>
    %109 = arith.truncf %108 : vector<16x32xf32> to vector<16x32xbf16>
    %cst_38 = arith.constant dense<0.000000e+00> : vector<16x128xf32>
    %110 = tpu.matmul %109, %93, %cst_38 {dimension_numbers = #tpu.dot_dimension_numbers<[1], [0], [0], [1], [0, 0, 1, 1], [], []>} : vector<16x32xbf16>, vector<32x128xbf16>, vector<16x128xf32> -> vector<16x128xf32>
    %111 = arith.addf %89, %110 : vector<16x128xf32>
    %112 = vector.extract_strided_slice %35 {offsets = [0, 96], sizes = [16, 32], strides = [1, 1]} : vector<16x128xbf16> to vector<16x32xbf16>
    %113 = vector.extract_strided_slice %36 {offsets = [0, 96], sizes = [16, 32], strides = [1, 1]} : vector<16x128xbf16> to vector<16x32xbf16>
    %114 = vector.extract_strided_slice %37 {offsets = [0, 96], sizes = [16, 32], strides = [1, 1]} : vector<16x128xbf16> to vector<16x32xbf16>
    %c96 = arith.constant 96 : index
    %c0_39 = arith.constant 0 : index
    %115 = vector.load %arg7[%c96, %c0_39] : memref<128x128xbf16, #tpu.memory_space<vmem>>, vector<32x128xbf16>
    %cst_40 = arith.constant dense<0.000000e+00> : vector<16x16xf32>
    %116 = tpu.matmul %112, %113, %cst_40 {dimension_numbers = #tpu.dot_dimension_numbers<[1], [1], [0], [0], [0, 0, 1, 0], [], []>} : vector<16x32xbf16>, vector<16x32xbf16>, vector<16x16xf32> -> vector<16x16xf32>
    %cst_41 = arith.constant -1.000000e+30 : f32
    %117 = vector.broadcast %cst_41 : f32 to vector<16x16xf32>
    %118 = arith.select %42, %116, %117 : vector<16x16xi1>, vector<16x16xf32>
    %cst_42 = arith.constant dense<0xFF800000> : vector<16xf32>
    %119 = vector.multi_reduction <maximumf>, %118, %cst_42 [1] : vector<16x16xf32> to vector<16xf32>
    %120 = vector.shape_cast %119 : vector<16xf32> to vector<16x1xf32>
    %121 = vector.broadcast %120 : vector<16x1xf32> to vector<16x16xf32>
    %122 = arith.subf %118, %121 : vector<16x16xf32>
    %123 = math.exp %122 : vector<16x16xf32>
    %cst_43 = arith.constant dense<0.000000e+00> : vector<16xf32>
    %124 = vector.multi_reduction <add>, %123, %cst_43 [1] : vector<16x16xf32> to vector<16xf32>
    %125 = vector.shape_cast %124 : vector<16xf32> to vector<16x1xf32>
    %126 = tpu.reciprocal %125 {approx = true} : vector<16x1xf32> -> vector<16x1xf32>
    %127 = vector.broadcast %126 : vector<16x1xf32> to vector<16x16xf32>
    %128 = arith.mulf %123, %127 : vector<16x16xf32>
    %129 = arith.truncf %128 : vector<16x16xf32> to vector<16x16xbf16>
    %cst_44 = arith.constant dense<0.000000e+00> : vector<16x32xf32>
    %130 = tpu.matmul %129, %114, %cst_44 {dimension_numbers = #tpu.dot_dimension_numbers<[1], [0], [0], [1], [0, 0, 1, 1], [], []>} : vector<16x16xbf16>, vector<16x32xbf16>, vector<16x32xf32> -> vector<16x32xf32>
    %131 = arith.truncf %130 : vector<16x32xf32> to vector<16x32xbf16>
    %cst_45 = arith.constant dense<0.000000e+00> : vector<16x128xf32>
    %132 = tpu.matmul %131, %115, %cst_45 {dimension_numbers = #tpu.dot_dimension_numbers<[1], [0], [0], [1], [0, 0, 1, 1], [], []>} : vector<16x32xbf16>, vector<32x128xbf16>, vector<16x128xf32> -> vector<16x128xf32>
    %133 = arith.addf %111, %132 : vector<16x128xf32>
    %134 = arith.addf %1, %133 : vector<16x128xf32>
    %cst_46 = arith.constant dense<0.000000e+00> : vector<16xf32>
    %135 = vector.multi_reduction <add>, %134, %cst_46 [1] : vector<16x128xf32> to vector<16xf32>
    %136 = vector.shape_cast %135 : vector<16xf32> to vector<16x1xf32>
    %cst_47 = arith.constant 1.280000e+02 : f32
    %137 = vector.broadcast %cst_47 : f32 to vector<16x1xf32>
    %138 = arith.divf %136, %137 : vector<16x1xf32>
    %139 = vector.broadcast %138 : vector<16x1xf32> to vector<16x128xf32>
    %140 = arith.subf %134, %139 : vector<16x128xf32>
    %141 = arith.mulf %140, %140 : vector<16x128xf32>
    %cst_48 = arith.constant dense<0.000000e+00> : vector<16xf32>
    %142 = vector.multi_reduction <add>, %141, %cst_48 [1] : vector<16x128xf32> to vector<16xf32>
    %143 = vector.shape_cast %142 : vector<16xf32> to vector<16x1xf32>
    %cst_49 = arith.constant 1.280000e+02 : f32
    %144 = vector.broadcast %cst_49 : f32 to vector<16x1xf32>
    %145 = arith.divf %143, %144 : vector<16x1xf32>
    %cst_50 = arith.constant 9.99999974E-6 : f32
    %146 = vector.broadcast %cst_50 : f32 to vector<16x1xf32>
    %147 = arith.addf %145, %146 : vector<16x1xf32>
    %148 = math.rsqrt %147 : vector<16x1xf32>
    %149 = vector.broadcast %148 : vector<16x1xf32> to vector<16x128xf32>
    %150 = arith.mulf %140, %149 : vector<16x128xf32>
    %151 = vector.broadcast %16 : vector<1x128xf32> to vector<16x128xf32>
    %152 = arith.mulf %150, %151 : vector<16x128xf32>
    %153 = vector.broadcast %17 : vector<1x128xf32> to vector<16x128xf32>
    %154 = arith.addf %152, %153 : vector<16x128xf32>
    %155 = arith.truncf %1 : vector<16x128xf32> to vector<16x128xbf16>
    %156 = arith.truncf %5 : vector<16x128xf32> to vector<16x128xbf16>
    %c0_51 = arith.constant 0 : index
    %c0_52 = arith.constant 0 : index
    %157 = vector.load %arg8[%c0_51, %c0_52] : memref<128x128xbf16, #tpu.memory_space<vmem>>, vector<128x128xbf16>
    %cst_53 = arith.constant dense<0.000000e+00> : vector<16x128xf32>
    %158 = tpu.matmul %155, %157, %cst_53 {dimension_numbers = #tpu.dot_dimension_numbers<[1], [0], [0], [1], [0, 0, 1, 1], [], []>} : vector<16x128xbf16>, vector<128x128xbf16>, vector<16x128xf32> -> vector<16x128xf32>
    %159 = vector.broadcast %11 : vector<1x128xf32> to vector<16x128xf32>
    %160 = arith.addf %158, %159 : vector<16x128xf32>
    %cst_54 = arith.constant 0.176776692 : f32
    %161 = vector.broadcast %cst_54 : f32 to vector<16x128xf32>
    %162 = arith.mulf %160, %161 : vector<16x128xf32>
    %c0_55 = arith.constant 0 : index
    %c0_56 = arith.constant 0 : index
    %163 = vector.load %arg9[%c0_55, %c0_56] : memref<128x256xbf16, #tpu.memory_space<vmem>>, vector<128x256xbf16>
    %cst_57 = arith.constant dense<0.000000e+00> : vector<16x256xf32>
    %164 = tpu.matmul %156, %163, %cst_57 {dimension_numbers = #tpu.dot_dimension_numbers<[1], [0], [0], [1], [0, 0, 1, 1], [], []>} : vector<16x128xbf16>, vector<128x256xbf16>, vector<16x256xf32> -> vector<16x256xf32>
    %165 = vector.extract_strided_slice %164 {offsets = [0, 0], sizes = [16, 128], strides = [1, 1]} : vector<16x256xf32> to vector<16x128xf32>
    %166 = vector.broadcast %12 : vector<1x128xf32> to vector<16x128xf32>
    %167 = arith.addf %165, %166 : vector<16x128xf32>
    %168 = vector.extract_strided_slice %164 {offsets = [0, 128], sizes = [16, 128], strides = [1, 1]} : vector<16x256xf32> to vector<16x128xf32>
    %169 = vector.broadcast %13 : vector<1x128xf32> to vector<16x128xf32>
    %170 = arith.addf %168, %169 : vector<16x128xf32>
    %171 = arith.truncf %162 : vector<16x128xf32> to vector<16x128xbf16>
    %172 = arith.truncf %167 : vector<16x128xf32> to vector<16x128xbf16>
    %173 = arith.truncf %170 : vector<16x128xf32> to vector<16x128xbf16>
    %cst_58 = arith.constant 0.000000e+00 : f32
    %174 = vector.broadcast %cst_58 : f32 to vector<16x128xf32>
    %175 = vector.broadcast %14 : vector<1x128xf32> to vector<16x128xf32>
    %176 = arith.addf %174, %175 : vector<16x128xf32>
    %177 = vector.extract_strided_slice %171 {offsets = [0, 0], sizes = [16, 32], strides = [1, 1]} : vector<16x128xbf16> to vector<16x32xbf16>
    %178 = vector.extract_strided_slice %172 {offsets = [0, 0], sizes = [16, 32], strides = [1, 1]} : vector<16x128xbf16> to vector<16x32xbf16>
    %179 = vector.extract_strided_slice %173 {offsets = [0, 0], sizes = [16, 32], strides = [1, 1]} : vector<16x128xbf16> to vector<16x32xbf16>
    %c0_59 = arith.constant 0 : index
    %c0_60 = arith.constant 0 : index
    %180 = vector.load %arg10[%c0_59, %c0_60] : memref<128x128xbf16, #tpu.memory_space<vmem>>, vector<32x128xbf16>
    %cst_61 = arith.constant dense<0.000000e+00> : vector<16x16xf32>
    %181 = tpu.matmul %177, %178, %cst_61 {dimension_numbers = #tpu.dot_dimension_numbers<[1], [1], [0], [0], [0, 0, 1, 0], [], []>} : vector<16x32xbf16>, vector<16x32xbf16>, vector<16x16xf32> -> vector<16x16xf32>
    %cst_62 = arith.constant dense<0xFF800000> : vector<16xf32>
    %182 = vector.multi_reduction <maximumf>, %181, %cst_62 [1] : vector<16x16xf32> to vector<16xf32>
    %183 = vector.shape_cast %182 : vector<16xf32> to vector<16x1xf32>
    %184 = vector.broadcast %183 : vector<16x1xf32> to vector<16x16xf32>
    %185 = arith.subf %181, %184 : vector<16x16xf32>
    %186 = math.exp %185 : vector<16x16xf32>
    %cst_63 = arith.constant dense<0.000000e+00> : vector<16xf32>
    %187 = vector.multi_reduction <add>, %186, %cst_63 [1] : vector<16x16xf32> to vector<16xf32>
    %188 = vector.shape_cast %187 : vector<16xf32> to vector<16x1xf32>
    %189 = tpu.reciprocal %188 {approx = true} : vector<16x1xf32> -> vector<16x1xf32>
    %190 = vector.broadcast %189 : vector<16x1xf32> to vector<16x16xf32>
    %191 = arith.mulf %186, %190 : vector<16x16xf32>
    %192 = arith.truncf %191 : vector<16x16xf32> to vector<16x16xbf16>
    %cst_64 = arith.constant dense<0.000000e+00> : vector<16x32xf32>
    %193 = tpu.matmul %192, %179, %cst_64 {dimension_numbers = #tpu.dot_dimension_numbers<[1], [0], [0], [1], [0, 0, 1, 1], [], []>} : vector<16x16xbf16>, vector<16x32xbf16>, vector<16x32xf32> -> vector<16x32xf32>
    %194 = arith.truncf %193 : vector<16x32xf32> to vector<16x32xbf16>
    %cst_65 = arith.constant dense<0.000000e+00> : vector<16x128xf32>
    %195 = tpu.matmul %194, %180, %cst_65 {dimension_numbers = #tpu.dot_dimension_numbers<[1], [0], [0], [1], [0, 0, 1, 1], [], []>} : vector<16x32xbf16>, vector<32x128xbf16>, vector<16x128xf32> -> vector<16x128xf32>
    %196 = arith.addf %176, %195 : vector<16x128xf32>
    %197 = vector.extract_strided_slice %171 {offsets = [0, 32], sizes = [16, 32], strides = [1, 1]} : vector<16x128xbf16> to vector<16x32xbf16>
    %198 = vector.extract_strided_slice %172 {offsets = [0, 32], sizes = [16, 32], strides = [1, 1]} : vector<16x128xbf16> to vector<16x32xbf16>
    %199 = vector.extract_strided_slice %173 {offsets = [0, 32], sizes = [16, 32], strides = [1, 1]} : vector<16x128xbf16> to vector<16x32xbf16>
    %c32_66 = arith.constant 32 : index
    %c0_67 = arith.constant 0 : index
    %200 = vector.load %arg10[%c32_66, %c0_67] : memref<128x128xbf16, #tpu.memory_space<vmem>>, vector<32x128xbf16>
    %cst_68 = arith.constant dense<0.000000e+00> : vector<16x16xf32>
    %201 = tpu.matmul %197, %198, %cst_68 {dimension_numbers = #tpu.dot_dimension_numbers<[1], [1], [0], [0], [0, 0, 1, 0], [], []>} : vector<16x32xbf16>, vector<16x32xbf16>, vector<16x16xf32> -> vector<16x16xf32>
    %cst_69 = arith.constant dense<0xFF800000> : vector<16xf32>
    %202 = vector.multi_reduction <maximumf>, %201, %cst_69 [1] : vector<16x16xf32> to vector<16xf32>
    %203 = vector.shape_cast %202 : vector<16xf32> to vector<16x1xf32>
    %204 = vector.broadcast %203 : vector<16x1xf32> to vector<16x16xf32>
    %205 = arith.subf %201, %204 : vector<16x16xf32>
    %206 = math.exp %205 : vector<16x16xf32>
    %cst_70 = arith.constant dense<0.000000e+00> : vector<16xf32>
    %207 = vector.multi_reduction <add>, %206, %cst_70 [1] : vector<16x16xf32> to vector<16xf32>
    %208 = vector.shape_cast %207 : vector<16xf32> to vector<16x1xf32>
    %209 = tpu.reciprocal %208 {approx = true} : vector<16x1xf32> -> vector<16x1xf32>
    %210 = vector.broadcast %209 : vector<16x1xf32> to vector<16x16xf32>
    %211 = arith.mulf %206, %210 : vector<16x16xf32>
    %212 = arith.truncf %211 : vector<16x16xf32> to vector<16x16xbf16>
    %cst_71 = arith.constant dense<0.000000e+00> : vector<16x32xf32>
    %213 = tpu.matmul %212, %199, %cst_71 {dimension_numbers = #tpu.dot_dimension_numbers<[1], [0], [0], [1], [0, 0, 1, 1], [], []>} : vector<16x16xbf16>, vector<16x32xbf16>, vector<16x32xf32> -> vector<16x32xf32>
    %214 = arith.truncf %213 : vector<16x32xf32> to vector<16x32xbf16>
    %cst_72 = arith.constant dense<0.000000e+00> : vector<16x128xf32>
    %215 = tpu.matmul %214, %200, %cst_72 {dimension_numbers = #tpu.dot_dimension_numbers<[1], [0], [0], [1], [0, 0, 1, 1], [], []>} : vector<16x32xbf16>, vector<32x128xbf16>, vector<16x128xf32> -> vector<16x128xf32>
    %216 = arith.addf %196, %215 : vector<16x128xf32>
    %217 = vector.extract_strided_slice %171 {offsets = [0, 64], sizes = [16, 32], strides = [1, 1]} : vector<16x128xbf16> to vector<16x32xbf16>
    %218 = vector.extract_strided_slice %172 {offsets = [0, 64], sizes = [16, 32], strides = [1, 1]} : vector<16x128xbf16> to vector<16x32xbf16>
    %219 = vector.extract_strided_slice %173 {offsets = [0, 64], sizes = [16, 32], strides = [1, 1]} : vector<16x128xbf16> to vector<16x32xbf16>
    %c64_73 = arith.constant 64 : index
    %c0_74 = arith.constant 0 : index
    %220 = vector.load %arg10[%c64_73, %c0_74] : memref<128x128xbf16, #tpu.memory_space<vmem>>, vector<32x128xbf16>
    %cst_75 = arith.constant dense<0.000000e+00> : vector<16x16xf32>
    %221 = tpu.matmul %217, %218, %cst_75 {dimension_numbers = #tpu.dot_dimension_numbers<[1], [1], [0], [0], [0, 0, 1, 0], [], []>} : vector<16x32xbf16>, vector<16x32xbf16>, vector<16x16xf32> -> vector<16x16xf32>
    %cst_76 = arith.constant dense<0xFF800000> : vector<16xf32>
    %222 = vector.multi_reduction <maximumf>, %221, %cst_76 [1] : vector<16x16xf32> to vector<16xf32>
    %223 = vector.shape_cast %222 : vector<16xf32> to vector<16x1xf32>
    %224 = vector.broadcast %223 : vector<16x1xf32> to vector<16x16xf32>
    %225 = arith.subf %221, %224 : vector<16x16xf32>
    %226 = math.exp %225 : vector<16x16xf32>
    %cst_77 = arith.constant dense<0.000000e+00> : vector<16xf32>
    %227 = vector.multi_reduction <add>, %226, %cst_77 [1] : vector<16x16xf32> to vector<16xf32>
    %228 = vector.shape_cast %227 : vector<16xf32> to vector<16x1xf32>
    %229 = tpu.reciprocal %228 {approx = true} : vector<16x1xf32> -> vector<16x1xf32>
    %230 = vector.broadcast %229 : vector<16x1xf32> to vector<16x16xf32>
    %231 = arith.mulf %226, %230 : vector<16x16xf32>
    %232 = arith.truncf %231 : vector<16x16xf32> to vector<16x16xbf16>
    %cst_78 = arith.constant dense<0.000000e+00> : vector<16x32xf32>
    %233 = tpu.matmul %232, %219, %cst_78 {dimension_numbers = #tpu.dot_dimension_numbers<[1], [0], [0], [1], [0, 0, 1, 1], [], []>} : vector<16x16xbf16>, vector<16x32xbf16>, vector<16x32xf32> -> vector<16x32xf32>
    %234 = arith.truncf %233 : vector<16x32xf32> to vector<16x32xbf16>
    %cst_79 = arith.constant dense<0.000000e+00> : vector<16x128xf32>
    %235 = tpu.matmul %234, %220, %cst_79 {dimension_numbers = #tpu.dot_dimension_numbers<[1], [0], [0], [1], [0, 0, 1, 1], [], []>} : vector<16x32xbf16>, vector<32x128xbf16>, vector<16x128xf32> -> vector<16x128xf32>
    %236 = arith.addf %216, %235 : vector<16x128xf32>
    %237 = vector.extract_strided_slice %171 {offsets = [0, 96], sizes = [16, 32], strides = [1, 1]} : vector<16x128xbf16> to vector<16x32xbf16>
    %238 = vector.extract_strided_slice %172 {offsets = [0, 96], sizes = [16, 32], strides = [1, 1]} : vector<16x128xbf16> to vector<16x32xbf16>
    %239 = vector.extract_strided_slice %173 {offsets = [0, 96], sizes = [16, 32], strides = [1, 1]} : vector<16x128xbf16> to vector<16x32xbf16>
    %c96_80 = arith.constant 96 : index
    %c0_81 = arith.constant 0 : index
    %240 = vector.load %arg10[%c96_80, %c0_81] : memref<128x128xbf16, #tpu.memory_space<vmem>>, vector<32x128xbf16>
    %cst_82 = arith.constant dense<0.000000e+00> : vector<16x16xf32>
    %241 = tpu.matmul %237, %238, %cst_82 {dimension_numbers = #tpu.dot_dimension_numbers<[1], [1], [0], [0], [0, 0, 1, 0], [], []>} : vector<16x32xbf16>, vector<16x32xbf16>, vector<16x16xf32> -> vector<16x16xf32>
    %cst_83 = arith.constant dense<0xFF800000> : vector<16xf32>
    %242 = vector.multi_reduction <maximumf>, %241, %cst_83 [1] : vector<16x16xf32> to vector<16xf32>
    %243 = vector.shape_cast %242 : vector<16xf32> to vector<16x1xf32>
    %244 = vector.broadcast %243 : vector<16x1xf32> to vector<16x16xf32>
    %245 = arith.subf %241, %244 : vector<16x16xf32>
    %246 = math.exp %245 : vector<16x16xf32>
    %cst_84 = arith.constant dense<0.000000e+00> : vector<16xf32>
    %247 = vector.multi_reduction <add>, %246, %cst_84 [1] : vector<16x16xf32> to vector<16xf32>
    %248 = vector.shape_cast %247 : vector<16xf32> to vector<16x1xf32>
    %249 = tpu.reciprocal %248 {approx = true} : vector<16x1xf32> -> vector<16x1xf32>
    %250 = vector.broadcast %249 : vector<16x1xf32> to vector<16x16xf32>
    %251 = arith.mulf %246, %250 : vector<16x16xf32>
    %252 = arith.truncf %251 : vector<16x16xf32> to vector<16x16xbf16>
    %cst_85 = arith.constant dense<0.000000e+00> : vector<16x32xf32>
    %253 = tpu.matmul %252, %239, %cst_85 {dimension_numbers = #tpu.dot_dimension_numbers<[1], [0], [0], [1], [0, 0, 1, 1], [], []>} : vector<16x16xbf16>, vector<16x32xbf16>, vector<16x32xf32> -> vector<16x32xf32>
    %254 = arith.truncf %253 : vector<16x32xf32> to vector<16x32xbf16>
    %cst_86 = arith.constant dense<0.000000e+00> : vector<16x128xf32>
    %255 = tpu.matmul %254, %240, %cst_86 {dimension_numbers = #tpu.dot_dimension_numbers<[1], [0], [0], [1], [0, 0, 1, 1], [], []>} : vector<16x32xbf16>, vector<32x128xbf16>, vector<16x128xf32> -> vector<16x128xf32>
    %256 = arith.addf %236, %255 : vector<16x128xf32>
    %257 = arith.addf %154, %256 : vector<16x128xf32>
    %cst_87 = arith.constant dense<0.000000e+00> : vector<16xf32>
    %258 = vector.multi_reduction <add>, %257, %cst_87 [1] : vector<16x128xf32> to vector<16xf32>
    %259 = vector.shape_cast %258 : vector<16xf32> to vector<16x1xf32>
    %cst_88 = arith.constant 1.280000e+02 : f32
    %260 = vector.broadcast %cst_88 : f32 to vector<16x1xf32>
    %261 = arith.divf %259, %260 : vector<16x1xf32>
    %262 = vector.broadcast %261 : vector<16x1xf32> to vector<16x128xf32>
    %263 = arith.subf %257, %262 : vector<16x128xf32>
    %264 = arith.mulf %263, %263 : vector<16x128xf32>
    %cst_89 = arith.constant dense<0.000000e+00> : vector<16xf32>
    %265 = vector.multi_reduction <add>, %264, %cst_89 [1] : vector<16x128xf32> to vector<16xf32>
    %266 = vector.shape_cast %265 : vector<16xf32> to vector<16x1xf32>
    %cst_90 = arith.constant 1.280000e+02 : f32
    %267 = vector.broadcast %cst_90 : f32 to vector<16x1xf32>
    %268 = arith.divf %266, %267 : vector<16x1xf32>
    %cst_91 = arith.constant 9.99999974E-6 : f32
    %269 = vector.broadcast %cst_91 : f32 to vector<16x1xf32>
    %270 = arith.addf %268, %269 : vector<16x1xf32>
    %271 = math.rsqrt %270 : vector<16x1xf32>
    %272 = vector.broadcast %271 : vector<16x1xf32> to vector<16x128xf32>
    %273 = arith.mulf %263, %272 : vector<16x128xf32>
    %274 = vector.broadcast %16 : vector<1x128xf32> to vector<16x128xf32>
    %275 = arith.mulf %273, %274 : vector<16x128xf32>
    %276 = vector.broadcast %17 : vector<1x128xf32> to vector<16x128xf32>
    %277 = arith.addf %275, %276 : vector<16x128xf32>
    %c0_92 = arith.constant 0 : index
    %c0_93 = arith.constant 0 : index
    %278 = vector.load %arg14[%c0_92, %c0_93] : memref<1x256xf32, #tpu.memory_space<vmem>>, vector<1x256xf32>
    %279 = arith.truncf %277 : vector<16x128xf32> to vector<16x128xbf16>
    %c0_94 = arith.constant 0 : index
    %c0_95 = arith.constant 0 : index
    %280 = vector.load %arg11[%c0_94, %c0_95] : memref<128x256xbf16, #tpu.memory_space<vmem>>, vector<128x256xbf16>
    %cst_96 = arith.constant dense<0.000000e+00> : vector<16x256xf32>
    %281 = tpu.matmul %279, %280, %cst_96 {dimension_numbers = #tpu.dot_dimension_numbers<[1], [0], [0], [1], [0, 0, 1, 1], [], []>} : vector<16x128xbf16>, vector<128x256xbf16>, vector<16x256xf32> -> vector<16x256xf32>
    %282 = vector.broadcast %278 : vector<1x256xf32> to vector<16x256xf32>
    %283 = arith.addf %281, %282 : vector<16x256xf32>
    %cst_97 = arith.constant 0.000000e+00 : f32
    %284 = vector.broadcast %cst_97 : f32 to vector<16x256xf32>
    %285 = arith.maximumf %283, %284 : vector<16x256xf32>
    %286 = arith.truncf %285 : vector<16x256xf32> to vector<16x256xbf16>
    %c0_98 = arith.constant 0 : index
    %c0_99 = arith.constant 0 : index
    %287 = vector.load %arg12[%c0_98, %c0_99] : memref<256x128xbf16, #tpu.memory_space<vmem>>, vector<256x128xbf16>
    %cst_100 = arith.constant dense<0.000000e+00> : vector<16x128xf32>
    %288 = tpu.matmul %286, %287, %cst_100 {dimension_numbers = #tpu.dot_dimension_numbers<[1], [0], [0], [1], [0, 0, 1, 1], [], []>} : vector<16x256xbf16>, vector<256x128xbf16>, vector<16x128xf32> -> vector<16x128xf32>
    %289 = vector.broadcast %15 : vector<1x128xf32> to vector<16x128xf32>
    %290 = arith.addf %288, %289 : vector<16x128xf32>
    %291 = arith.addf %277, %290 : vector<16x128xf32>
    %cst_101 = arith.constant dense<0.000000e+00> : vector<16xf32>
    %292 = vector.multi_reduction <add>, %291, %cst_101 [1] : vector<16x128xf32> to vector<16xf32>
    %293 = vector.shape_cast %292 : vector<16xf32> to vector<16x1xf32>
    %cst_102 = arith.constant 1.280000e+02 : f32
    %294 = vector.broadcast %cst_102 : f32 to vector<16x1xf32>
    %295 = arith.divf %293, %294 : vector<16x1xf32>
    %296 = vector.broadcast %295 : vector<16x1xf32> to vector<16x128xf32>
    %297 = arith.subf %291, %296 : vector<16x128xf32>
    %298 = arith.mulf %297, %297 : vector<16x128xf32>
    %cst_103 = arith.constant dense<0.000000e+00> : vector<16xf32>
    %299 = vector.multi_reduction <add>, %298, %cst_103 [1] : vector<16x128xf32> to vector<16xf32>
    %300 = vector.shape_cast %299 : vector<16xf32> to vector<16x1xf32>
    %cst_104 = arith.constant 1.280000e+02 : f32
    %301 = vector.broadcast %cst_104 : f32 to vector<16x1xf32>
    %302 = arith.divf %300, %301 : vector<16x1xf32>
    %cst_105 = arith.constant 9.99999974E-6 : f32
    %303 = vector.broadcast %cst_105 : f32 to vector<16x1xf32>
    %304 = arith.addf %302, %303 : vector<16x1xf32>
    %305 = math.rsqrt %304 : vector<16x1xf32>
    %306 = vector.broadcast %305 : vector<16x1xf32> to vector<16x128xf32>
    %307 = arith.mulf %297, %306 : vector<16x128xf32>
    %308 = vector.broadcast %16 : vector<1x128xf32> to vector<16x128xf32>
    %309 = arith.mulf %307, %308 : vector<16x128xf32>
    %310 = vector.broadcast %17 : vector<1x128xf32> to vector<16x128xf32>
    %311 = arith.addf %309, %310 : vector<16x128xf32>
    %c0_106 = arith.constant 0 : index
    %c0_107 = arith.constant 0 : index
    %c0_108 = arith.constant 0 : index
    %312 = vector.load %arg15[%c0_106, %c0_107, %c0_108] : memref<1x16x128xf32, #tpu.memory_space<vmem>>, vector<1x16x128xf32>
    %313 = vector.shape_cast %312 : vector<1x16x128xf32> to vector<16x128xf32>
    %314 = vector.shape_cast %311 : vector<16x128xf32> to vector<1x16x128xf32>
    tpu.vector_store %arg15[%c0_106, %c0_107, %c0_108], %314 {strides = array<i32>} : memref<1x16x128xf32, #tpu.memory_space<vmem>>, vector<1x16x128xf32>,
    return
  }
  func.func @transform_0(%arg0: i32, %arg1: i32) -> (i32, i32, i32) {
    %c0_i32 = arith.constant 0 : i32
    %c0_i32_0 = arith.constant 0 : i32
    return %arg0, %arg1, %c0_i32 : i32, i32, i32
  }
  func.func @transform_1(%arg0: i32, %arg1: i32) -> (i32, i32, i32) {
    %c0_i32 = arith.constant 0 : i32
    %c0_i32_0 = arith.constant 0 : i32
    %c0_i32_1 = arith.constant 0 : i32
    return %arg0, %c0_i32, %c0_i32_0 : i32, i32, i32
  }
  func.func @transform_2(%arg0: i32, %arg1: i32) -> (i32, i32, i32) {
    %c0_i32 = arith.constant 0 : i32
    %c0_i32_0 = arith.constant 0 : i32
    %c0_i32_1 = arith.constant 0 : i32
    return %arg0, %c0_i32, %c0_i32_0 : i32, i32, i32
  }
  func.func @transform_3(%arg0: i32, %arg1: i32) -> (i32, i32) {
    %c0_i32 = arith.constant 0 : i32
    %c0_i32_0 = arith.constant 0 : i32
    %c0_i32_1 = arith.constant 0 : i32
    return %c0_i32, %c0_i32_0 : i32, i32
  }
  func.func @transform_4(%arg0: i32, %arg1: i32) -> (i32, i32) {
    %c0_i32 = arith.constant 0 : i32
    %c0_i32_0 = arith.constant 0 : i32
    %c0_i32_1 = arith.constant 0 : i32
    return %c0_i32, %c0_i32_0 : i32, i32
  }
  func.func @transform_5(%arg0: i32, %arg1: i32) -> (i32, i32) {
    %c0_i32 = arith.constant 0 : i32
    %c0_i32_0 = arith.constant 0 : i32
    %c0_i32_1 = arith.constant 0 : i32
    return %c0_i32, %c0_i32_0 : i32, i32
  }
  func.func @transform_6(%arg0: i32, %arg1: i32) -> (i32, i32) {
    %c0_i32 = arith.constant 0 : i32
    %c0_i32_0 = arith.constant 0 : i32
    %c0_i32_1 = arith.constant 0 : i32
    return %c0_i32, %c0_i32_0 : i32, i32
  }
  func.func @transform_7(%arg0: i32, %arg1: i32) -> (i32, i32) {
    %c0_i32 = arith.constant 0 : i32
    %c0_i32_0 = arith.constant 0 : i32
    %c0_i32_1 = arith.constant 0 : i32
    return %c0_i32, %c0_i32_0 : i32, i32
  }
  func.func @transform_8(%arg0: i32, %arg1: i32) -> (i32, i32) {
    %c0_i32 = arith.constant 0 : i32
    %c0_i32_0 = arith.constant 0 : i32
    %c0_i32_1 = arith.constant 0 : i32
    return %c0_i32, %c0_i32_0 : i32, i32
  }
  func.func @transform_9(%arg0: i32, %arg1: i32) -> (i32, i32) {
    %c0_i32 = arith.constant 0 : i32
    %c0_i32_0 = arith.constant 0 : i32
    %c0_i32_1 = arith.constant 0 : i32
    return %c0_i32, %c0_i32_0 : i32, i32
  }
  func.func @transform_10(%arg0: i32, %arg1: i32) -> (i32, i32) {
    %c0_i32 = arith.constant 0 : i32
    %c0_i32_0 = arith.constant 0 : i32
    %c0_i32_1 = arith.constant 0 : i32
    return %c0_i32, %c0_i32_0 : i32, i32
  }
  func.func @transform_11(%arg0: i32, %arg1: i32) -> (i32, i32) {
    %c0_i32 = arith.constant 0 : i32
    %c0_i32_0 = arith.constant 0 : i32
    %c0_i32_1 = arith.constant 0 : i32
    return %c0_i32, %c0_i32_0 : i32, i32
  }
  func.func @transform_12(%arg0: i32, %arg1: i32) -> (i32, i32) {
    %c0_i32 = arith.constant 0 : i32
    %c0_i32_0 = arith.constant 0 : i32
    %c0_i32_1 = arith.constant 0 : i32
    return %c0_i32, %c0_i32_0 : i32, i32
  }
  func.func @transform_13(%arg0: i32, %arg1: i32) -> (i32, i32, i32) {
    %c0_i32 = arith.constant 0 : i32
    %c0_i32_0 = arith.constant 0 : i32
    return %arg0, %arg1, %c0_i32 : i32, i32, i32
  }
}

</mosaic_0001>

<llo_original>
// kernel: transformer_forward.2
$region0: #{transformer_forward.2}
  #allocation0 [shape = 'u32[]', space=smem, size = 0x4, offset = 0x4, fixed_abs, tag = 'smem constant byte address 0x4 - core index']
  #allocation1 [shape = 'u32[144,128]{1,0:T(1,128)}', space=vmem, size = 0x12000, scoped, tag = 'internal scratch']
  %s0 = inlined_call_operand.hbm [shape: f32[2,16,128], index: 0, kind: input, shape index: {}, may-alias: {0,1}]
  %s1 = inlined_call_operand.hbm [shape: f32[2,16,128], index: 1, kind: input, shape index: {}, may-alias: {0,1}]
  %s2 = inlined_call_operand.hbm [shape: bf16[128,128], index: 2, kind: input, shape index: {}]
  %s3 = inlined_call_operand.hbm [shape: bf16[128,256], index: 3, kind: input, shape index: {}]
  %s4 = inlined_call_operand.hbm [shape: bf16[128,128], index: 4, kind: input, shape index: {}]
  %s5 = inlined_call_operand.hbm [shape: bf16[128,256], index: 5, kind: input, shape index: {}]
  %s6 = inlined_call_operand.hbm [shape: bf16[256,128], index: 6, kind: input, shape index: {}]
  %s7 = inlined_call_operand.vmem [shape: f32[7,128], index: 7, kind: input, shape index: {}]
  %s8 = inlined_call_operand.vmem [shape: f32[1,256], index: 8, kind: input, shape index: {}]
  %s9 = inlined_call_operand.vmem [shape: f32[2,16,128], index: 9, kind: output, shape index: {}]
  %s10 = sld [smem:[#allocation0]]
  $region97: #{transformer_forward.2} parent=0
    _
  %s12 = ssub.s32 1, %s10
  %s13 = scalar_select 0, %s12, %s10
  $region1: #{transformer_forward.2} parent=0
    #allocation2 [shape = 'u8[16384]{0}', space=vmem, size = 0x4000, scoped, tag = 'input window, operand 0']
    #allocation3 [shape = 's32[2]{0}', space=sflag, size = 0x8, scoped, tag = 'scoped memory for transformer_forward.2']
    #allocation4 [shape = 'u8[16384]{0}', space=vmem, size = 0x4000, scoped, tag = 'input window, operand 1']
    #allocation5 [shape = 's32[2]{0}', space=sflag, size = 0x8, scoped, tag = 'scoped memory for transformer_forward.2']
    #allocation6 [shape = 'u8[32768]{0}', space=vmem, size = 0x8000, scoped, tag = 'input window, operand 2, single buffered']
    #allocation7 [shape = 'u8[65536]{0}', space=vmem, size = 0x10000, scoped, tag = 'input window, operand 3, single buffered']
    #allocation8 [shape = 's32[1]{0}', space=sflag, size = 0x4, scoped, tag = 'scoped memory for transformer_forward.2']
    #allocation9 [shape = 'u8[32768]{0}', space=vmem, size = 0x8000, scoped, tag = 'input window, operand 4, single buffered']
    #allocation10 [shape = 'u8[65536]{0}', space=vmem, size = 0x10000, scoped, tag = 'input window, operand 5, single buffered']
    #allocation11 [shape = 's32[1]{0}', space=sflag, size = 0x4, scoped, tag = 'scoped memory for transformer_forward.2']
    #allocation12 [shape = 'u8[65536]{0}', space=vmem, size = 0x10000, scoped, tag = 'input window, operand 6, single buffered']
    %14 = vsyncpa [#allocation3], 0
    %s15 = scalar_lea.sflag [#allocation3], 1
    %16 = vsyncpa %s15, 0
    %17 = vsyncpa [#allocation5], 0
    %s18 = scalar_lea.sflag [#allocation5], 1
    %19 = vsyncpa %s18, 0
    %20 = vsyncpa [#allocation8], 0
    %21 = vsyncpa [#allocation11], 0
    loop: start=0, step=1, limit=4
    $region2: #{transformer_forward.2} parent=1 // loop_pre_header
      _
    $region3: #{transformer_forward.2} parent=1 // loop_header
      %s23 = sphi 0, %s27
      %p24 = scmp.ge.s32.totalorder %s23, 4
      %s30 = sphi 0, %s42
      %s31 = sphi 0, %s38
      %s32 = sphi 0, %s30
      %s33 = sphi 0, %s31
      %s34 = sphi 0, %s32
      %s35 = sphi 0, %s33
      %s47 = sphi 0, %s49
      %s50 = sphi 0, %s47
      %s51 = sphi 0, %s50
      %s67 = sphi 0, %s51
      %s73 = sphi 0, %s75
      %s76 = sphi 0, %s73
      %s77 = sphi 0, %s76
      %s93 = sphi 0, %s77
      %s97 = sphi 0, %s97
      %s99 = sphi 0, %s97
      %s100 = sphi 0, %s99
      %s114 = sphi 0, %s100
      %s118 = sphi 0, %s118
      %s120 = sphi 0, %s118
      %s121 = sphi 0, %s120
      %s135 = sphi 0, %s121
      %s139 = sphi 0, %s139
      %s141 = sphi 0, %s139
      %s142 = sphi 0, %s141
      %s156 = sphi 0, %s142
      %s160 = sphi 0, %s160
      %s162 = sphi 0, %s160
      %s163 = sphi 0, %s162
      %s177 = sphi 0, %s163
      %s181 = sphi 0, %s181
      %s183 = sphi 0, %s181
      %s184 = sphi 0, %s183
      %s198 = sphi 0, %s184
      %s202 = sphi 0, %s202
      %s204 = sphi 0, %s202
      %s205 = sphi 0, %s204
      %s219 = sphi 0, %s205
      %s223 = sphi 0, %s223
      %s225 = sphi 0, %s223
      %s226 = sphi 0, %s225
      %s240 = sphi 0, %s226
      %s248 = sphi 0, %s250
      %s251 = sphi 0, %s248
      %s252 = sphi 0, %s251
      %s268 = sphi 0, %s252
    $region4: #{transformer_forward.2} parent=1 // loop_header_branch
      %26 = sbr.rel (%p24) target = $region8
    $region5: #{transformer_forward.2} parent=1 // loop_body
      %s28 = ssub.s32 %s23, 1
      %s29 = ssub.s32 %s23, 2
      %s36 = sadd.s32 1, %s31
      %p37 = scmp.ge.s32.totalorder %s36, 1
      %s38 = scalar_select %p37, 0, %s36
      %s39 = sadd.s32 1, %s30
      %s40 = scalar_select %p37, %s39, %s30
      %p41 = scmp.ge.s32.totalorder %s40, 2
      %s42 = scalar_select %p41, 0, %s40
      %s43 = ssub.s32 %s30, %s42
      %s44 = ssub.s32 %s31, %s38
      %s45 = sor.u32 %s43, %s44
      %p46 = scmp.eq.s32.totalorder %s45, 0
      %s48 = sadd.s32 %s47, 1
      %s49 = scalar_select %p46, %s47, %s48
      %p52 = pneg %p46
      %p53 = scmp.eq.s32.totalorder %s23, 1
      %p54 = por %p52, %p53
      %p55 = scmp.ne.s32.totalorder %s47, %s50
      %p56 = scmp.eq.s32.totalorder %s23, 0
      %p57 = por %p55, %p56
      %p58 = scmp.ne.s32.totalorder %s47, %s50
      %p59 = scmp.eq.s32.totalorder %s28, 1
      %p60 = por %p58, %p59
      %p61 = scmp.ne.s32.totalorder %s50, %s51
      %p62 = scmp.eq.s32.totalorder %s28, 0
      %p63 = por %p61, %p62
      %p64 = scmp.ne.s32.totalorder %s50, %s51
      %p65 = scmp.eq.s32.totalorder %s29, 1
      %p66 = por %p64, %p65
      %p68 = scmp.ne.s32.totalorder %s51, %s67
      %p69 = scmp.eq.s32.totalorder %s29, 0
      %p70 = por %p68, %p69
      %s71 = ssub.s32 %s30, %s42
      %p72 = scmp.eq.s32.totalorder %s71, 0
      %s74 = sadd.s32 %s73, 1
      %s75 = scalar_select %p72, %s73, %s74
      %p78 = pneg %p72
      %p79 = scmp.eq.s32.totalorder %s23, 1
      %p80 = por %p78, %p79
      %p81 = scmp.ne.s32.totalorder %s73, %s76
      %p82 = scmp.eq.s32.totalorder %s23, 0
      %p83 = por %p81, %p82
      %p84 = scmp.ne.s32.totalorder %s73, %s76
      %p85 = scmp.eq.s32.totalorder %s28, 1
      %p86 = por %p84, %p85
      %p87 = scmp.ne.s32.totalorder %s76, %s77
      %p88 = scmp.eq.s32.totalorder %s28, 0
      %p89 = por %p87, %p88
      %p90 = scmp.ne.s32.totalorder %s76, %s77
      %p91 = scmp.eq.s32.totalorder %s29, 1
      %p92 = por %p90, %p91
      %p94 = scmp.ne.s32.totalorder %s77, %s93
      %p95 = scmp.eq.s32.totalorder %s29, 0
      %p96 = por %p94, %p95
      %s98 = sadd.s32 %s97, 1
      %p101 = scmp.eq.s32.totalorder %s23, 1
      %p102 = scmp.ne.s32.totalorder %s97, %s99
      %p103 = scmp.eq.s32.totalorder %s23, 0
      %p104 = por %p102, %p103
      %p105 = scmp.ne.s32.totalorder %s97, %s99
      %p106 = scmp.eq.s32.totalorder %s28, 1
      %p107 = por %p105, %p106
      %p108 = scmp.ne.s32.totalorder %s99, %s100
      %p109 = scmp.eq.s32.totalorder %s28, 0
      %p110 = por %p108, %p109
      %p111 = scmp.ne.s32.totalorder %s99, %s100
      %p112 = scmp.eq.s32.totalorder %s29, 1
      %p113 = por %p111, %p112
      %p115 = scmp.ne.s32.totalorder %s100, %s114
      %p116 = scmp.eq.s32.totalorder %s29, 0
      %p117 = por %p115, %p116
      %s119 = sadd.s32 %s118, 1
      %p122 = scmp.eq.s32.totalorder %s23, 1
      %p123 = scmp.ne.s32.totalorder %s118, %s120
      %p124 = scmp.eq.s32.totalorder %s23, 0
      %p125 = por %p123, %p124
      %p126 = scmp.ne.s32.totalorder %s118, %s120
      %p127 = scmp.eq.s32.totalorder %s28, 1
      %p128 = por %p126, %p127
      %p129 = scmp.ne.s32.totalorder %s120, %s121
      %p130 = scmp.eq.s32.totalorder %s28, 0
      %p131 = por %p129, %p130
      %p132 = scmp.ne.s32.totalorder %s120, %s121
      %p133 = scmp.eq.s32.totalorder %s29, 1
      %p134 = por %p132, %p133
      %p136 = scmp.ne.s32.totalorder %s121, %s135
      %p137 = scmp.eq.s32.totalorder %s29, 0
      %p138 = por %p136, %p137
      %s140 = sadd.s32 %s139, 1
      %p143 = scmp.eq.s32.totalorder %s23, 1
      %p144 = scmp.ne.s32.totalorder %s139, %s141
      %p145 = scmp.eq.s32.totalorder %s23, 0
      %p146 = por %p144, %p145
      %p147 = scmp.ne.s32.totalorder %s139, %s141
      %p148 = scmp.eq.s32.totalorder %s28, 1
      %p149 = por %p147, %p148
      %p150 = scmp.ne.s32.totalorder %s141, %s142
      %p151 = scmp.eq.s32.totalorder %s28, 0
      %p152 = por %p150, %p151
      %p153 = scmp.ne.s32.totalorder %s141, %s142
      %p154 = scmp.eq.s32.totalorder %s29, 1
      %p155 = por %p153, %p154
      %p157 = scmp.ne.s32.totalorder %s142, %s156
      %p158 = scmp.eq.s32.totalorder %s29, 0
      %p159 = por %p157, %p158
      %s161 = sadd.s32 %s160, 1
      %p164 = scmp.eq.s32.totalorder %s23, 1
      %p165 = scmp.ne.s32.totalorder %s160, %s162
      %p166 = scmp.eq.s32.totalorder %s23, 0
      %p167 = por %p165, %p166
      %p168 = scmp.ne.s32.totalorder %s160, %s162
      %p169 = scmp.eq.s32.totalorder %s28, 1
      %p170 = por %p168, %p169
      %p171 = scmp.ne.s32.totalorder %s162, %s163
      %p172 = scmp.eq.s32.totalorder %s28, 0
      %p173 = por %p171, %p172
      %p174 = scmp.ne.s32.totalorder %s162, %s163
      %p175 = scmp.eq.s32.totalorder %s29, 1
      %p176 = por %p174, %p175
      %p178 = scmp.ne.s32.totalorder %s163, %s177
      %p179 = scmp.eq.s32.totalorder %s29, 0
      %p180 = por %p178, %p179
      %s182 = sadd.s32 %s181, 1
      %p185 = scmp.eq.s32.totalorder %s23, 1
      %p186 = scmp.ne.s32.totalorder %s181, %s183
      %p187 = scmp.eq.s32.totalorder %s23, 0
      %p188 = por %p186, %p187
      %p189 = scmp.ne.s32.totalorder %s181, %s183
      %p190 = scmp.eq.s32.totalorder %s28, 1
      %p191 = por %p189, %p190
      %p192 = scmp.ne.s32.totalorder %s183, %s184
      %p193 = scmp.eq.s32.totalorder %s28, 0
      %p194 = por %p192, %p193
      %p195 = scmp.ne.s32.totalorder %s183, %s184
      %p196 = scmp.eq.s32.totalorder %s29, 1
      %p197 = por %p195, %p196
      %p199 = scmp.ne.s32.totalorder %s184, %s198
      %p200 = scmp.eq.s32.totalorder %s29, 0
      %p201 = por %p199, %p200
      %s203 = sadd.s32 %s202, 1
      %p206 = scmp.eq.s32.totalorder %s23, 1
      %p207 = scmp.ne.s32.totalorder %s202, %s204
      %p208 = scmp.eq.s32.totalorder %s23, 0
      %p209 = por %p207, %p208
      %p210 = scmp.ne.s32.totalorder %s202, %s204
      %p211 = scmp.eq.s32.totalorder %s28, 1
      %p212 = por %p210, %p211
      %p213 = scmp.ne.s32.totalorder %s204, %s205
      %p214 = scmp.eq.s32.totalorder %s28, 0
      %p215 = por %p213, %p214
      %p216 = scmp.ne.s32.totalorder %s204, %s205
      %p217 = scmp.eq.s32.totalorder %s29, 1
      %p218 = por %p216, %p217
      %p220 = scmp.ne.s32.totalorder %s205, %s219
      %p221 = scmp.eq.s32.totalorder %s29, 0
      %p222 = por %p220, %p221
      %s224 = sadd.s32 %s223, 1
      %p227 = scmp.eq.s32.totalorder %s23, 1
      %p228 = scmp.ne.s32.totalorder %s223, %s225
      %p229 = scmp.eq.s32.totalorder %s23, 0
      %p230 = por %p228, %p229
      %p231 = scmp.ne.s32.totalorder %s223, %s225
      %p232 = scmp.eq.s32.totalorder %s28, 1
      %p233 = por %p231, %p232
      %p234 = scmp.ne.s32.totalorder %s225, %s226
      %p235 = scmp.eq.s32.totalorder %s28, 0
      %p236 = por %p234, %p235
      %p237 = scmp.ne.s32.totalorder %s225, %s226
      %p238 = scmp.eq.s32.totalorder %s29, 1
      %p239 = por %p237, %p238
      %p241 = scmp.ne.s32.totalorder %s226, %s240
      %p242 = scmp.eq.s32.totalorder %s29, 0
      %p243 = por %p241, %p242
      %s244 = ssub.s32 %s30, %s42
      %s245 = ssub.s32 %s31, %s38
      %s246 = sor.u32 %s244, %s245
      %p247 = scmp.eq.s32.totalorder %s246, 0
      %s249 = sadd.s32 %s248, 1
      %s250 = scalar_select %p247, %s248, %s249
      %p253 = pneg %p247
      %p254 = scmp.eq.s32.totalorder %s23, 1
      %p255 = por %p253, %p254
      %p256 = scmp.ne.s32.totalorder %s248, %s251
      %p257 = scmp.eq.s32.totalorder %s23, 0
      %p258 = por %p256, %p257
      %p259 = scmp.ne.s32.totalorder %s248, %s251
      %p260 = scmp.eq.s32.totalorder %s28, 1
      %p261 = por %p259, %p260
      %p262 = scmp.ne.s32.totalorder %s251, %s252
      %p263 = scmp.eq.s32.totalorder %s28, 0
      %p264 = por %p262, %p263
      %p265 = scmp.ne.s32.totalorder %s251, %s252
      %p266 = scmp.eq.s32.totalorder %s29, 1
      %p267 = por %p265, %p266
      %p269 = scmp.ne.s32.totalorder %s252, %s268
      %p270 = scmp.eq.s32.totalorder %s29, 0
      %p271 = por %p269, %p270
      %p272 = scmp.le.s32.totalorder 1, %s23
      %p273 = scmp.lt.s32.totalorder %s23, 3
      %p274 = pnand %p272, %p273
      %p275 = pneg %p274
      // Predicated region
      $region9: #{transformer_forward.2} parent=5 // pred_check
        _
      $region10: #{transformer_forward.2} parent=5 // pred_check_branch
        %277 = sbr.rel (%p274) target = $region12
      $region11: #{transformer_forward.2} parent=5 // pred_region
        %s278 = ssub.s32 %s23, 1
        // Predicated region
        $region13: #{transformer_forward.2} parent=11 // pred_check
          %p279 = pneg %p110
        $region14: #{transformer_forward.2} parent=11 // pred_check_branch
          %281 = sbr.rel (%p279) target = $region16
        $region15: #{transformer_forward.2} parent=11 // pred_region
          %s283 = ssub.s32 1024, 1024
          %284 = vsyncadd [#allocation5], %s283
          %s285 = sshll.u32 [#allocation6], 4
          %s286 = int_to_ptr.vmem [resolvable:$true] %s285
          %291 = dma.hbm_to_vmem [thread:$0]  %s2, 1024, %s286, [#allocation5], 64, 64, 4
        $region16: #{transformer_forward.2} parent=11 // pred_fallthru
          _
        // Predicated region
        $region17: #{transformer_forward.2} parent=11 // pred_check
          %p292 = pneg %p131
        $region18: #{transformer_forward.2} parent=11 // pred_check_branch
          %294 = sbr.rel (%p292) target = $region20
        $region19: #{transformer_forward.2} parent=11 // pred_region
          %s296 = ssub.s32 2048, 2048
          %297 = vsyncadd [#allocation8], %s296
          %s298 = sshll.u32 [#allocation7], 4
          %s299 = int_to_ptr.vmem [resolvable:$true] %s298
          %304 = dma.hbm_to_vmem [thread:$0]  %s3, 2048, %s299, [#allocation8], 128, 128, 8
        $region20: #{transformer_forward.2} parent=11 // pred_fallthru
          _
        // Predicated region
        $region21: #{transformer_forward.2} parent=11 // pred_check
          %p305 = pneg %p152
        $region22: #{transformer_forward.2} parent=11 // pred_check_branch
          %307 = sbr.rel (%p305) target = $region24
        $region23: #{transformer_forward.2} parent=11 // pred_region
          %s309 = ssub.s32 1024, 1024
          %310 = vsyncadd [#allocation8], %s309
          %s311 = sshll.u32 [#allocation9], 4
          %s312 = int_to_ptr.vmem [resolvable:$true] %s311
          %317 = dma.hbm_to_vmem [thread:$0]  %s4, 1024, %s312, [#allocation8], 64, 64, 4
        $region24: #{transformer_forward.2} parent=11 // pred_fallthru
          _
        // Predicated region
        $region25: #{transformer_forward.2} parent=11 // pred_check
          %p318 = pneg %p173
        $region26: #{transformer_forward.2} parent=11 // pred_check_branch
          %320 = sbr.rel (%p318) target = $region28
        $region27: #{transformer_forward.2} parent=11 // pred_region
          %s322 = ssub.s32 2048, 2048
          %323 = vsyncadd [#allocation11], %s322
          %s324 = sshll.u32 [#allocation10], 4
          %s325 = int_to_ptr.vmem [resolvable:$true] %s324
          %330 = dma.hbm_to_vmem [thread:$0]  %s5, 2048, %s325, [#allocation11], 128, 128, 8
        $region28: #{transformer_forward.2} parent=11 // pred_fallthru
          _
        // Predicated region
        $region29: #{transformer_forward.2} parent=11 // pred_check
          %p331 = pneg %p194
        $region30: #{transformer_forward.2} parent=11 // pred_check_branch
          %333 = sbr.rel (%p331) target = $region32
        $region31: #{transformer_forward.2} parent=11 // pred_region
          %s335 = ssub.s32 2048, 2048
          %336 = vsyncadd [#allocation11], %s335
          %s337 = sshll.u32 [#allocation12], 4
          %s338 = int_to_ptr.vmem [resolvable:$true] %s337
          %343 = dma.hbm_to_vmem [thread:$0]  %s6, 2048, %s338, [#allocation11], 64, 64, 4
        $region32: #{transformer_forward.2} parent=11 // pred_fallthru
          _
        // Predicated region
        $region33: #{transformer_forward.2} parent=11 // pred_check
          %p344 = pneg %p215
        $region34: #{transformer_forward.2} parent=11 // pred_check_branch
          %346 = sbr.rel (%p344) target = $region36
        $region35: #{transformer_forward.2} parent=11 // pred_region
          _
        $region36: #{transformer_forward.2} parent=11 // pred_fallthru
          _
        // Predicated region
        $region37: #{transformer_forward.2} parent=11 // pred_check
          %p347 = pneg %p236
        $region38: #{transformer_forward.2} parent=11 // pred_check_branch
          %349 = sbr.rel (%p347) target = $region40
        $region39: #{transformer_forward.2} parent=11 // pred_region
          _
        $region40: #{transformer_forward.2} parent=11 // pred_fallthru
          _
      $region12: #{transformer_forward.2} parent=5 // pred_fallthru
        _
      %p350 = scmp.lt.s32.totalorder %s23, 2
      // Predicated region
      $region41: #{transformer_forward.2} parent=5 // pred_check
        %p351 = pneg %p350
      $region42: #{transformer_forward.2} parent=5 // pred_check_branch
        %353 = sbr.rel (%p351) target = $region44
      $region43: #{transformer_forward.2} parent=5 // pred_region
        // Predicated region
        $region45: #{transformer_forward.2} parent=43 // pred_check
          %p354 = pneg %p57
        $region46: #{transformer_forward.2} parent=43 // pred_check_branch
          %356 = sbr.rel (%p354) target = $region48
        $region47: #{transformer_forward.2} parent=43 // pred_region
          %s357 = sand.u32 %s47, 1
          %s358 = scalar_lea.sflag [#allocation3], %s357
          %s359 = sand.u32 %s47, 1
          %s360 = smul.addr %s359, 16
          %s361 = scalar_lea.vmem [#allocation2], %s360
          %s362 = smul.u32 2, %s31
          %s364 = ssub.s32 256, 256
          %365 = vsyncadd %s358, %s364
          %s366 = smul.addr %s30, 2
          %s367 = sadd.s32 %s362, %s366
          %s368 = smul.addr %s367, 128
          %s369 = scalar_lea.hbm %s0, %s368
          %s370 = sshll.u32 %s361, 4
          %s371 = int_to_ptr.vmem [resolvable:$true] %s370
          %376 = dma.hbm_to_vmem [thread:$0]  %s369, 256, %s371, %s358, 128, 128, 8
        $region48: #{transformer_forward.2} parent=43 // pred_fallthru
          _
        // Predicated region
        $region49: #{transformer_forward.2} parent=43 // pred_check
          %p377 = pneg %p83
        $region50: #{transformer_forward.2} parent=43 // pred_check_branch
          %379 = sbr.rel (%p377) target = $region52
        $region51: #{transformer_forward.2} parent=43 // pred_region
          %s380 = sand.u32 %s23, 1
          %s381 = scalar_lea.sflag [#allocation5], %s380
          %s382 = sand.u32 %s73, 1
          %s383 = smul.addr %s382, 16
          %s384 = scalar_lea.vmem [#allocation4], %s383
          %s386 = ssub.s32 256, 256
          %387 = vsyncadd %s381, %s386
          %s388 = smul.addr %s30, 2
          %s389 = smul.addr %s388, 128
          %s390 = scalar_lea.hbm %s1, %s389
          %s391 = sshll.u32 %s384, 4
          %s392 = int_to_ptr.vmem [resolvable:$true] %s391
          %397 = dma.hbm_to_vmem [thread:$0]  %s390, 256, %s392, %s381, 128, 128, 8
        $region52: #{transformer_forward.2} parent=43 // pred_fallthru
          _
      $region44: #{transformer_forward.2} parent=5 // pred_fallthru
        _
      %p398 = scmp.le.s32.totalorder 1, %s23
      %p399 = scmp.lt.s32.totalorder %s23, 3
      %p400 = pnand %p398, %p399
      %p401 = pneg %p400
      // Predicated region
      $region53: #{transformer_forward.2} parent=5 // pred_check
        _
      $region54: #{transformer_forward.2} parent=5 // pred_check_branch
        %403 = sbr.rel (%p400) target = $region56
      $region55: #{transformer_forward.2} parent=5 // pred_region
        %s404 = ssub.s32 %s23, 1
        %s405 = sand.u32 %s50, 1
        %s406 = scalar_lea.sflag [#allocation3], %s405
        %s407 = sand.u32 %s50, 1
        %s408 = smul.addr %s407, 16
        %s409 = scalar_lea.vmem [#allocation2], %s408
        // Predicated region
        $region57: #{transformer_forward.2} parent=55 // pred_check
          %p410 = pneg %p63
        $region58: #{transformer_forward.2} parent=55 // pred_check_branch
          %412 = sbr.rel (%p410) target = $region60
        $region59: #{transformer_forward.2} parent=55 // pred_region
          %413 = dma.done %s406, 256
        $region60: #{transformer_forward.2} parent=55 // pred_fallthru
          _
        %s414 = sand.u32 %s28, 1
        %s415 = scalar_lea.sflag [#allocation5], %s414
        %s416 = sand.u32 %s76, 1
        %s417 = smul.addr %s416, 16
        %s418 = scalar_lea.vmem [#allocation4], %s417
        // Predicated region
        $region61: #{transformer_forward.2} parent=55 // pred_check
          %p419 = pneg %p89
        $region62: #{transformer_forward.2} parent=55 // pred_check_branch
          %421 = sbr.rel (%p419) target = $region64
        $region63: #{transformer_forward.2} parent=55 // pred_region
          %422 = dma.done %s415, 256
        $region64: #{transformer_forward.2} parent=55 // pred_fallthru
          _
        // Predicated region
        $region65: #{transformer_forward.2} parent=55 // pred_check
          %p423 = pneg %p110
        $region66: #{transformer_forward.2} parent=55 // pred_check_branch
          %425 = sbr.rel (%p423) target = $region68
        $region67: #{transformer_forward.2} parent=55 // pred_region
          %426 = dma.done [#allocation5], 1024
        $region68: #{transformer_forward.2} parent=55 // pred_fallthru
          _
        // Predicated region
        $region69: #{transformer_forward.2} parent=55 // pred_check
          %p427 = pneg %p131
        $region70: #{transformer_forward.2} parent=55 // pred_check_branch
          %429 = sbr.rel (%p427) target = $region72
        $region71: #{transformer_forward.2} parent=55 // pred_region
          %430 = dma.done [#allocation8], 2048
        $region72: #{transformer_forward.2} parent=55 // pred_fallthru
          _
        // Predicated region
        $region73: #{transformer_forward.2} parent=55 // pred_check
          %p431 = pneg %p152
        $region74: #{transformer_forward.2} parent=55 // pred_check_branch
          %433 = sbr.rel (%p431) target = $region76
        $region75: #{transformer_forward.2} parent=55 // pred_region
          %434 = dma.done [#allocation8], 1024
        $region76: #{transformer_forward.2} parent=55 // pred_fallthru
          _
        // Predicated region
        $region77: #{transformer_forward.2} parent=55 // pred_check
          %p435 = pneg %p173
        $region78: #{transformer_forward.2} parent=55 // pred_check_branch
          %437 = sbr.rel (%p435) target = $region80
        $region79: #{transformer_forward.2} parent=55 // pred_region
          %438 = dma.done [#allocation11], 2048
        $region80: #{transformer_forward.2} parent=55 // pred_fallthru
          _
        // Predicated region
        $region81: #{transformer_forward.2} parent=55 // pred_check
          %p439 = pneg %p194
        $region82: #{transformer_forward.2} parent=55 // pred_check_branch
          %441 = sbr.rel (%p439) target = $region84
        $region83: #{transformer_forward.2} parent=55 // pred_region
          %442 = dma.done [#allocation11], 2048
        $region84: #{transformer_forward.2} parent=55 // pred_fallthru
          _
        %s443 = sand.u32 %s50, 1
        %s444 = scalar_lea.sflag [#allocation3], %s443
        %s445 = sand.u32 %s50, 1
        %s446 = smul.addr %s445, 16
        %s447 = scalar_lea.vmem [#allocation2], %s446
        %p448 = pneg %p63
        %p449 = pneg %p60
        %s450 = sand.u32 %s28, 1
        %s451 = scalar_lea.sflag [#allocation5], %s450
        %s452 = sand.u32 %s76, 1
        %s453 = smul.addr %s452, 16
        %s454 = scalar_lea.vmem [#allocation4], %s453
        %p455 = pneg %p89
        %p456 = pneg %p86
        %p457 = pneg %p110
        %p458 = pneg %p107
        %p459 = pneg %p131
        %p460 = pneg %p128
        %p461 = pneg %p152
        %p462 = pneg %p149
        %p463 = pneg %p173
        %p464 = pneg %p170
        %p465 = pneg %p194
        %p466 = pneg %p191
        %p467 = pneg %p215
        %p468 = pneg %p212
        %p469 = pneg %p236
        %p470 = pneg %p233
        %p471 = pneg %p264
        %p472 = pneg %p261
        %s473 = smul.u32 2, %s33
        %p474 = scmp.lt.s32.totalorder %s32, 1
        %s475 = scalar_select %p474, %s32, 1
        %p476 = scmp.lt.s32.totalorder %s473, 1
        %s477 = scalar_select %p476, %s473, 1
        %s478 = smul.addr %s475, 2
        %s479 = sadd.s32 %s477, %s478
        %s480 = smul.addr %s479, 8
        %s481 = scalar_lea.vmem %s9, %s480
        %s482 = smul.u32 2, %s33
        %s483 = smul.u32 2, %s33
        %p484 = scmp.lt.s32.totalorder %s32, 1
        %s485 = scalar_select %p484, %s32, 1
        %p486 = scmp.lt.s32.totalorder %s483, 1
        %s487 = scalar_select %p486, %s483, 1
        %s488 = smul.addr %s485, 2
        %s489 = sadd.s32 %s487, %s488
        %s490 = smul.addr %s489, 8
        %s491 = scalar_lea.vmem %s9, %s490
        %s492 = smul.u32 2, %s33
        %v494 = vld [vmem:[%s409] sm:$0xff]
        %v495 = vld [vmem:[%s409 + $0x8] sm:$0xff]
        %v496 = vld [vmem:[%s418] sm:$0xff]
        %v497 = vld [vmem:[%s418 + $0x8] sm:$0xff]
        %v498 = vld [vmem:[%s7] sm:$0x7f]
        %v499 = vpack.c.bf16 %v495, %v494
        %v500 = vpack.c.bf16 %v497, %v496
        %v501 = vld [vmem:[#allocation6] sm:$0xf]
        %v502 = vld [vmem:[#allocation6 + $0x4] sm:$0xf]
        %v503 = vld [vmem:[#allocation6 + $0x8] sm:$0xf]
        %v504 = vld [vmem:[#allocation6 + $0xc] sm:$0xf]
        %v505 = vld [vmem:[#allocation6 + $0x10] sm:$0xf]
        %v506 = vld [vmem:[#allocation6 + $0x14] sm:$0xf]
        %v507 = vld [vmem:[#allocation6 + $0x18] sm:$0xf]
        %v508 = vld [vmem:[#allocation6 + $0x1c] sm:$0xf]
        %v509 = vld [vmem:[#allocation6 + $0x20] sm:$0xf]
        %v510 = vld [vmem:[#allocation6 + $0x24] sm:$0xf]
        %v511 = vld [vmem:[#allocation6 + $0x28] sm:$0xf]
        %v512 = vld [vmem:[#allocation6 + $0x2c] sm:$0xf]
        %v513 = vld [vmem:[#allocation6 + $0x30] sm:$0xf]
        %v514 = vld [vmem:[#allocation6 + $0x34] sm:$0xf]
        %v515 = vld [vmem:[#allocation6 + $0x38] sm:$0xf]
        %v516 = vld [vmem:[#allocation6 + $0x3c] sm:$0xf]
        %v517 = vlaneseq
        %v518 = vshrl.u32 %v517, 7
        %v519 = vsub.s32 0, %v518
        %v520 = vrot.slane %v498, %v519
        %v537 = vunpack.c.l.b16 %v501
        %v538 = vunpack.c.l.b16 %v502
        %v539 = vunpack.c.l.b16 %v503
        %v540 = vunpack.c.l.b16 %v504
        %v541 = vunpack.c.l.b16 %v505
        %v542 = vunpack.c.l.b16 %v506
        %v543 = vunpack.c.l.b16 %v507
        %v544 = vunpack.c.l.b16 %v508
        %v545 = vunpack.c.l.b16 %v509
        %v546 = vunpack.c.l.b16 %v510
        %v547 = vunpack.c.l.b16 %v511
        %v548 = vunpack.c.l.b16 %v512
        %v549 = vunpack.c.l.b16 %v513
        %v550 = vunpack.c.l.b16 %v514
        %v551 = vunpack.c.l.b16 %v515
        %v552 = vunpack.c.l.b16 %v516
        %v553 = vpack.c.b16 %v538, %v537
        %v554 = vpack.c.b16 %v540, %v539
        %v555 = vpack.c.b16 %v542, %v541
        %v556 = vpack.c.b16 %v544, %v543
        %v557 = vpack.c.b16 %v546, %v545
        %v558 = vpack.c.b16 %v548, %v547
        %v559 = vpack.c.b16 %v550, %v549
        %v560 = vpack.c.b16 %v552, %v551
        %569 = vmatprep.subr.bf16.mxu0 0
        %570 = vmatpush1.bf16.msra.mxu0 %v560
        %571 = vmatprep.subr.bf16.mxu0 0
        %572 = vmatpush1.bf16.msra.mxu0 %v559
        %573 = vmatprep.subr.bf16.mxu0 0
        %574 = vmatpush1.bf16.msra.mxu0 %v558
        %575 = vmatprep.subr.bf16.mxu0 0
        %576 = vmatpush1.bf16.msra.mxu0 %v557
        %577 = vmatprep.subr.bf16.mxu0 0
        %578 = vmatpush1.bf16.msra.mxu0 %v556
        %579 = vmatprep.subr.bf16.mxu0 0
        %580 = vmatpush1.bf16.msra.mxu0 %v555
        %581 = vmatprep.subr.bf16.mxu0 0
        %582 = vmatpush1.bf16.msra.mxu0 %v554
        %583 = vmatprep.subr.bf16.mxu0 0
        %584 = vmatpush1.bf16.msra.mxu0 %v553
        %585 = vmatprep.subr.bf16.mxu0 0
        %586 = vmatpush2.bf16.msra.mxu0 0
        %587 = vmatprep.subr.bf16.mxu0 0
        %588 = vmatpush2.bf16.msra.mxu0 0
        %589 = vmatprep.subr.bf16.mxu0 0
        %590 = vmatpush2.bf16.msra.mxu0 0
        %591 = vmatprep.subr.bf16.mxu0 0
        %592 = vmatpush2.bf16.msra.mxu0 0
        %593 = vmatprep.subr.bf16.mxu0 0
        %594 = vmatpush2.bf16.msra.mxu0 0
        %595 = vmatprep.subr.bf16.mxu0 0
        %596 = vmatpush2.bf16.msra.mxu0 0
        %597 = vmatprep.subr.bf16.mxu0 0
        %598 = vmatpush2.bf16.msra.mxu0 0
        %599 = vmatprep.subr.bf16.mxu0 0
        %600 = vmatpush2.bf16.msra.mxu0 0
        %601 = vmatprep.mubr.bf16.mxu0 0
        %602 = vmatmul.mubr.bf16.gmra.mxu0 %v499
        %v603 = vpop.f32.mrf.mxu0
        %v604 = vadd.f32 %v520, %v603
        %v605 = vpop.f32.mrf.mxu0
        %v606 = vpop.f32.mrf.mxu0
        %v607 = vadd.f32 %v520, %v606
        %v608 = vpop.f32.mrf.mxu0
        %609 = vdwg.mxu0
        %v610 = vmul.f32 %v604, 0.17677669
        %v611 = vmul.f32 %v607, 0.17677669
        %v612 = vld [vmem:[#allocation7] sm:$0xff]
        %v613 = vld [vmem:[#allocation7 + $0x8] sm:$0xff]
        %v614 = vld [vmem:[#allocation7 + $0x10] sm:$0xff]
        %v615 = vld [vmem:[#allocation7 + $0x18] sm:$0xff]
        %v616 = vld [vmem:[#allocation7 + $0x20] sm:$0xff]
        %v617 = vld [vmem:[#allocation7 + $0x28] sm:$0xff]
        %v618 = vld [vmem:[#allocation7 + $0x30] sm:$0xff]
        %v619 = vld [vmem:[#allocation7 + $0x38] sm:$0xff]
        %v620 = vld [vmem:[#allocation7 + $0x40] sm:$0xff]
        %v621 = vld [vmem:[#allocation7 + $0x48] sm:$0xff]
        %v622 = vld [vmem:[#allocation7 + $0x50] sm:$0xff]
        %v623 = vld [vmem:[#allocation7 + $0x58] sm:$0xff]
        %v624 = vld [vmem:[#allocation7 + $0x60] sm:$0xff]
        %v625 = vld [vmem:[#allocation7 + $0x68] sm:$0xff]
        %v626 = vld [vmem:[#allocation7 + $0x70] sm:$0xff]
        %v627 = vld [vmem:[#allocation7 + $0x78] sm:$0xff]
        %v644 = vunpack.c.l.b16 %v612
        %v645 = vunpack.c.h.b16 %v612
        %v646 = vunpack.c.l.b16 %v613
        %v647 = vunpack.c.h.b16 %v613
        %v648 = vunpack.c.l.b16 %v614
        %v649 = vunpack.c.h.b16 %v614
        %v650 = vunpack.c.l.b16 %v615
        %v651 = vunpack.c.h.b16 %v615
        %v652 = vunpack.c.l.b16 %v616
        %v653 = vunpack.c.h.b16 %v616
        %v654 = vunpack.c.l.b16 %v617
        %v655 = vunpack.c.h.b16 %v617
        %v656 = vunpack.c.l.b16 %v618
        %v657 = vunpack.c.h.b16 %v618
        %v658 = vunpack.c.l.b16 %v619
        %v659 = vunpack.c.h.b16 %v619
        %v660 = vunpack.c.l.b16 %v620
        %v661 = vunpack.c.h.b16 %v620
        %v662 = vunpack.c.l.b16 %v621
        %v663 = vunpack.c.h.b16 %v621
        %v664 = vunpack.c.l.b16 %v622
        %v665 = vunpack.c.h.b16 %v622
        %v666 = vunpack.c.l.b16 %v623
        %v667 = vunpack.c.h.b16 %v623
        %v668 = vunpack.c.l.b16 %v624
        %v669 = vunpack.c.h.b16 %v624
        %v670 = vunpack.c.l.b16 %v625
        %v671 = vunpack.c.h.b16 %v625
        %v672 = vunpack.c.l.b16 %v626
        %v673 = vunpack.c.h.b16 %v626
        %v674 = vunpack.c.l.b16 %v627
        %v675 = vunpack.c.h.b16 %v627
        %v676 = vpack.c.b16 %v646, %v644
        %v677 = vpack.c.b16 %v647, %v645
        %v678 = vpack.c.b16 %v650, %v648
        %v679 = vpack.c.b16 %v651, %v649
        %v680 = vpack.c.b16 %v654, %v652
        %v681 = vpack.c.b16 %v655, %v653
        %v682 = vpack.c.b16 %v658, %v656
        %v683 = vpack.c.b16 %v659, %v657
        %v684 = vpack.c.b16 %v662, %v660
        %v685 = vpack.c.b16 %v663, %v661
        %v686 = vpack.c.b16 %v666, %v664
        %v687 = vpack.c.b16 %v667, %v665
        %v688 = vpack.c.b16 %v670, %v668
        %v689 = vpack.c.b16 %v671, %v669
        %v690 = vpack.c.b16 %v674, %v672
        %v691 = vpack.c.b16 %v675, %v673
        %708 = vmatprep.subr.bf16.mxu0 %v691
        %709 = vmatpush1.bf16.msra.mxu0 %v690
        %710 = vmatprep.subr.bf16.mxu0 %v689
        %711 = vmatpush1.bf16.msra.mxu0 %v688
        %712 = vmatprep.subr.bf16.mxu0 %v687
        %713 = vmatpush1.bf16.msra.mxu0 %v686
        %714 = vmatprep.subr.bf16.mxu0 %v685
        %715 = vmatpush1.bf16.msra.mxu0 %v684
        %716 = vmatprep.subr.bf16.mxu0 %v683
        %717 = vmatpush1.bf16.msra.mxu0 %v682
        %718 = vmatprep.subr.bf16.mxu0 %v681
        %719 = vmatpush1.bf16.msra.mxu0 %v680
        %720 = vmatprep.subr.bf16.mxu0 %v679
        %721 = vmatpush1.bf16.msra.mxu0 %v678
        %722 = vmatprep.subr.bf16.mxu0 %v677
        %723 = vmatpush1.bf16.msra.mxu0 %v676
        %724 = vmatprep.subr.bf16.mxu0 0
        %725 = vmatpush2.bf16.msra.mxu0 0
        %726 = vmatprep.subr.bf16.mxu0 0
        %727 = vmatpush2.bf16.msra.mxu0 0
        %728 = vmatprep.subr.bf16.mxu0 0
        %729 = vmatpush2.bf16.msra.mxu0 0
        %730 = vmatprep.subr.bf16.mxu0 0
        %731 = vmatpush2.bf16.msra.mxu0 0
        %732 = vmatprep.subr.bf16.mxu0 0
        %733 = vmatpush2.bf16.msra.mxu0 0
        %734 = vmatprep.subr.bf16.mxu0 0
        %735 = vmatpush2.bf16.msra.mxu0 0
        %736 = vmatprep.subr.bf16.mxu0 0
        %737 = vmatpush2.bf16.msra.mxu0 0
        %738 = vmatprep.subr.bf16.mxu0 0
        %739 = vmatpush2.bf16.msra.mxu0 0
        %740 = vmatprep.mubr.bf16.mxu0 0
        %741 = vmatmul.mubr.bf16.gmra.mxu0 %v500
        %v742 = vpop.f32.mrf.mxu0
        %v743 = vadd.f32 0.0, %v742
        %v744 = vpop.f32.mrf.mxu0
        %v745 = vadd.f32 0.0, %v744
        %v746 = vpop.f32.mrf.mxu0
        %v747 = vadd.f32 0.0, %v746
        %v748 = vpop.f32.mrf.mxu0
        %v749 = vadd.f32 0.0, %v748
        %750 = vdwg.mxu0
        %v751 = vlaneseq
        %v752 = vshrl.u32 %v751, 7
        %v753 = vsub.s32 1, %v752
        %v754 = vrot.slane %v498, %v753
        %v755 = vadd.f32 %v743, %v754
        %v756 = vadd.f32 %v747, %v754
        %v757 = vlaneseq
        %v758 = vshrl.u32 %v757, 7
        %v759 = vsub.s32 2, %v758
        %v760 = vrot.slane %v498, %v759
        %v761 = vadd.f32 %v745, %v760
        %v762 = vadd.f32 %v749, %v760
        %v763 = vpack.c.bf16 %v611, %v610
        %v764 = vpack.c.bf16 %v756, %v755
        %v765 = vpack.c.bf16 %v762, %v761
        %v766 = vlaneseq
        %v767 = vshrl.u32 %v766, 7
        %v768 = vsub.s32 3, %v767
        %v769 = vrot.slane %v498, %v768
        %v770 = vadd.f32 %v769, 0.0
        %v771 = vld [vmem:[#allocation9] sm:$0xf]
        %v772 = vld [vmem:[#allocation9 + $0x4] sm:$0xf]
        %v773 = vld [vmem:[#allocation9 + $0x8] sm:$0xf]
        %v774 = vld [vmem:[#allocation9 + $0xc] sm:$0xf]
        %vm775 = vcmask 261120
        %v777 = vsel %vm775, %v763, 0
        %v780 = vsel %vm775, %v764, 0
        %782 = vmatprep.subr.bf16.mxu0 0
        %783 = vmatpush1.bf16.xpose.msra.mxu0 0
        %784 = vmatprep.subr.bf16.mxu0 0
        %785 = vmatpush1.bf16.xpose.msra.mxu0 0
        %786 = vmatprep.subr.bf16.mxu0 0
        %787 = vmatpush1.bf16.xpose.msra.mxu0 0
        %788 = vmatprep.subr.bf16.mxu0 0
        %789 = vmatpush1.bf16.xpose.msra.mxu0 0
        %790 = vmatprep.subr.bf16.mxu0 0
        %791 = vmatpush1.bf16.xpose.msra.mxu0 0
        %792 = vmatprep.subr.bf16.mxu0 0
        %793 = vmatpush1.bf16.xpose.msra.mxu0 0
        %794 = vmatprep.subr.bf16.mxu0 0
        %795 = vmatpush1.bf16.xpose.msra.mxu0 0
        %796 = vmatprep.subr.bf16.mxu0 0
        %797 = vmatpush1.bf16.xpose.msra.mxu0 %v780
        %798 = vmatprep.subr.bf16.mxu0 0
        %799 = vmatpush2.bf16.xpose.msra.mxu0 0
        %800 = vmatprep.subr.bf16.mxu0 0
        %801 = vmatpush2.bf16.xpose.msra.mxu0 0
        %802 = vmatprep.subr.bf16.mxu0 0
        %803 = vmatpush2.bf16.xpose.msra.mxu0 0
        %804 = vmatprep.subr.bf16.mxu0 0
        %805 = vmatpush2.bf16.xpose.msra.mxu0 0
        %806 = vmatprep.subr.bf16.mxu0 0
        %807 = vmatpush2.bf16.xpose.msra.mxu0 0
        %808 = vmatprep.subr.bf16.mxu0 0
        %809 = vmatpush2.bf16.xpose.msra.mxu0 0
        %810 = vmatprep.subr.bf16.mxu0 0
        %811 = vmatpush2.bf16.xpose.msra.mxu0 0
        %812 = vmatprep.subr.bf16.mxu0 0
        %813 = vmatpush2.bf16.xpose.msra.mxu0 0
        %814 = vmatprep.mubr.bf16.mxu0 0
        %815 = vmatmul.mubr.bf16.gmra.mxu0 %v777
        %v816 = vpop.f32.mrf.mxu0
        %v817 = vadd.f32 0.0, %v816
        %v818 = vpop.f32.mrf.mxu0
        %v819 = vpop.f32.mrf.mxu0
        %v820 = vadd.f32 0.0, %v819
        %v821 = vpop.f32.mrf.mxu0
        %822 = vdwg.mxu0
        %vm823 = vcmask 130048
        %v824 = vsel %vm823, %v817, -inf
        %825 = vmax.xlane.f32.xlu0 %v824
        %v826 = vpop.xlane.xlu0 %825
        %v827 = vsel %vm823, %v820, -inf
        %828 = vmax.xlane.f32.xlu0 %v827
        %v829 = vpop.xlane.xlu0 %828
        %v830 = vsub.f32 %v817, %v826
        %v831 = vsub.f32 %v820, %v829
        %v832 = vmul.f32 %v830, 1.442695
        %v833 = vpow.pop %v832
        %v834 = vmul.f32 %v831, 1.442695
        %v835 = vpow.pop %v834
        %v836 = vsel %vm823, %v833, 0.0
        %837 = vadd.xlane.f32.xlu0 %v836
        %v838 = vpop.xlane.xlu0 %837
        %v839 = vsel %vm823, %v835, 0.0
        %840 = vadd.xlane.f32.xlu0 %v839
        %v841 = vpop.xlane.xlu0 %840
        %v842 = vrcp.pop %v838
        %v843 = vrcp.pop %v841
        %v844 = vmul.f32 %v833, %v842
        %v845 = vmul.f32 %v835, %v843
        %v846 = vpack.c.bf16 %v845, %v844
        %v848 = vsel %vm823, %v846, 0
        %850 = vmatprep.subr.bf16.mxu0 0
        %851 = vmatpush1.bf16.msra.mxu0 0
        %852 = vmatprep.subr.bf16.mxu0 0
        %853 = vmatpush1.bf16.msra.mxu0 0
        %854 = vmatprep.subr.bf16.mxu0 0
        %855 = vmatpush1.bf16.msra.mxu0 0
        %856 = vmatprep.subr.bf16.mxu0 0
        %857 = vmatpush1.bf16.msra.mxu0 0
        %858 = vmatprep.subr.bf16.mxu0 0
        %859 = vmatpush1.bf16.msra.mxu0 0
        %860 = vmatprep.subr.bf16.mxu0 0
        %861 = vmatpush1.bf16.msra.mxu0 0
        %862 = vmatprep.subr.bf16.mxu0 0
        %863 = vmatpush1.bf16.msra.mxu0 0
        %864 = vmatprep.subr.bf16.mxu0 0
        %865 = vmatpush1.bf16.msra.mxu0 %v765
        %866 = vmatprep.subr.bf16.mxu0 0
        %867 = vmatpush2.bf16.msra.mxu0 0
        %868 = vmatprep.subr.bf16.mxu0 0
        %869 = vmatpush2.bf16.msra.mxu0 0
        %870 = vmatprep.subr.bf16.mxu0 0
        %871 = vmatpush2.bf16.msra.mxu0 0
        %872 = vmatprep.subr.bf16.mxu0 0
        %873 = vmatpush2.bf16.msra.mxu0 0
        %874 = vmatprep.subr.bf16.mxu0 0
        %875 = vmatpush2.bf16.msra.mxu0 0
        %876 = vmatprep.subr.bf16.mxu0 0
        %877 = vmatpush2.bf16.msra.mxu0 0
        %878 = vmatprep.subr.bf16.mxu0 0
        %879 = vmatpush2.bf16.msra.mxu0 0
        %880 = vmatprep.subr.bf16.mxu0 0
        %881 = vmatpush2.bf16.msra.mxu0 0
        %882 = vmatprep.mubr.bf16.mxu0 0
        %883 = vmatmul.mubr.bf16.gmra.mxu0 %v848
        %v884 = vpop.f32.mrf.mxu0
        %v885 = vadd.f32 0.0, %v884
        %v886 = vpop.f32.mrf.mxu0
        %v887 = vpop.f32.mrf.mxu0
        %v888 = vadd.f32 0.0, %v887
        %v889 = vpop.f32.mrf.mxu0
        %890 = vdwg.mxu0
        %v891 = vpack.c.bf16 %v888, %v885
        %v896 = vunpack.c.l.b16 %v771
        %v897 = vunpack.c.l.b16 %v772
        %v898 = vunpack.c.l.b16 %v773
        %v899 = vunpack.c.l.b16 %v774
        %v900 = vpack.c.b16 %v897, %v896
        %v901 = vpack.c.b16 %v899, %v898
        %v905 = vsel %vm775, %v891, 0
        %907 = vmatprep.subr.bf16.mxu0 0
        %908 = vmatpush1.bf16.msra.mxu0 0
        %909 = vmatprep.subr.bf16.mxu0 0
        %910 = vmatpush1.bf16.msra.mxu0 0
        %911 = vmatprep.subr.bf16.mxu0 0
        %912 = vmatpush1.bf16.msra.mxu0 0
        %913 = vmatprep.subr.bf16.mxu0 0
        %914 = vmatpush1.bf16.msra.mxu0 0
        %915 = vmatprep.subr.bf16.mxu0 0
        %916 = vmatpush1.bf16.msra.mxu0 0
        %917 = vmatprep.subr.bf16.mxu0 0
        %918 = vmatpush1.bf16.msra.mxu0 0
        %919 = vmatprep.subr.bf16.mxu0 0
        %920 = vmatpush1.bf16.msra.mxu0 %v901
        %921 = vmatprep.subr.bf16.mxu0 0
        %922 = vmatpush1.bf16.msra.mxu0 %v900
        %923 = vmatprep.subr.bf16.mxu0 0
        %924 = vmatpush2.bf16.msra.mxu0 0
        %925 = vmatprep.subr.bf16.mxu0 0
        %926 = vmatpush2.bf16.msra.mxu0 0
        %927 = vmatprep.subr.bf16.mxu0 0
        %928 = vmatpush2.bf16.msra.mxu0 0
        %929 = vmatprep.subr.bf16.mxu0 0
        %930 = vmatpush2.bf16.msra.mxu0 0
        %931 = vmatprep.subr.bf16.mxu0 0
        %932 = vmatpush2.bf16.msra.mxu0 0
        %933 = vmatprep.subr.bf16.mxu0 0
        %934 = vmatpush2.bf16.msra.mxu0 0
        %935 = vmatprep.subr.bf16.mxu0 0
        %936 = vmatpush2.bf16.msra.mxu0 0
        %937 = vmatprep.subr.bf16.mxu0 0
        %938 = vmatpush2.bf16.msra.mxu0 0
        %939 = vmatprep.mubr.bf16.mxu0 0
        %940 = vmatmul.mubr.bf16.gmra.mxu0 %v905
        %v941 = vpop.f32.mrf.mxu0
        %v942 = vadd.f32 0.0, %v941
        %v943 = vpop.f32.mrf.mxu0
        %v944 = vpop.f32.mrf.mxu0
        %v945 = vadd.f32 0.0, %v944
        %v946 = vpop.f32.mrf.mxu0
        %947 = vdwg.mxu0
        %v948 = vadd.f32 %v770, %v942
        %v949 = vadd.f32 %v770, %v945
        %v950 = vld [vmem:[#allocation9 + $0x10] sm:$0xf]
        %v951 = vld [vmem:[#allocation9 + $0x14] sm:$0xf]
        %v952 = vld [vmem:[#allocation9 + $0x18] sm:$0xf]
        %v953 = vld [vmem:[#allocation9 + $0x1c] sm:$0xf]
        %955 = vrot.lane.b32.xlu0 %v763, 96
        %v956 = vpop.permute.xlu0 %955
        %958 = vrot.lane.b32.xlu0 %v764, 96
        %v959 = vpop.permute.xlu0 %958
        %v961 = vsel %vm775, %v956, 0
        %v964 = vsel %vm775, %v959, 0
        %966 = vmatprep.subr.bf16.mxu0 0
        %967 = vmatpush1.bf16.xpose.msra.mxu0 0
        %968 = vmatprep.subr.bf16.mxu0 0
        %969 = vmatpush1.bf16.xpose.msra.mxu0 0
        %970 = vmatprep.subr.bf16.mxu0 0
        %971 = vmatpush1.bf16.xpose.msra.mxu0 0
        %972 = vmatprep.subr.bf16.mxu0 0
        %973 = vmatpush1.bf16.xpose.msra.mxu0 0
        %974 = vmatprep.subr.bf16.mxu0 0
        %975 = vmatpush1.bf16.xpose.msra.mxu0 0
        %976 = vmatprep.subr.bf16.mxu0 0
        %977 = vmatpush1.bf16.xpose.msra.mxu0 0
        %978 = vmatprep.subr.bf16.mxu0 0
        %979 = vmatpush1.bf16.xpose.msra.mxu0 0
        %980 = vmatprep.subr.bf16.mxu0 0
        %981 = vmatpush1.bf16.xpose.msra.mxu0 %v964
        %982 = vmatprep.subr.bf16.mxu0 0
        %983 = vmatpush2.bf16.xpose.msra.mxu0 0
        %984 = vmatprep.subr.bf16.mxu0 0
        %985 = vmatpush2.bf16.xpose.msra.mxu0 0
        %986 = vmatprep.subr.bf16.mxu0 0
        %987 = vmatpush2.bf16.xpose.msra.mxu0 0
        %988 = vmatprep.subr.bf16.mxu0 0
        %989 = vmatpush2.bf16.xpose.msra.mxu0 0
        %990 = vmatprep.subr.bf16.mxu0 0
        %991 = vmatpush2.bf16.xpose.msra.mxu0 0
        %992 = vmatprep.subr.bf16.mxu0 0
        %993 = vmatpush2.bf16.xpose.msra.mxu0 0
        %994 = vmatprep.subr.bf16.mxu0 0
        %995 = vmatpush2.bf16.xpose.msra.mxu0 0
        %996 = vmatprep.subr.bf16.mxu0 0
        %997 = vmatpush2.bf16.xpose.msra.mxu0 0
        %998 = vmatprep.mubr.bf16.mxu0 0
        %999 = vmatmul.mubr.bf16.gmra.mxu0 %v961
        %v1000 = vpop.f32.mrf.mxu0
        %v1001 = vadd.f32 0.0, %v1000
        %v1002 = vpop.f32.mrf.mxu0
        %v1003 = vpop.f32.mrf.mxu0
        %v1004 = vadd.f32 0.0, %v1003
        %v1005 = vpop.f32.mrf.mxu0
        %1006 = vdwg.mxu0
        %v1007 = vsel %vm823, %v1001, -inf
        %1008 = vmax.xlane.f32.xlu0 %v1007
        %v1009 = vpop.xlane.xlu0 %1008
        %v1010 = vsel %vm823, %v1004, -inf
        %1011 = vmax.xlane.f32.xlu0 %v1010
        %v1012 = vpop.xlane.xlu0 %1011
        %v1013 = vsub.f32 %v1001, %v1009
        %v1014 = vsub.f32 %v1004, %v1012
        %v1015 = vmul.f32 %v1013, 1.442695
        %v1016 = vpow.pop %v1015
        %v1017 = vmul.f32 %v1014, 1.442695
        %v1018 = vpow.pop %v1017
        %v1019 = vsel %vm823, %v1016, 0.0
        %1020 = vadd.xlane.f32.xlu0 %v1019
        %v1021 = vpop.xlane.xlu0 %1020
        %v1022 = vsel %vm823, %v1018, 0.0
        %1023 = vadd.xlane.f32.xlu0 %v1022
        %v1024 = vpop.xlane.xlu0 %1023
        %v1025 = vrcp.pop %v1021
        %v1026 = vrcp.pop %v1024
        %v1027 = vmul.f32 %v1016, %v1025
        %v1028 = vmul.f32 %v1018, %v1026
        %v1029 = vpack.c.bf16 %v1028, %v1027
        %1031 = vrot.lane.b32.xlu0 %v765, 96
        %v1032 = vpop.permute.xlu0 %1031
        %v1035 = vsel %vm823, %v1029, 0
        %1037 = vmatprep.subr.bf16.mxu0 0
        %1038 = vmatpush1.bf16.msra.mxu0 0
        %1039 = vmatprep.subr.bf16.mxu0 0
        %1040 = vmatpush1.bf16.msra.mxu0 0
        %1041 = vmatprep.subr.bf16.mxu0 0
        %1042 = vmatpush1.bf16.msra.mxu0 0
        %1043 = vmatprep.subr.bf16.mxu0 0
        %1044 = vmatpush1.bf16.msra.mxu0 0
        %1045 = vmatprep.subr.bf16.mxu0 0
        %1046 = vmatpush1.bf16.msra.mxu0 0
        %1047 = vmatprep.subr.bf16.mxu0 0
        %1048 = vmatpush1.bf16.msra.mxu0 0
        %1049 = vmatprep.subr.bf16.mxu0 0
        %1050 = vmatpush1.bf16.msra.mxu0 0
        %1051 = vmatprep.subr.bf16.mxu0 0
        %1052 = vmatpush1.bf16.msra.mxu0 %v1032
        %1053 = vmatprep.subr.bf16.mxu0 0
        %1054 = vmatpush2.bf16.msra.mxu0 0
        %1055 = vmatprep.subr.bf16.mxu0 0
        %1056 = vmatpush2.bf16.msra.mxu0 0
        %1057 = vmatprep.subr.bf16.mxu0 0
        %1058 = vmatpush2.bf16.msra.mxu0 0
        %1059 = vmatprep.subr.bf16.mxu0 0
        %1060 = vmatpush2.bf16.msra.mxu0 0
        %1061 = vmatprep.subr.bf16.mxu0 0
        %1062 = vmatpush2.bf16.msra.mxu0 0
        %1063 = vmatprep.subr.bf16.mxu0 0
        %1064 = vmatpush2.bf16.msra.mxu0 0
        %1065 = vmatprep.subr.bf16.mxu0 0
        %1066 = vmatpush2.bf16.msra.mxu0 0
        %1067 = vmatprep.subr.bf16.mxu0 0
        %1068 = vmatpush2.bf16.msra.mxu0 0
        %1069 = vmatprep.mubr.bf16.mxu0 0
        %1070 = vmatmul.mubr.bf16.gmra.mxu0 %v1035
        %v1071 = vpop.f32.mrf.mxu0
        %v1072 = vadd.f32 0.0, %v1071
        %v1073 = vpop.f32.mrf.mxu0
        %v1074 = vpop.f32.mrf.mxu0
        %v1075 = vadd.f32 0.0, %v1074
        %v1076 = vpop.f32.mrf.mxu0
        %1077 = vdwg.mxu0
        %v1078 = vpack.c.bf16 %v1075, %v1072
        %v1083 = vunpack.c.l.b16 %v950
        %v1084 = vunpack.c.l.b16 %v951
        %v1085 = vunpack.c.l.b16 %v952
        %v1086 = vunpack.c.l.b16 %v953
        %v1087 = vpack.c.b16 %v1084, %v1083
        %v1088 = vpack.c.b16 %v1086, %v1085
        %v1092 = vsel %vm775, %v1078, 0
        %1094 = vmatprep.subr.bf16.mxu0 0
        %1095 = vmatpush1.bf16.msra.mxu0 0
        %1096 = vmatprep.subr.bf16.mxu0 0
        %1097 = vmatpush1.bf16.msra.mxu0 0
        %1098 = vmatprep.subr.bf16.mxu0 0
        %1099 = vmatpush1.bf16.msra.mxu0 0
        %1100 = vmatprep.subr.bf16.mxu0 0
        %1101 = vmatpush1.bf16.msra.mxu0 0
        %1102 = vmatprep.subr.bf16.mxu0 0
        %1103 = vmatpush1.bf16.msra.mxu0 0
        %1104 = vmatprep.subr.bf16.mxu0 0
        %1105 = vmatpush1.bf16.msra.mxu0 0
        %1106 = vmatprep.subr.bf16.mxu0 0
        %1107 = vmatpush1.bf16.msra.mxu0 %v1088
        %1108 = vmatprep.subr.bf16.mxu0 0
        %1109 = vmatpush1.bf16.msra.mxu0 %v1087
        %1110 = vmatprep.subr.bf16.mxu0 0
        %1111 = vmatpush2.bf16.msra.mxu0 0
        %1112 = vmatprep.subr.bf16.mxu0 0
        %1113 = vmatpush2.bf16.msra.mxu0 0
        %1114 = vmatprep.subr.bf16.mxu0 0
        %1115 = vmatpush2.bf16.msra.mxu0 0
        %1116 = vmatprep.subr.bf16.mxu0 0
        %1117 = vmatpush2.bf16.msra.mxu0 0
        %1118 = vmatprep.subr.bf16.mxu0 0
        %1119 = vmatpush2.bf16.msra.mxu0 0
        %1120 = vmatprep.subr.bf16.mxu0 0
        %1121 = vmatpush2.bf16.msra.mxu0 0
        %1122 = vmatprep.subr.bf16.mxu0 0
        %1123 = vmatpush2.bf16.msra.mxu0 0
        %1124 = vmatprep.subr.bf16.mxu0 0
        %1125 = vmatpush2.bf16.msra.mxu0 0
        %1126 = vmatprep.mubr.bf16.mxu0 0
        %1127 = vmatmul.mubr.bf16.gmra.mxu0 %v1092
        %v1128 = vpop.f32.mrf.mxu0
        %v1129 = vadd.f32 0.0, %v1128
        %v1130 = vpop.f32.mrf.mxu0
        %v1131 = vpop.f32.mrf.mxu0
        %v1132 = vadd.f32 0.0, %v1131
        %v1133 = vpop.f32.mrf.mxu0
        %1134 = vdwg.mxu0
        %v1135 = vadd.f32 %v948, %v1129
        %v1136 = vadd.f32 %v949, %v1132
        %v1137 = vld [vmem:[#allocation9 + $0x20] sm:$0xf]
        %v1138 = vld [vmem:[#allocation9 + $0x24] sm:$0xf]
        %v1139 = vld [vmem:[#allocation9 + $0x28] sm:$0xf]
        %v1140 = vld [vmem:[#allocation9 + $0x2c] sm:$0xf]
        %1141 = vrot.lane.b32.xlu0 %v763, 64
        %v1142 = vpop.permute.xlu0 %1141
        %1143 = vrot.lane.b32.xlu0 %v764, 64
        %v1144 = vpop.permute.xlu0 %1143
        %v1146 = vsel %vm775, %v1142, 0
        %v1149 = vsel %vm775, %v1144, 0
        %1151 = vmatprep.subr.bf16.mxu0 0
        %1152 = vmatpush1.bf16.xpose.msra.mxu0 0
        %1153 = vmatprep.subr.bf16.mxu0 0
        %1154 = vmatpush1.bf16.xpose.msra.mxu0 0
        %1155 = vmatprep.subr.bf16.mxu0 0
        %1156 = vmatpush1.bf16.xpose.msra.mxu0 0
        %1157 = vmatprep.subr.bf16.mxu0 0
        %1158 = vmatpush1.bf16.xpose.msra.mxu0 0
        %1159 = vmatprep.subr.bf16.mxu0 0
        %1160 = vmatpush1.bf16.xpose.msra.mxu0 0
        %1161 = vmatprep.subr.bf16.mxu0 0
        %1162 = vmatpush1.bf16.xpose.msra.mxu0 0
        %1163 = vmatprep.subr.bf16.mxu0 0
        %1164 = vmatpush1.bf16.xpose.msra.mxu0 0
        %1165 = vmatprep.subr.bf16.mxu0 0
        %1166 = vmatpush1.bf16.xpose.msra.mxu0 %v1149
        %1167 = vmatprep.subr.bf16.mxu0 0
        %1168 = vmatpush2.bf16.xpose.msra.mxu0 0
        %1169 = vmatprep.subr.bf16.mxu0 0
        %1170 = vmatpush2.bf16.xpose.msra.mxu0 0
        %1171 = vmatprep.subr.bf16.mxu0 0
        %1172 = vmatpush2.bf16.xpose.msra.mxu0 0
        %1173 = vmatprep.subr.bf16.mxu0 0
        %1174 = vmatpush2.bf16.xpose.msra.mxu0 0
        %1175 = vmatprep.subr.bf16.mxu0 0
        %1176 = vmatpush2.bf16.xpose.msra.mxu0 0
        %1177 = vmatprep.subr.bf16.mxu0 0
        %1178 = vmatpush2.bf16.xpose.msra.mxu0 0
        %1179 = vmatprep.subr.bf16.mxu0 0
        %1180 = vmatpush2.bf16.xpose.msra.mxu0 0
        %1181 = vmatprep.subr.bf16.mxu0 0
        %1182 = vmatpush2.bf16.xpose.msra.mxu0 0
        %1183 = vmatprep.mubr.bf16.mxu0 0
        %1184 = vmatmul.mubr.bf16.gmra.mxu0 %v1146
        %v1185 = vpop.f32.mrf.mxu0
        %v1186 = vadd.f32 0.0, %v1185
        %v1187 = vpop.f32.mrf.mxu0
        %v1188 = vpop.f32.mrf.mxu0
        %v1189 = vadd.f32 0.0, %v1188
        %v1190 = vpop.f32.mrf.mxu0
        %1191 = vdwg.mxu0
        %v1192 = vsel %vm823, %v1186, -inf
        %1193 = vmax.xlane.f32.xlu0 %v1192
        %v1194 = vpop.xlane.xlu0 %1193
        %v1195 = vsel %vm823, %v1189, -inf
        %1196 = vmax.xlane.f32.xlu0 %v1195
        %v1197 = vpop.xlane.xlu0 %1196
        %v1198 = vsub.f32 %v1186, %v1194
        %v1199 = vsub.f32 %v1189, %v1197
        %v1200 = vmul.f32 %v1198, 1.442695
        %v1201 = vpow.pop %v1200
        %v1202 = vmul.f32 %v1199, 1.442695
        %v1203 = vpow.pop %v1202
        %v1204 = vsel %vm823, %v1201, 0.0
        %1205 = vadd.xlane.f32.xlu0 %v1204
        %v1206 = vpop.xlane.xlu0 %1205
        %v1207 = vsel %vm823, %v1203, 0.0
        %1208 = vadd.xlane.f32.xlu0 %v1207
        %v1209 = vpop.xlane.xlu0 %1208
        %v1210 = vrcp.pop %v1206
        %v1211 = vrcp.pop %v1209
        %v1212 = vmul.f32 %v1201, %v1210
        %v1213 = vmul.f32 %v1203, %v1211
        %v1214 = vpack.c.bf16 %v1213, %v1212
        %1215 = vrot.lane.b32.xlu0 %v765, 64
        %v1216 = vpop.permute.xlu0 %1215
        %v1219 = vsel %vm823, %v1214, 0
        %1221 = vmatprep.subr.bf16.mxu0 0
        %1222 = vmatpush1.bf16.msra.mxu0 0
        %1223 = vmatprep.subr.bf16.mxu0 0
        %1224 = vmatpush1.bf16.msra.mxu0 0
        %1225 = vmatprep.subr.bf16.mxu0 0
        %1226 = vmatpush1.bf16.msra.mxu0 0
        %1227 = vmatprep.subr.bf16.mxu0 0
        %1228 = vmatpush1.bf16.msra.mxu0 0
        %1229 = vmatprep.subr.bf16.mxu0 0
        %1230 = vmatpush1.bf16.msra.mxu0 0
        %1231 = vmatprep.subr.bf16.mxu0 0
        %1232 = vmatpush1.bf16.msra.mxu0 0
        %1233 = vmatprep.subr.bf16.mxu0 0
        %1234 = vmatpush1.bf16.msra.mxu0 0
        %1235 = vmatprep.subr.bf16.mxu0 0
        %1236 = vmatpush1.bf16.msra.mxu0 %v1216
        %1237 = vmatprep.subr.bf16.mxu0 0
        %1238 = vmatpush2.bf16.msra.mxu0 0
        %1239 = vmatprep.subr.bf16.mxu0 0
        %1240 = vmatpush2.bf16.msra.mxu0 0
        %1241 = vmatprep.subr.bf16.mxu0 0
        %1242 = vmatpush2.bf16.msra.mxu0 0
        %1243 = vmatprep.subr.bf16.mxu0 0
        %1244 = vmatpush2.bf16.msra.mxu0 0
        %1245 = vmatprep.subr.bf16.mxu0 0
        %1246 = vmatpush2.bf16.msra.mxu0 0
        %1247 = vmatprep.subr.bf16.mxu0 0
        %1248 = vmatpush2.bf16.msra.mxu0 0
        %1249 = vmatprep.subr.bf16.mxu0 0
        %1250 = vmatpush2.bf16.msra.mxu0 0
        %1251 = vmatprep.subr.bf16.mxu0 0
        %1252 = vmatpush2.bf16.msra.mxu0 0
        %1253 = vmatprep.mubr.bf16.mxu0 0
        %1254 = vmatmul.mubr.bf16.gmra.mxu0 %v1219
        %v1255 = vpop.f32.mrf.mxu0
        %v1256 = vadd.f32 0.0, %v1255
        %v1257 = vpop.f32.mrf.mxu0
        %v1258 = vpop.f32.mrf.mxu0
        %v1259 = vadd.f32 0.0, %v1258
        %v1260 = vpop.f32.mrf.mxu0
        %1261 = vdwg.mxu0
        %v1262 = vpack.c.bf16 %v1259, %v1256
        %v1267 = vunpack.c.l.b16 %v1137
        %v1268 = vunpack.c.l.b16 %v1138
        %v1269 = vunpack.c.l.b16 %v1139
        %v1270 = vunpack.c.l.b16 %v1140
        %v1271 = vpack.c.b16 %v1268, %v1267
        %v1272 = vpack.c.b16 %v1270, %v1269
        %v1276 = vsel %vm775, %v1262, 0
        %1278 = vmatprep.subr.bf16.mxu0 0
        %1279 = vmatpush1.bf16.msra.mxu0 0
        %1280 = vmatprep.subr.bf16.mxu0 0
        %1281 = vmatpush1.bf16.msra.mxu0 0
        %1282 = vmatprep.subr.bf16.mxu0 0
        %1283 = vmatpush1.bf16.msra.mxu0 0
        %1284 = vmatprep.subr.bf16.mxu0 0
        %1285 = vmatpush1.bf16.msra.mxu0 0
        %1286 = vmatprep.subr.bf16.mxu0 0
        %1287 = vmatpush1.bf16.msra.mxu0 0
        %1288 = vmatprep.subr.bf16.mxu0 0
        %1289 = vmatpush1.bf16.msra.mxu0 0
        %1290 = vmatprep.subr.bf16.mxu0 0
        %1291 = vmatpush1.bf16.msra.mxu0 %v1272
        %1292 = vmatprep.subr.bf16.mxu0 0
        %1293 = vmatpush1.bf16.msra.mxu0 %v1271
        %1294 = vmatprep.subr.bf16.mxu0 0
        %1295 = vmatpush2.bf16.msra.mxu0 0
        %1296 = vmatprep.subr.bf16.mxu0 0
        %1297 = vmatpush2.bf16.msra.mxu0 0
        %1298 = vmatprep.subr.bf16.mxu0 0
        %1299 = vmatpush2.bf16.msra.mxu0 0
        %1300 = vmatprep.subr.bf16.mxu0 0
        %1301 = vmatpush2.bf16.msra.mxu0 0
        %1302 = vmatprep.subr.bf16.mxu0 0
        %1303 = vmatpush2.bf16.msra.mxu0 0
        %1304 = vmatprep.subr.bf16.mxu0 0
        %1305 = vmatpush2.bf16.msra.mxu0 0
        %1306 = vmatprep.subr.bf16.mxu0 0
        %1307 = vmatpush2.bf16.msra.mxu0 0
        %1308 = vmatprep.subr.bf16.mxu0 0
        %1309 = vmatpush2.bf16.msra.mxu0 0
        %1310 = vmatprep.mubr.bf16.mxu0 0
        %1311 = vmatmul.mubr.bf16.gmra.mxu0 %v1276
        %v1312 = vpop.f32.mrf.mxu0
        %v1313 = vadd.f32 0.0, %v1312
        %v1314 = vpop.f32.mrf.mxu0
        %v1315 = vpop.f32.mrf.mxu0
        %v1316 = vadd.f32 0.0, %v1315
        %v1317 = vpop.f32.mrf.mxu0
        %1318 = vdwg.mxu0
        %v1319 = vadd.f32 %v1135, %v1313
        %v1320 = vadd.f32 %v1136, %v1316
        %v1321 = vld [vmem:[#allocation9 + $0x30] sm:$0xf]
        %v1322 = vld [vmem:[#allocation9 + $0x34] sm:$0xf]
        %v1323 = vld [vmem:[#allocation9 + $0x38] sm:$0xf]
        %v1324 = vld [vmem:[#allocation9 + $0x3c] sm:$0xf]
        %1325 = vrot.lane.b32.xlu0 %v763, 32
        %v1326 = vpop.permute.xlu0 %1325
        %1327 = vrot.lane.b32.xlu0 %v764, 32
        %v1328 = vpop.permute.xlu0 %1327
        %v1330 = vsel %vm775, %v1326, 0
        %v1333 = vsel %vm775, %v1328, 0
        %1335 = vmatprep.subr.bf16.mxu0 0
        %1336 = vmatpush1.bf16.xpose.msra.mxu0 0
        %1337 = vmatprep.subr.bf16.mxu0 0
        %1338 = vmatpush1.bf16.xpose.msra.mxu0 0
        %1339 = vmatprep.subr.bf16.mxu0 0
        %1340 = vmatpush1.bf16.xpose.msra.mxu0 0
        %1341 = vmatprep.subr.bf16.mxu0 0
        %1342 = vmatpush1.bf16.xpose.msra.mxu0 0
        %1343 = vmatprep.subr.bf16.mxu0 0
        %1344 = vmatpush1.bf16.xpose.msra.mxu0 0
        %1345 = vmatprep.subr.bf16.mxu0 0
        %1346 = vmatpush1.bf16.xpose.msra.mxu0 0
        %1347 = vmatprep.subr.bf16.mxu0 0
        %1348 = vmatpush1.bf16.xpose.msra.mxu0 0
        %1349 = vmatprep.subr.bf16.mxu0 0
        %1350 = vmatpush1.bf16.xpose.msra.mxu0 %v1333
        %1351 = vmatprep.subr.bf16.mxu0 0
        %1352 = vmatpush2.bf16.xpose.msra.mxu0 0
        %1353 = vmatprep.subr.bf16.mxu0 0
        %1354 = vmatpush2.bf16.xpose.msra.mxu0 0
        %1355 = vmatprep.subr.bf16.mxu0 0
        %1356 = vmatpush2.bf16.xpose.msra.mxu0 0
        %1357 = vmatprep.subr.bf16.mxu0 0
        %1358 = vmatpush2.bf16.xpose.msra.mxu0 0
        %1359 = vmatprep.subr.bf16.mxu0 0
        %1360 = vmatpush2.bf16.xpose.msra.mxu0 0
        %1361 = vmatprep.subr.bf16.mxu0 0
        %1362 = vmatpush2.bf16.xpose.msra.mxu0 0
        %1363 = vmatprep.subr.bf16.mxu0 0
        %1364 = vmatpush2.bf16.xpose.msra.mxu0 0
        %1365 = vmatprep.subr.bf16.mxu0 0
        %1366 = vmatpush2.bf16.xpose.msra.mxu0 0
        %1367 = vmatprep.mubr.bf16.mxu0 0
        %1368 = vmatmul.mubr.bf16.gmra.mxu0 %v1330
        %v1369 = vpop.f32.mrf.mxu0
        %v1370 = vadd.f32 0.0, %v1369
        %v1371 = vpop.f32.mrf.mxu0
        %v1372 = vpop.f32.mrf.mxu0
        %v1373 = vadd.f32 0.0, %v1372
        %v1374 = vpop.f32.mrf.mxu0
        %1375 = vdwg.mxu0
        %v1376 = vsel %vm823, %v1370, -inf
        %1377 = vmax.xlane.f32.xlu0 %v1376
        %v1378 = vpop.xlane.xlu0 %1377
        %v1379 = vsel %vm823, %v1373, -inf
        %1380 = vmax.xlane.f32.xlu0 %v1379
        %v1381 = vpop.xlane.xlu0 %1380
        %v1382 = vsub.f32 %v1370, %v1378
        %v1383 = vsub.f32 %v1373, %v1381
        %v1384 = vmul.f32 %v1382, 1.442695
        %v1385 = vpow.pop %v1384
        %v1386 = vmul.f32 %v1383, 1.442695
        %v1387 = vpow.pop %v1386
        %v1388 = vsel %vm823, %v1385, 0.0
        %1389 = vadd.xlane.f32.xlu0 %v1388
        %v1390 = vpop.xlane.xlu0 %1389
        %v1391 = vsel %vm823, %v1387, 0.0
        %1392 = vadd.xlane.f32.xlu0 %v1391
        %v1393 = vpop.xlane.xlu0 %1392
        %v1394 = vrcp.pop %v1390
        %v1395 = vrcp.pop %v1393
        %v1396 = vmul.f32 %v1385, %v1394
        %v1397 = vmul.f32 %v1387, %v1395
        %v1398 = vpack.c.bf16 %v1397, %v1396
        %1399 = vrot.lane.b32.xlu0 %v765, 32
        %v1400 = vpop.permute.xlu0 %1399
        %v1403 = vsel %vm823, %v1398, 0
        %1405 = vmatprep.subr.bf16.mxu0 0
        %1406 = vmatpush1.bf16.msra.mxu0 0
        %1407 = vmatprep.subr.bf16.mxu0 0
        %1408 = vmatpush1.bf16.msra.mxu0 0
        %1409 = vmatprep.subr.bf16.mxu0 0
        %1410 = vmatpush1.bf16.msra.mxu0 0
        %1411 = vmatprep.subr.bf16.mxu0 0
        %1412 = vmatpush1.bf16.msra.mxu0 0
        %1413 = vmatprep.subr.bf16.mxu0 0
        %1414 = vmatpush1.bf16.msra.mxu0 0
        %1415 = vmatprep.subr.bf16.mxu0 0
        %1416 = vmatpush1.bf16.msra.mxu0 0
        %1417 = vmatprep.subr.bf16.mxu0 0
        %1418 = vmatpush1.bf16.msra.mxu0 0
        %1419 = vmatprep.subr.bf16.mxu0 0
        %1420 = vmatpush1.bf16.msra.mxu0 %v1400
        %1421 = vmatprep.subr.bf16.mxu0 0
        %1422 = vmatpush2.bf16.msra.mxu0 0
        %1423 = vmatprep.subr.bf16.mxu0 0
        %1424 = vmatpush2.bf16.msra.mxu0 0
        %1425 = vmatprep.subr.bf16.mxu0 0
        %1426 = vmatpush2.bf16.msra.mxu0 0
        %1427 = vmatprep.subr.bf16.mxu0 0
        %1428 = vmatpush2.bf16.msra.mxu0 0
        %1429 = vmatprep.subr.bf16.mxu0 0
        %1430 = vmatpush2.bf16.msra.mxu0 0
        %1431 = vmatprep.subr.bf16.mxu0 0
        %1432 = vmatpush2.bf16.msra.mxu0 0
        %1433 = vmatprep.subr.bf16.mxu0 0
        %1434 = vmatpush2.bf16.msra.mxu0 0
        %1435 = vmatprep.subr.bf16.mxu0 0
        %1436 = vmatpush2.bf16.msra.mxu0 0
        %1437 = vmatprep.mubr.bf16.mxu0 0
        %1438 = vmatmul.mubr.bf16.gmra.mxu0 %v1403
        %v1439 = vpop.f32.mrf.mxu0
        %v1440 = vadd.f32 0.0, %v1439
        %v1441 = vpop.f32.mrf.mxu0
        %v1442 = vpop.f32.mrf.mxu0
        %v1443 = vadd.f32 0.0, %v1442
        %v1444 = vpop.f32.mrf.mxu0
        %1445 = vdwg.mxu0
        %v1446 = vpack.c.bf16 %v1443, %v1440
        %v1451 = vunpack.c.l.b16 %v1321
        %v1452 = vunpack.c.l.b16 %v1322
        %v1453 = vunpack.c.l.b16 %v1323
        %v1454 = vunpack.c.l.b16 %v1324
        %v1455 = vpack.c.b16 %v1452, %v1451
        %v1456 = vpack.c.b16 %v1454, %v1453
        %v1460 = vsel %vm775, %v1446, 0
        %1462 = vmatprep.subr.bf16.mxu0 0
        %1463 = vmatpush1.bf16.msra.mxu0 0
        %1464 = vmatprep.subr.bf16.mxu0 0
        %1465 = vmatpush1.bf16.msra.mxu0 0
        %1466 = vmatprep.subr.bf16.mxu0 0
        %1467 = vmatpush1.bf16.msra.mxu0 0
        %1468 = vmatprep.subr.bf16.mxu0 0
        %1469 = vmatpush1.bf16.msra.mxu0 0
        %1470 = vmatprep.subr.bf16.mxu0 0
        %1471 = vmatpush1.bf16.msra.mxu0 0
        %1472 = vmatprep.subr.bf16.mxu0 0
        %1473 = vmatpush1.bf16.msra.mxu0 0
        %1474 = vmatprep.subr.bf16.mxu0 0
        %1475 = vmatpush1.bf16.msra.mxu0 %v1456
        %1476 = vmatprep.subr.bf16.mxu0 0
        %1477 = vmatpush1.bf16.msra.mxu0 %v1455
        %1478 = vmatprep.subr.bf16.mxu0 0
        %1479 = vmatpush2.bf16.msra.mxu0 0
        %1480 = vmatprep.subr.bf16.mxu0 0
        %1481 = vmatpush2.bf16.msra.mxu0 0
        %1482 = vmatprep.subr.bf16.mxu0 0
        %1483 = vmatpush2.bf16.msra.mxu0 0
        %1484 = vmatprep.subr.bf16.mxu0 0
        %1485 = vmatpush2.bf16.msra.mxu0 0
        %1486 = vmatprep.subr.bf16.mxu0 0
        %1487 = vmatpush2.bf16.msra.mxu0 0
        %1488 = vmatprep.subr.bf16.mxu0 0
        %1489 = vmatpush2.bf16.msra.mxu0 0
        %1490 = vmatprep.subr.bf16.mxu0 0
        %1491 = vmatpush2.bf16.msra.mxu0 0
        %1492 = vmatprep.subr.bf16.mxu0 0
        %1493 = vmatpush2.bf16.msra.mxu0 0
        %1494 = vmatprep.mubr.bf16.mxu0 0
        %1495 = vmatmul.mubr.bf16.gmra.mxu0 %v1460
        %v1496 = vpop.f32.mrf.mxu0
        %v1497 = vadd.f32 0.0, %v1496
        %v1498 = vpop.f32.mrf.mxu0
        %v1499 = vpop.f32.mrf.mxu0
        %v1500 = vadd.f32 0.0, %v1499
        %v1501 = vpop.f32.mrf.mxu0
        %1502 = vdwg.mxu0
        %v1503 = vadd.f32 %v1319, %v1497
        %v1504 = vadd.f32 %v1320, %v1500
        %v1505 = vadd.f32 %v494, %v1503
        %v1506 = vadd.f32 %v495, %v1504
        %1507 = vadd.xlane.f32.xlu0 %v1505
        %v1508 = vpop.xlane.xlu0 %1507
        %1509 = vadd.xlane.f32.xlu0 %v1506
        %v1510 = vpop.xlane.xlu0 %1509
        %v1511 = vrcp.pop 128.0
        %v1512 = vmul.f32 %v1508, %v1511
        %v1513 = vmul.f32 %v1510, %v1511
        %v1514 = vsub.f32 %v1505, %v1512
        %v1515 = vsub.f32 %v1506, %v1513
        %v1516 = vmul.f32 %v1514, %v1514
        %v1517 = vmul.f32 %v1515, %v1515
        %1518 = vadd.xlane.f32.xlu0 %v1516
        %v1519 = vpop.xlane.xlu0 %1518
        %1520 = vadd.xlane.f32.xlu0 %v1517
        %v1521 = vpop.xlane.xlu0 %1520
        %v1522 = vmul.f32 %v1519, %v1511
        %v1523 = vmul.f32 %v1521, %v1511
        %v1524 = vadd.f32 %v1522, 1e-05
        %v1525 = vadd.f32 %v1523, 1e-05
        %v1526 = vrsqrt.pop %v1524
        %v1527 = vrsqrt.pop %v1525
        %v1528 = vmul.f32 %v1514, %v1526
        %v1529 = vmul.f32 %v1515, %v1527
        %v1530 = vlaneseq
        %v1531 = vshrl.u32 %v1530, 7
        %v1532 = vsub.s32 5, %v1531
        %v1533 = vrot.slane %v498, %v1532
        %v1534 = vmul.f32 %v1528, %v1533
        %v1535 = vmul.f32 %v1529, %v1533
        %v1536 = vlaneseq
        %v1537 = vshrl.u32 %v1536, 7
        %v1538 = vsub.s32 6, %v1537
        %v1539 = vrot.slane %v498, %v1538
        %v1540 = vadd.f32 %v1534, %v1539
        %v1541 = vadd.f32 %v1535, %v1539
        %v1542 = vld [vmem:[%s8] sm:$0x3]
        %v1543 = vpack.c.bf16 %v1541, %v1540
        %v1544 = vld [vmem:[#allocation10] sm:$0xff]
        %v1545 = vld [vmem:[#allocation10 + $0x8] sm:$0xff]
        %v1546 = vld [vmem:[#allocation10 + $0x10] sm:$0xff]
        %v1547 = vld [vmem:[#allocation10 + $0x18] sm:$0xff]
        %v1548 = vld [vmem:[#allocation10 + $0x20] sm:$0xff]
        %v1549 = vld [vmem:[#allocation10 + $0x28] sm:$0xff]
        %v1550 = vld [vmem:[#allocation10 + $0x30] sm:$0xff]
        %v1551 = vld [vmem:[#allocation10 + $0x38] sm:$0xff]
        %v1552 = vld [vmem:[#allocation10 + $0x40] sm:$0xff]
        %v1553 = vld [vmem:[#allocation10 + $0x48] sm:$0xff]
        %v1554 = vld [vmem:[#allocation10 + $0x50] sm:$0xff]
        %v1555 = vld [vmem:[#allocation10 + $0x58] sm:$0xff]
        %v1556 = vld [vmem:[#allocation10 + $0x60] sm:$0xff]
        %v1557 = vld [vmem:[#allocation10 + $0x68] sm:$0xff]
        %v1558 = vld [vmem:[#allocation10 + $0x70] sm:$0xff]
        %v1559 = vld [vmem:[#allocation10 + $0x78] sm:$0xff]
        %v1561 = vlaneseq
        %v1562 = vshrl.u32 %v1561, 7
        %v1563 = vsub.s32 0, %v1562
        %v1564 = vrot.slane %v1542, %v1563
        %v1565 = vlaneseq
        %v1566 = vshrl.u32 %v1565, 7
        %v1567 = vsub.s32 1, %v1566
        %v1568 = vrot.slane %v1542, %v1567
        %v1587 = vunpack.c.l.b16 %v1544
        %v1588 = vunpack.c.h.b16 %v1544
        %v1589 = vunpack.c.l.b16 %v1545
        %v1590 = vunpack.c.h.b16 %v1545
        %v1591 = vunpack.c.l.b16 %v1546
        %v1592 = vunpack.c.h.b16 %v1546
        %v1593 = vunpack.c.l.b16 %v1547
        %v1594 = vunpack.c.h.b16 %v1547
        %v1595 = vunpack.c.l.b16 %v1548
        %v1596 = vunpack.c.h.b16 %v1548
        %v1597 = vunpack.c.l.b16 %v1549
        %v1598 = vunpack.c.h.b16 %v1549
        %v1599 = vunpack.c.l.b16 %v1550
        %v1600 = vunpack.c.h.b16 %v1550
        %v1601 = vunpack.c.l.b16 %v1551
        %v1602 = vunpack.c.h.b16 %v1551
        %v1603 = vunpack.c.l.b16 %v1552
        %v1604 = vunpack.c.h.b16 %v1552
        %v1605 = vunpack.c.l.b16 %v1553
        %v1606 = vunpack.c.h.b16 %v1553
        %v1607 = vunpack.c.l.b16 %v1554
        %v1608 = vunpack.c.h.b16 %v1554
        %v1609 = vunpack.c.l.b16 %v1555
        %v1610 = vunpack.c.h.b16 %v1555
        %v1611 = vunpack.c.l.b16 %v1556
        %v1612 = vunpack.c.h.b16 %v1556
        %v1613 = vunpack.c.l.b16 %v1557
        %v1614 = vunpack.c.h.b16 %v1557
        %v1615 = vunpack.c.l.b16 %v1558
        %v1616 = vunpack.c.h.b16 %v1558
        %v1617 = vunpack.c.l.b16 %v1559
        %v1618 = vunpack.c.h.b16 %v1559
        %v1619 = vpack.c.b16 %v1589, %v1587
        %v1620 = vpack.c.b16 %v1590, %v1588
        %v1621 = vpack.c.b16 %v1593, %v1591
        %v1622 = vpack.c.b16 %v1594, %v1592
        %v1623 = vpack.c.b16 %v1597, %v1595
        %v1624 = vpack.c.b16 %v1598, %v1596
        %v1625 = vpack.c.b16 %v1601, %v1599
        %v1626 = vpack.c.b16 %v1602, %v1600
        %v1627 = vpack.c.b16 %v1605, %v1603
        %v1628 = vpack.c.b16 %v1606, %v1604
        %v1629 = vpack.c.b16 %v1609, %v1607
        %v1630 = vpack.c.b16 %v1610, %v1608
        %v1631 = vpack.c.b16 %v1613, %v1611
        %v1632 = vpack.c.b16 %v1614, %v1612
        %v1633 = vpack.c.b16 %v1617, %v1615
        %v1634 = vpack.c.b16 %v1618, %v1616
        %1651 = vmatprep.subr.bf16.mxu0 %v1634
        %1652 = vmatpush1.bf16.msra.mxu0 %v1633
        %1653 = vmatprep.subr.bf16.mxu0 %v1632
        %1654 = vmatpush1.bf16.msra.mxu0 %v1631
        %1655 = vmatprep.subr.bf16.mxu0 %v1630
        %1656 = vmatpush1.bf16.msra.mxu0 %v1629
        %1657 = vmatprep.subr.bf16.mxu0 %v1628
        %1658 = vmatpush1.bf16.msra.mxu0 %v1627
        %1659 = vmatprep.subr.bf16.mxu0 %v1626
        %1660 = vmatpush1.bf16.msra.mxu0 %v1625
        %1661 = vmatprep.subr.bf16.mxu0 %v1624
        %1662 = vmatpush1.bf16.msra.mxu0 %v1623
        %1663 = vmatprep.subr.bf16.mxu0 %v1622
        %1664 = vmatpush1.bf16.msra.mxu0 %v1621
        %1665 = vmatprep.subr.bf16.mxu0 %v1620
        %1666 = vmatpush1.bf16.msra.mxu0 %v1619
        %1667 = vmatprep.subr.bf16.mxu0 0
        %1668 = vmatpush2.bf16.msra.mxu0 0
        %1669 = vmatprep.subr.bf16.mxu0 0
        %1670 = vmatpush2.bf16.msra.mxu0 0
        %1671 = vmatprep.subr.bf16.mxu0 0
        %1672 = vmatpush2.bf16.msra.mxu0 0
        %1673 = vmatprep.subr.bf16.mxu0 0
        %1674 = vmatpush2.bf16.msra.mxu0 0
        %1675 = vmatprep.subr.bf16.mxu0 0
        %1676 = vmatpush2.bf16.msra.mxu0 0
        %1677 = vmatprep.subr.bf16.mxu0 0
        %1678 = vmatpush2.bf16.msra.mxu0 0
        %1679 = vmatprep.subr.bf16.mxu0 0
        %1680 = vmatpush2.bf16.msra.mxu0 0
        %1681 = vmatprep.subr.bf16.mxu0 0
        %1682 = vmatpush2.bf16.msra.mxu0 0
        %1683 = vmatprep.mubr.bf16.mxu0 0
        %1684 = vmatmul.mubr.bf16.gmra.mxu0 %v1543
        %v1685 = vpop.f32.mrf.mxu0
        %v1686 = vadd.f32 %v1564, %v1685
        %v1687 = vpop.f32.mrf.mxu0
        %v1688 = vadd.f32 %v1568, %v1687
        %v1689 = vpop.f32.mrf.mxu0
        %v1690 = vadd.f32 %v1564, %v1689
        %v1691 = vpop.f32.mrf.mxu0
        %v1692 = vadd.f32 %v1568, %v1691
        %1693 = vdwg.mxu0
        %v1694 = vmax.f32 %v1686, 0.0
        %v1695 = vmax.f32 %v1688, 0.0
        %v1696 = vmax.f32 %v1690, 0.0
        %v1697 = vmax.f32 %v1692, 0.0
        %v1698 = vpack.c.bf16 %v1696, %v1694
        %v1699 = vpack.c.bf16 %v1697, %v1695
        %v1700 = vld [vmem:[#allocation12] sm:$0xf]
        %v1701 = vld [vmem:[#allocation12 + $0x4] sm:$0xf]
        %v1702 = vld [vmem:[#allocation12 + $0x8] sm:$0xf]
        %v1703 = vld [vmem:[#allocation12 + $0xc] sm:$0xf]
        %v1704 = vld [vmem:[#allocation12 + $0x10] sm:$0xf]
        %v1705 = vld [vmem:[#allocation12 + $0x14] sm:$0xf]
        %v1706 = vld [vmem:[#allocation12 + $0x18] sm:$0xf]
        %v1707 = vld [vmem:[#allocation12 + $0x1c] sm:$0xf]
        %v1708 = vld [vmem:[#allocation12 + $0x20] sm:$0xf]
        %v1709 = vld [vmem:[#allocation12 + $0x24] sm:$0xf]
        %v1710 = vld [vmem:[#allocation12 + $0x28] sm:$0xf]
        %v1711 = vld [vmem:[#allocation12 + $0x2c] sm:$0xf]
        %v1712 = vld [vmem:[#allocation12 + $0x30] sm:$0xf]
        %v1713 = vld [vmem:[#allocation12 + $0x34] sm:$0xf]
        %v1714 = vld [vmem:[#allocation12 + $0x38] sm:$0xf]
        %v1715 = vld [vmem:[#allocation12 + $0x3c] sm:$0xf]
        %v1716 = vld [vmem:[#allocation12 + $0x40] sm:$0xf]
        %v1717 = vld [vmem:[#allocation12 + $0x44] sm:$0xf]
        %v1718 = vld [vmem:[#allocation12 + $0x48] sm:$0xf]
        %v1719 = vld [vmem:[#allocation12 + $0x4c] sm:$0xf]
        %v1720 = vld [vmem:[#allocation12 + $0x50] sm:$0xf]
        %v1721 = vld [vmem:[#allocation12 + $0x54] sm:$0xf]
        %v1722 = vld [vmem:[#allocation12 + $0x58] sm:$0xf]
        %v1723 = vld [vmem:[#allocation12 + $0x5c] sm:$0xf]
        %v1724 = vld [vmem:[#allocation12 + $0x60] sm:$0xf]
        %v1725 = vld [vmem:[#allocation12 + $0x64] sm:$0xf]
        %v1726 = vld [vmem:[#allocation12 + $0x68] sm:$0xf]
        %v1727 = vld [vmem:[#allocation12 + $0x6c] sm:$0xf]
        %v1728 = vld [vmem:[#allocation12 + $0x70] sm:$0xf]
        %v1729 = vld [vmem:[#allocation12 + $0x74] sm:$0xf]
        %v1730 = vld [vmem:[#allocation12 + $0x78] sm:$0xf]
        %v1731 = vld [vmem:[#allocation12 + $0x7c] sm:$0xf]
        %v1732 = vlaneseq
        %v1733 = vshrl.u32 %v1732, 7
        %v1734 = vsub.s32 4, %v1733
        %v1735 = vrot.slane %v498, %v1734
        %v1768 = vunpack.c.l.b16 %v1700
        %v1769 = vunpack.c.l.b16 %v1701
        %v1770 = vunpack.c.l.b16 %v1702
        %v1771 = vunpack.c.l.b16 %v1703
        %v1772 = vunpack.c.l.b16 %v1704
        %v1773 = vunpack.c.l.b16 %v1705
        %v1774 = vunpack.c.l.b16 %v1706
        %v1775 = vunpack.c.l.b16 %v1707
        %v1776 = vunpack.c.l.b16 %v1708
        %v1777 = vunpack.c.l.b16 %v1709
        %v1778 = vunpack.c.l.b16 %v1710
        %v1779 = vunpack.c.l.b16 %v1711
        %v1780 = vunpack.c.l.b16 %v1712
        %v1781 = vunpack.c.l.b16 %v1713
        %v1782 = vunpack.c.l.b16 %v1714
        %v1783 = vunpack.c.l.b16 %v1715
        %v1784 = vunpack.c.l.b16 %v1716
        %v1785 = vunpack.c.l.b16 %v1717
        %v1786 = vunpack.c.l.b16 %v1718
        %v1787 = vunpack.c.l.b16 %v1719
        %v1788 = vunpack.c.l.b16 %v1720
        %v1789 = vunpack.c.l.b16 %v1721
        %v1790 = vunpack.c.l.b16 %v1722
        %v1791 = vunpack.c.l.b16 %v1723
        %v1792 = vunpack.c.l.b16 %v1724
        %v1793 = vunpack.c.l.b16 %v1725
        %v1794 = vunpack.c.l.b16 %v1726
        %v1795 = vunpack.c.l.b16 %v1727
        %v1796 = vunpack.c.l.b16 %v1728
        %v1797 = vunpack.c.l.b16 %v1729
        %v1798 = vunpack.c.l.b16 %v1730
        %v1799 = vunpack.c.l.b16 %v1731
        %v1800 = vpack.c.b16 %v1769, %v1768
        %v1801 = vpack.c.b16 %v1771, %v1770
        %v1802 = vpack.c.b16 %v1773, %v1772
        %v1803 = vpack.c.b16 %v1775, %v1774
        %v1804 = vpack.c.b16 %v1777, %v1776
        %v1805 = vpack.c.b16 %v1779, %v1778
        %v1806 = vpack.c.b16 %v1781, %v1780
        %v1807 = vpack.c.b16 %v1783, %v1782
        %v1808 = vpack.c.b16 %v1785, %v1784
        %v1809 = vpack.c.b16 %v1787, %v1786
        %v1810 = vpack.c.b16 %v1789, %v1788
        %v1811 = vpack.c.b16 %v1791, %v1790
        %v1812 = vpack.c.b16 %v1793, %v1792
        %v1813 = vpack.c.b16 %v1795, %v1794
        %v1814 = vpack.c.b16 %v1797, %v1796
        %v1815 = vpack.c.b16 %v1799, %v1798
        %1832 = vmatprep.subr.bf16.mxu0 0
        %1833 = vmatpush1.bf16.msra.mxu0 %v1807
        %1834 = vmatprep.subr.bf16.mxu0 0
        %1835 = vmatpush1.bf16.msra.mxu0 %v1806
        %1836 = vmatprep.subr.bf16.mxu0 0
        %1837 = vmatpush1.bf16.msra.mxu0 %v1805
        %1838 = vmatprep.subr.bf16.mxu0 0
        %1839 = vmatpush1.bf16.msra.mxu0 %v1804
        %1840 = vmatprep.subr.bf16.mxu0 0
        %1841 = vmatpush1.bf16.msra.mxu0 %v1803
        %1842 = vmatprep.subr.bf16.mxu0 0
        %1843 = vmatpush1.bf16.msra.mxu0 %v1802
        %1844 = vmatprep.subr.bf16.mxu0 0
        %1845 = vmatpush1.bf16.msra.mxu0 %v1801
        %1846 = vmatprep.subr.bf16.mxu0 0
        %1847 = vmatpush1.bf16.msra.mxu0 %v1800
        %1848 = vmatprep.subr.bf16.mxu0 0
        %1849 = vmatpush2.bf16.msra.mxu0 %v1815
        %1850 = vmatprep.subr.bf16.mxu0 0
        %1851 = vmatpush2.bf16.msra.mxu0 %v1814
        %1852 = vmatprep.subr.bf16.mxu0 0
        %1853 = vmatpush2.bf16.msra.mxu0 %v1813
        %1854 = vmatprep.subr.bf16.mxu0 0
        %1855 = vmatpush2.bf16.msra.mxu0 %v1812
        %1856 = vmatprep.subr.bf16.mxu0 0
        %1857 = vmatpush2.bf16.msra.mxu0 %v1811
        %1858 = vmatprep.subr.bf16.mxu0 0
        %1859 = vmatpush2.bf16.msra.mxu0 %v1810
        %1860 = vmatprep.subr.bf16.mxu0 0
        %1861 = vmatpush2.bf16.msra.mxu0 %v1809
        %1862 = vmatprep.subr.bf16.mxu0 0
        %1863 = vmatpush2.bf16.msra.mxu0 %v1808
        %1864 = vmatprep.mubr.bf16.mxu0 %v1699
        %1865 = vmatmul.mubr.bf16.gmra.mxu0 %v1698
        %v1866 = vpop.f32.mrf.mxu0
        %v1867 = vadd.f32 %v1735, %v1866
        %v1868 = vpop.f32.mrf.mxu0
        %v1869 = vpop.f32.mrf.mxu0
        %v1870 = vadd.f32 %v1735, %v1869
        %v1871 = vpop.f32.mrf.mxu0
        %1872 = vdwg.mxu0
        %v1873 = vadd.f32 %v1540, %v1867
        %v1874 = vadd.f32 %v1541, %v1870
        %1875 = vadd.xlane.f32.xlu0 %v1873
        %v1876 = vpop.xlane.xlu0 %1875
        %1877 = vadd.xlane.f32.xlu0 %v1874
        %v1878 = vpop.xlane.xlu0 %1877
        %v1879 = vmul.f32 %v1876, %v1511
        %v1880 = vmul.f32 %v1878, %v1511
        %v1881 = vsub.f32 %v1873, %v1879
        %v1882 = vsub.f32 %v1874, %v1880
        %v1883 = vmul.f32 %v1881, %v1881
        %v1884 = vmul.f32 %v1882, %v1882
        %1885 = vadd.xlane.f32.xlu0 %v1883
        %v1886 = vpop.xlane.xlu0 %1885
        %1887 = vadd.xlane.f32.xlu0 %v1884
        %v1888 = vpop.xlane.xlu0 %1887
        %v1889 = vmul.f32 %v1886, %v1511
        %v1890 = vmul.f32 %v1888, %v1511
        %v1891 = vadd.f32 %v1889, 1e-05
        %v1892 = vadd.f32 %v1890, 1e-05
        %v1893 = vrsqrt.pop %v1891
        %v1894 = vrsqrt.pop %v1892
        %v1895 = vmul.f32 %v1881, %v1893
        %v1896 = vmul.f32 %v1882, %v1894
        %v1897 = vmul.f32 %v1895, %v1533
        %v1898 = vmul.f32 %v1896, %v1533
        %v1899 = vadd.f32 %v1897, %v1539
        %v1900 = vadd.f32 %v1898, %v1539
        %1901 = vst [vmem:[%s491] sm:$0xff] %v1899
        %1902 = vst [vmem:[%s491 + $0x8] sm:$0xff] %v1900
        %s1903 = smul.u32 2, %s33
        %p1904 = scmp.lt.s32.totalorder %s32, 1
        %s1905 = scalar_select %p1904, %s32, 1
        %p1906 = scmp.lt.s32.totalorder %s1903, 1
        %s1907 = scalar_select %p1906, %s1903, 1
        %s1908 = smul.addr %s1905, 2
        %s1909 = sadd.s32 %s1907, %s1908
        %s1910 = smul.addr %s1909, 8
        %s1911 = scalar_lea.vmem %s9, %s1910
        // Predicated region
        $region85: #{transformer_forward.2} parent=55 // pred_check
          %p1912 = pneg %p261
        $region86: #{transformer_forward.2} parent=55 // pred_check_branch
          %1914 = sbr.rel (%p1912) target = $region88
        $region87: #{transformer_forward.2} parent=55 // pred_region
          %s1915 = smul.u32 2, %s33
        $region88: #{transformer_forward.2} parent=55 // pred_fallthru
          _
      $region56: #{transformer_forward.2} parent=5 // pred_fallthru
        _
      %p1916 = scmp.le.s32.totalorder 2, %s23
      // Predicated region
      $region89: #{transformer_forward.2} parent=5 // pred_check
        %p1917 = pneg %p1916
      $region90: #{transformer_forward.2} parent=5 // pred_check_branch
        %1919 = sbr.rel (%p1917) target = $region92
      $region91: #{transformer_forward.2} parent=5 // pred_region
        %s1920 = ssub.s32 %s23, 2
        // Predicated region
        $region93: #{transformer_forward.2} parent=91 // pred_check
          %p1921 = pneg %p267
        $region94: #{transformer_forward.2} parent=91 // pred_check_branch
          %1923 = sbr.rel (%p1921) target = $region96
        $region95: #{transformer_forward.2} parent=91 // pred_region
          %s1924 = smul.u32 2, %s35
          %p1925 = scmp.lt.s32.totalorder %s34, 1
          %s1926 = scalar_select %p1925, %s34, 1
          %p1927 = scmp.lt.s32.totalorder %s1924, 1
          %s1928 = scalar_select %p1927, %s1924, 1
          %s1929 = smul.addr %s1926, 2
          %s1930 = sadd.s32 %s1928, %s1929
          %s1931 = smul.addr %s1930, 8
          %s1932 = scalar_lea.vmem %s9, %s1931
        $region96: #{transformer_forward.2} parent=91 // pred_fallthru
          _
      $region92: #{transformer_forward.2} parent=5 // pred_fallthru
        _
    $region6: #{transformer_forward.2} parent=1 // loop_footer
      %s27 = sadd.s32 1, %s23
    $region7: #{transformer_forward.2} parent=1 // loop_footer_branch
      %22 = sbr.rel target = $region3
    $region8: #{transformer_forward.2} parent=1 // loop_exit
      _
    %1933 = vsyncpa [#allocation3], 1
    %s1934 = scalar_lea.sflag [#allocation3], 1
    %1935 = vsyncpa %s1934, 1
    %1936 = vsyncpa [#allocation5], 1
    %s1937 = scalar_lea.sflag [#allocation5], 1
    %1938 = vsyncpa %s1937, 1
    %1939 = vsyncpa [#allocation8], 1
    %1940 = vsyncpa [#allocation11], 1

// kernel: transformer_forward.3
$region0: #{transformer_forward.3}
  #allocation0 [shape = 'u32[]', space=smem, size = 0x4, offset = 0x4, fixed_abs, tag = 'smem constant byte address 0x4 - core index']
  #allocation1 [shape = 'u32[144,128]{1,0:T(1,128)}', space=vmem, size = 0x12000, scoped, tag = 'internal scratch']
  %s0 = inlined_call_operand.vmem [shape: f32[2,16,128], index: 0, kind: input, shape index: {}, may-alias: {0,1}]
  %s1 = inlined_call_operand.vmem [shape: f32[2,16,128], index: 1, kind: input, shape index: {}, may-alias: {0,1}]
  %s2 = inlined_call_operand.vmem [shape: f32[2,16,128], index: 2, kind: input, shape index: {}]
  %s3 = inlined_call_operand.vmem [shape: bf16[128,128], index: 3, kind: input, shape index: {}]
  %s4 = inlined_call_operand.vmem [shape: bf16[128,256], index: 4, kind: input, shape index: {}]
  %s5 = inlined_call_operand.hbm [shape: bf16[128,128], index: 5, kind: input, shape index: {}]
  %s6 = inlined_call_operand.hbm [shape: bf16[128,128], index: 6, kind: input, shape index: {}]
  %s7 = inlined_call_operand.vmem [shape: bf16[128,256], index: 7, kind: input, shape index: {}]
  %s8 = inlined_call_operand.hbm [shape: bf16[128,128], index: 8, kind: input, shape index: {}]
  %s9 = inlined_call_operand.vmem [shape: bf16[128,256], index: 9, kind: input, shape index: {}]
  %s10 = inlined_call_operand.vmem [shape: bf16[256,128], index: 10, kind: input, shape index: {}]
  %s11 = inlined_call_operand.hbm [shape: f32[11,128], index: 11, kind: input, shape index: {}]
  %s12 = inlined_call_operand.vmem [shape: f32[1,256], index: 12, kind: input, shape index: {}]
  %s13 = inlined_call_operand.hbm [shape: f32[2,16,128], index: 13, kind: output, shape index: {}]
  %s14 = sld [smem:[#allocation0]]
  $region101: #{transformer_forward.3} parent=0
    _
  %s16 = ssub.s32 1, %s14
  %s17 = scalar_select 0, %s16, %s14
  $region1: #{transformer_forward.3} parent=0
    #allocation2 [shape = 'u8[32768]{0}', space=vmem, size = 0x8000, scoped, tag = 'input window, operand 5, single buffered']
    #allocation3 [shape = 's32[2]{0}', space=sflag, size = 0x8, scoped, tag = 'scoped memory for transformer_forward.3']
    #allocation4 [shape = 's32[2]{0}', space=sflag, size = 0x8, scoped, tag = 'scoped memory for transformer_forward.3']
    #allocation5 [shape = 'u8[32768]{0}', space=vmem, size = 0x8000, scoped, tag = 'input window, operand 6, single buffered']
    #allocation6 [shape = 's32[1]{0}', space=sflag, size = 0x4, scoped, tag = 'scoped memory for transformer_forward.3']
    #allocation7 [shape = 'u8[32768]{0}', space=vmem, size = 0x8000, scoped, tag = 'input window, operand 8, single buffered']
    #allocation8 [shape = 'u8[8192]{0}', space=vmem, size = 0x2000, scoped, tag = 'input window, operand 11, single buffered']
    #allocation9 [shape = 's32[1]{0}', space=sflag, size = 0x4, scoped, tag = 'scoped memory for transformer_forward.3']
    #allocation10 [shape = 'u8[16384]{0}', space=vmem, size = 0x4000, scoped, tag = 'output window, operand 0']
    %18 = vsyncpa [#allocation3], 0
    %19 = vsyncpa [#allocation6], 0
    %20 = vsyncpa [#allocation9], 0
    %21 = vsyncpa [#allocation4], 0
    %s22 = scalar_lea.sflag [#allocation4], 1
    %23 = vsyncpa %s22, 0
    loop: start=0, step=1, limit=4
    $region2: #{transformer_forward.3} parent=1 // loop_pre_header
      _
    $region3: #{transformer_forward.3} parent=1 // loop_header
      %s25 = sphi 0, %s29
      %p26 = scmp.ge.s32.totalorder %s25, 4
      %s32 = sphi 0, %s44
      %s33 = sphi 0, %s40
      %s34 = sphi 0, %s32
      %s35 = sphi 0, %s33
      %s36 = sphi 0, %s34
      %s37 = sphi 0, %s35
      %s49 = sphi 0, %s51
      %s52 = sphi 0, %s49
      %s53 = sphi 0, %s52
      %s69 = sphi 0, %s53
      %s75 = sphi 0, %s77
      %s78 = sphi 0, %s75
      %s79 = sphi 0, %s78
      %s95 = sphi 0, %s79
      %s101 = sphi 0, %s103
      %s104 = sphi 0, %s101
      %s105 = sphi 0, %s104
      %s121 = sphi 0, %s105
      %s125 = sphi 0, %s125
      %s127 = sphi 0, %s125
      %s128 = sphi 0, %s127
      %s142 = sphi 0, %s128
      %s146 = sphi 0, %s146
      %s148 = sphi 0, %s146
      %s149 = sphi 0, %s148
      %s163 = sphi 0, %s149
      %s167 = sphi 0, %s167
      %s169 = sphi 0, %s167
      %s170 = sphi 0, %s169
      %s184 = sphi 0, %s170
      %s188 = sphi 0, %s188
      %s190 = sphi 0, %s188
      %s191 = sphi 0, %s190
      %s205 = sphi 0, %s191
      %s209 = sphi 0, %s209
      %s211 = sphi 0, %s209
      %s212 = sphi 0, %s211
      %s226 = sphi 0, %s212
      %s230 = sphi 0, %s230
      %s232 = sphi 0, %s230
      %s233 = sphi 0, %s232
      %s247 = sphi 0, %s233
      %s251 = sphi 0, %s251
      %s253 = sphi 0, %s251
      %s254 = sphi 0, %s253
      %s268 = sphi 0, %s254
      %s272 = sphi 0, %s272
      %s274 = sphi 0, %s272
      %s275 = sphi 0, %s274
      %s289 = sphi 0, %s275
      %s293 = sphi 0, %s293
      %s295 = sphi 0, %s293
      %s296 = sphi 0, %s295
      %s310 = sphi 0, %s296
      %s314 = sphi 0, %s314
      %s316 = sphi 0, %s314
      %s317 = sphi 0, %s316
      %s331 = sphi 0, %s317
      %s339 = sphi 0, %s341
      %s342 = sphi 0, %s339
      %s343 = sphi 0, %s342
      %s359 = sphi 0, %s343
    $region4: #{transformer_forward.3} parent=1 // loop_header_branch
      %28 = sbr.rel (%p26) target = $region8
    $region5: #{transformer_forward.3} parent=1 // loop_body
      %s30 = ssub.s32 %s25, 1
      %s31 = ssub.s32 %s25, 2
      %s38 = sadd.s32 1, %s33
      %p39 = scmp.ge.s32.totalorder %s38, 1
      %s40 = scalar_select %p39, 0, %s38
      %s41 = sadd.s32 1, %s32
      %s42 = scalar_select %p39, %s41, %s32
      %p43 = scmp.ge.s32.totalorder %s42, 2
      %s44 = scalar_select %p43, 0, %s42
      %s45 = ssub.s32 %s32, %s44
      %s46 = ssub.s32 %s33, %s40
      %s47 = sor.u32 %s45, %s46
      %p48 = scmp.eq.s32.totalorder %s47, 0
      %s50 = sadd.s32 %s49, 1
      %s51 = scalar_select %p48, %s49, %s50
      %p54 = pneg %p48
      %p55 = scmp.eq.s32.totalorder %s25, 1
      %p56 = por %p54, %p55
      %p57 = scmp.ne.s32.totalorder %s49, %s52
      %p58 = scmp.eq.s32.totalorder %s25, 0
      %p59 = por %p57, %p58
      %p60 = scmp.ne.s32.totalorder %s49, %s52
      %p61 = scmp.eq.s32.totalorder %s30, 1
      %p62 = por %p60, %p61
      %p63 = scmp.ne.s32.totalorder %s52, %s53
      %p64 = scmp.eq.s32.totalorder %s30, 0
      %p65 = por %p63, %p64
      %p66 = scmp.ne.s32.totalorder %s52, %s53
      %p67 = scmp.eq.s32.totalorder %s31, 1
      %p68 = por %p66, %p67
      %p70 = scmp.ne.s32.totalorder %s53, %s69
      %p71 = scmp.eq.s32.totalorder %s31, 0
      %p72 = por %p70, %p71
      %s73 = ssub.s32 %s32, %s44
      %p74 = scmp.eq.s32.totalorder %s73, 0
      %s76 = sadd.s32 %s75, 1
      %s77 = scalar_select %p74, %s75, %s76
      %p80 = pneg %p74
      %p81 = scmp.eq.s32.totalorder %s25, 1
      %p82 = por %p80, %p81
      %p83 = scmp.ne.s32.totalorder %s75, %s78
      %p84 = scmp.eq.s32.totalorder %s25, 0
      %p85 = por %p83, %p84
      %p86 = scmp.ne.s32.totalorder %s75, %s78
      %p87 = scmp.eq.s32.totalorder %s30, 1
      %p88 = por %p86, %p87
      %p89 = scmp.ne.s32.totalorder %s78, %s79
      %p90 = scmp.eq.s32.totalorder %s30, 0
      %p91 = por %p89, %p90
      %p92 = scmp.ne.s32.totalorder %s78, %s79
      %p93 = scmp.eq.s32.totalorder %s31, 1
      %p94 = por %p92, %p93
      %p96 = scmp.ne.s32.totalorder %s79, %s95
      %p97 = scmp.eq.s32.totalorder %s31, 0
      %p98 = por %p96, %p97
      %s99 = ssub.s32 %s32, %s44
      %p100 = scmp.eq.s32.totalorder %s99, 0
      %s102 = sadd.s32 %s101, 1
      %s103 = scalar_select %p100, %s101, %s102
      %p106 = pneg %p100
      %p107 = scmp.eq.s32.totalorder %s25, 1
      %p108 = por %p106, %p107
      %p109 = scmp.ne.s32.totalorder %s101, %s104
      %p110 = scmp.eq.s32.totalorder %s25, 0
      %p111 = por %p109, %p110
      %p112 = scmp.ne.s32.totalorder %s101, %s104
      %p113 = scmp.eq.s32.totalorder %s30, 1
      %p114 = por %p112, %p113
      %p115 = scmp.ne.s32.totalorder %s104, %s105
      %p116 = scmp.eq.s32.totalorder %s30, 0
      %p117 = por %p115, %p116
      %p118 = scmp.ne.s32.totalorder %s104, %s105
      %p119 = scmp.eq.s32.totalorder %s31, 1
      %p120 = por %p118, %p119
      %p122 = scmp.ne.s32.totalorder %s105, %s121
      %p123 = scmp.eq.s32.totalorder %s31, 0
      %p124 = por %p122, %p123
      %s126 = sadd.s32 %s125, 1
      %p129 = scmp.eq.s32.totalorder %s25, 1
      %p130 = scmp.ne.s32.totalorder %s125, %s127
      %p131 = scmp.eq.s32.totalorder %s25, 0
      %p132 = por %p130, %p131
      %p133 = scmp.ne.s32.totalorder %s125, %s127
      %p134 = scmp.eq.s32.totalorder %s30, 1
      %p135 = por %p133, %p134
      %p136 = scmp.ne.s32.totalorder %s127, %s128
      %p137 = scmp.eq.s32.totalorder %s30, 0
      %p138 = por %p136, %p137
      %p139 = scmp.ne.s32.totalorder %s127, %s128
      %p140 = scmp.eq.s32.totalorder %s31, 1
      %p141 = por %p139, %p140
      %p143 = scmp.ne.s32.totalorder %s128, %s142
      %p144 = scmp.eq.s32.totalorder %s31, 0
      %p145 = por %p143, %p144
      %s147 = sadd.s32 %s146, 1
      %p150 = scmp.eq.s32.totalorder %s25, 1
      %p151 = scmp.ne.s32.totalorder %s146, %s148
      %p152 = scmp.eq.s32.totalorder %s25, 0
      %p153 = por %p151, %p152
      %p154 = scmp.ne.s32.totalorder %s146, %s148
      %p155 = scmp.eq.s32.totalorder %s30, 1
      %p156 = por %p154, %p155
      %p157 = scmp.ne.s32.totalorder %s148, %s149
      %p158 = scmp.eq.s32.totalorder %s30, 0
      %p159 = por %p157, %p158
      %p160 = scmp.ne.s32.totalorder %s148, %s149
      %p161 = scmp.eq.s32.totalorder %s31, 1
      %p162 = por %p160, %p161
      %p164 = scmp.ne.s32.totalorder %s149, %s163
      %p165 = scmp.eq.s32.totalorder %s31, 0
      %p166 = por %p164, %p165
      %s168 = sadd.s32 %s167, 1
      %p171 = scmp.eq.s32.totalorder %s25, 1
      %p172 = scmp.ne.s32.totalorder %s167, %s169
      %p173 = scmp.eq.s32.totalorder %s25, 0
      %p174 = por %p172, %p173
      %p175 = scmp.ne.s32.totalorder %s167, %s169
      %p176 = scmp.eq.s32.totalorder %s30, 1
      %p177 = por %p175, %p176
      %p178 = scmp.ne.s32.totalorder %s169, %s170
      %p179 = scmp.eq.s32.totalorder %s30, 0
      %p180 = por %p178, %p179
      %p181 = scmp.ne.s32.totalorder %s169, %s170
      %p182 = scmp.eq.s32.totalorder %s31, 1
      %p183 = por %p181, %p182
      %p185 = scmp.ne.s32.totalorder %s170, %s184
      %p186 = scmp.eq.s32.totalorder %s31, 0
      %p187 = por %p185, %p186
      %s189 = sadd.s32 %s188, 1
      %p192 = scmp.eq.s32.totalorder %s25, 1
      %p193 = scmp.ne.s32.totalorder %s188, %s190
      %p194 = scmp.eq.s32.totalorder %s25, 0
      %p195 = por %p193, %p194
      %p196 = scmp.ne.s32.totalorder %s188, %s190
      %p197 = scmp.eq.s32.totalorder %s30, 1
      %p198 = por %p196, %p197
      %p199 = scmp.ne.s32.totalorder %s190, %s191
      %p200 = scmp.eq.s32.totalorder %s30, 0
      %p201 = por %p199, %p200
      %p202 = scmp.ne.s32.totalorder %s190, %s191
      %p203 = scmp.eq.s32.totalorder %s31, 1
      %p204 = por %p202, %p203
      %p206 = scmp.ne.s32.totalorder %s191, %s205
      %p207 = scmp.eq.s32.totalorder %s31, 0
      %p208 = por %p206, %p207
      %s210 = sadd.s32 %s209, 1
      %p213 = scmp.eq.s32.totalorder %s25, 1
      %p214 = scmp.ne.s32.totalorder %s209, %s211
      %p215 = scmp.eq.s32.totalorder %s25, 0
      %p216 = por %p214, %p215
      %p217 = scmp.ne.s32.totalorder %s209, %s211
      %p218 = scmp.eq.s32.totalorder %s30, 1
      %p219 = por %p217, %p218
      %p220 = scmp.ne.s32.totalorder %s211, %s212
      %p221 = scmp.eq.s32.totalorder %s30, 0
      %p222 = por %p220, %p221
      %p223 = scmp.ne.s32.totalorder %s211, %s212
      %p224 = scmp.eq.s32.totalorder %s31, 1
      %p225 = por %p223, %p224
      %p227 = scmp.ne.s32.totalorder %s212, %s226
      %p228 = scmp.eq.s32.totalorder %s31, 0
      %p229 = por %p227, %p228
      %s231 = sadd.s32 %s230, 1
      %p234 = scmp.eq.s32.totalorder %s25, 1
      %p235 = scmp.ne.s32.totalorder %s230, %s232
      %p236 = scmp.eq.s32.totalorder %s25, 0
      %p237 = por %p235, %p236
      %p238 = scmp.ne.s32.totalorder %s230, %s232
      %p239 = scmp.eq.s32.totalorder %s30, 1
      %p240 = por %p238, %p239
      %p241 = scmp.ne.s32.totalorder %s232, %s233
      %p242 = scmp.eq.s32.totalorder %s30, 0
      %p243 = por %p241, %p242
      %p244 = scmp.ne.s32.totalorder %s232, %s233
      %p245 = scmp.eq.s32.totalorder %s31, 1
      %p246 = por %p244, %p245
      %p248 = scmp.ne.s32.totalorder %s233, %s247
      %p249 = scmp.eq.s32.totalorder %s31, 0
      %p250 = por %p248, %p249
      %s252 = sadd.s32 %s251, 1
      %p255 = scmp.eq.s32.totalorder %s25, 1
      %p256 = scmp.ne.s32.totalorder %s251, %s253
      %p257 = scmp.eq.s32.totalorder %s25, 0
      %p258 = por %p256, %p257
      %p259 = scmp.ne.s32.totalorder %s251, %s253
      %p260 = scmp.eq.s32.totalorder %s30, 1
      %p261 = por %p259, %p260
      %p262 = scmp.ne.s32.totalorder %s253, %s254
      %p263 = scmp.eq.s32.totalorder %s30, 0
      %p264 = por %p262, %p263
      %p265 = scmp.ne.s32.totalorder %s253, %s254
      %p266 = scmp.eq.s32.totalorder %s31, 1
      %p267 = por %p265, %p266
      %p269 = scmp.ne.s32.totalorder %s254, %s268
      %p270 = scmp.eq.s32.totalorder %s31, 0
      %p271 = por %p269, %p270
      %s273 = sadd.s32 %s272, 1
      %p276 = scmp.eq.s32.totalorder %s25, 1
      %p277 = scmp.ne.s32.totalorder %s272, %s274
      %p278 = scmp.eq.s32.totalorder %s25, 0
      %p279 = por %p277, %p278
      %p280 = scmp.ne.s32.totalorder %s272, %s274
      %p281 = scmp.eq.s32.totalorder %s30, 1
      %p282 = por %p280, %p281
      %p283 = scmp.ne.s32.totalorder %s274, %s275
      %p284 = scmp.eq.s32.totalorder %s30, 0
      %p285 = por %p283, %p284
      %p286 = scmp.ne.s32.totalorder %s274, %s275
      %p287 = scmp.eq.s32.totalorder %s31, 1
      %p288 = por %p286, %p287
      %p290 = scmp.ne.s32.totalorder %s275, %s289
      %p291 = scmp.eq.s32.totalorder %s31, 0
      %p292 = por %p290, %p291
      %s294 = sadd.s32 %s293, 1
      %p297 = scmp.eq.s32.totalorder %s25, 1
      %p298 = scmp.ne.s32.totalorder %s293, %s295
      %p299 = scmp.eq.s32.totalorder %s25, 0
      %p300 = por %p298, %p299
      %p301 = scmp.ne.s32.totalorder %s293, %s295
      %p302 = scmp.eq.s32.totalorder %s30, 1
      %p303 = por %p301, %p302
      %p304 = scmp.ne.s32.totalorder %s295, %s296
      %p305 = scmp.eq.s32.totalorder %s30, 0
      %p306 = por %p304, %p305
      %p307 = scmp.ne.s32.totalorder %s295, %s296
      %p308 = scmp.eq.s32.totalorder %s31, 1
      %p309 = por %p307, %p308
      %p311 = scmp.ne.s32.totalorder %s296, %s310
      %p312 = scmp.eq.s32.totalorder %s31, 0
      %p313 = por %p311, %p312
      %s315 = sadd.s32 %s314, 1
      %p318 = scmp.eq.s32.totalorder %s25, 1
      %p319 = scmp.ne.s32.totalorder %s314, %s316
      %p320 = scmp.eq.s32.totalorder %s25, 0
      %p321 = por %p319, %p320
      %p322 = scmp.ne.s32.totalorder %s314, %s316
      %p323 = scmp.eq.s32.totalorder %s30, 1
      %p324 = por %p322, %p323
      %p325 = scmp.ne.s32.totalorder %s316, %s317
      %p326 = scmp.eq.s32.totalorder %s30, 0
      %p327 = por %p325, %p326
      %p328 = scmp.ne.s32.totalorder %s316, %s317
      %p329 = scmp.eq.s32.totalorder %s31, 1
      %p330 = por %p328, %p329
      %p332 = scmp.ne.s32.totalorder %s317, %s331
      %p333 = scmp.eq.s32.totalorder %s31, 0
      %p334 = por %p332, %p333
      %s335 = ssub.s32 %s32, %s44
      %s336 = ssub.s32 %s33, %s40
      %s337 = sor.u32 %s335, %s336
      %p338 = scmp.eq.s32.totalorder %s337, 0
      %s340 = sadd.s32 %s339, 1
      %s341 = scalar_select %p338, %s339, %s340
      %p344 = pneg %p338
      %p345 = scmp.eq.s32.totalorder %s25, 1
      %p346 = por %p344, %p345
      %p347 = scmp.ne.s32.totalorder %s339, %s342
      %p348 = scmp.eq.s32.totalorder %s25, 0
      %p349 = por %p347, %p348
      %p350 = scmp.ne.s32.totalorder %s339, %s342
      %p351 = scmp.eq.s32.totalorder %s30, 1
      %p352 = por %p350, %p351
      %p353 = scmp.ne.s32.totalorder %s342, %s343
      %p354 = scmp.eq.s32.totalorder %s30, 0
      %p355 = por %p353, %p354
      %p356 = scmp.ne.s32.totalorder %s342, %s343
      %p357 = scmp.eq.s32.totalorder %s31, 1
      %p358 = por %p356, %p357
      %p360 = scmp.ne.s32.totalorder %s343, %s359
      %p361 = scmp.eq.s32.totalorder %s31, 0
      %p362 = por %p360, %p361
      %p363 = scmp.le.s32.totalorder 1, %s25
      %p364 = scmp.lt.s32.totalorder %s25, 3
      %p365 = pnand %p363, %p364
      %p366 = pneg %p365
      // Predicated region
      $region9: #{transformer_forward.3} parent=5 // pred_check
        _
      $region10: #{transformer_forward.3} parent=5 // pred_check_branch
        %368 = sbr.rel (%p365) target = $region12
      $region11: #{transformer_forward.3} parent=5 // pred_region
        %s369 = ssub.s32 %s25, 1
        // Predicated region
        $region13: #{transformer_forward.3} parent=11 // pred_check
          %p370 = pneg %p138
        $region14: #{transformer_forward.3} parent=11 // pred_check_branch
          %372 = sbr.rel (%p370) target = $region16
        $region15: #{transformer_forward.3} parent=11 // pred_region
          _
        $region16: #{transformer_forward.3} parent=11 // pred_fallthru
          _
        // Predicated region
        $region17: #{transformer_forward.3} parent=11 // pred_check
          %p373 = pneg %p159
        $region18: #{transformer_forward.3} parent=11 // pred_check_branch
          %375 = sbr.rel (%p373) target = $region20
        $region19: #{transformer_forward.3} parent=11 // pred_region
          _
        $region20: #{transformer_forward.3} parent=11 // pred_fallthru
          _
        // Predicated region
        $region21: #{transformer_forward.3} parent=11 // pred_check
          %p376 = pneg %p180
        $region22: #{transformer_forward.3} parent=11 // pred_check_branch
          %378 = sbr.rel (%p376) target = $region24
        $region23: #{transformer_forward.3} parent=11 // pred_region
          %s380 = ssub.s32 1024, 1024
          %381 = vsyncadd [#allocation3], %s380
          %s382 = sshll.u32 [#allocation2], 4
          %s383 = int_to_ptr.vmem [resolvable:$true] %s382
          %388 = dma.hbm_to_vmem [thread:$0]  %s5, 1024, %s383, [#allocation3], 64, 64, 4
        $region24: #{transformer_forward.3} parent=11 // pred_fallthru
          _
        // Predicated region
        $region25: #{transformer_forward.3} parent=11 // pred_check
          %p389 = pneg %p201
        $region26: #{transformer_forward.3} parent=11 // pred_check_branch
          %391 = sbr.rel (%p389) target = $region28
        $region27: #{transformer_forward.3} parent=11 // pred_region
          %s393 = ssub.s32 1024, 1024
          %394 = vsyncadd [#allocation6], %s393
          %s395 = sshll.u32 [#allocation5], 4
          %s396 = int_to_ptr.vmem [resolvable:$true] %s395
          %401 = dma.hbm_to_vmem [thread:$0]  %s6, 1024, %s396, [#allocation6], 64, 64, 4
        $region28: #{transformer_forward.3} parent=11 // pred_fallthru
          _
        // Predicated region
        $region29: #{transformer_forward.3} parent=11 // pred_check
          %p402 = pneg %p222
        $region30: #{transformer_forward.3} parent=11 // pred_check_branch
          %404 = sbr.rel (%p402) target = $region32
        $region31: #{transformer_forward.3} parent=11 // pred_region
          _
        $region32: #{transformer_forward.3} parent=11 // pred_fallthru
          _
        // Predicated region
        $region33: #{transformer_forward.3} parent=11 // pred_check
          %p405 = pneg %p243
        $region34: #{transformer_forward.3} parent=11 // pred_check_branch
          %407 = sbr.rel (%p405) target = $region36
        $region35: #{transformer_forward.3} parent=11 // pred_region
          %s409 = ssub.s32 1024, 1024
          %410 = vsyncadd [#allocation6], %s409
          %s411 = sshll.u32 [#allocation7], 4
          %s412 = int_to_ptr.vmem [resolvable:$true] %s411
          %417 = dma.hbm_to_vmem [thread:$0]  %s8, 1024, %s412, [#allocation6], 64, 64, 4
        $region36: #{transformer_forward.3} parent=11 // pred_fallthru
          _
        // Predicated region
        $region37: #{transformer_forward.3} parent=11 // pred_check
          %p418 = pneg %p264
        $region38: #{transformer_forward.3} parent=11 // pred_check_branch
          %420 = sbr.rel (%p418) target = $region40
        $region39: #{transformer_forward.3} parent=11 // pred_region
          _
        $region40: #{transformer_forward.3} parent=11 // pred_fallthru
          _
        // Predicated region
        $region41: #{transformer_forward.3} parent=11 // pred_check
          %p421 = pneg %p285
        $region42: #{transformer_forward.3} parent=11 // pred_check_branch
          %423 = sbr.rel (%p421) target = $region44
        $region43: #{transformer_forward.3} parent=11 // pred_region
          _
        $region44: #{transformer_forward.3} parent=11 // pred_fallthru
          _
        // Predicated region
        $region45: #{transformer_forward.3} parent=11 // pred_check
          %p424 = pneg %p306
        $region46: #{transformer_forward.3} parent=11 // pred_check_branch
          %426 = sbr.rel (%p424) target = $region48
        $region47: #{transformer_forward.3} parent=11 // pred_region
          %s428 = ssub.s32 256, 256
          %429 = vsyncadd [#allocation9], %s428
          %s430 = sshll.u32 [#allocation8], 4
          %s431 = int_to_ptr.vmem [resolvable:$true] %s430
          %436 = dma.hbm_to_vmem [thread:$0]  %s11, 256, %s431, [#allocation9], 128, 128, 8
        $region48: #{transformer_forward.3} parent=11 // pred_fallthru
          _
        // Predicated region
        $region49: #{transformer_forward.3} parent=11 // pred_check
          %p437 = pneg %p327
        $region50: #{transformer_forward.3} parent=11 // pred_check_branch
          %439 = sbr.rel (%p437) target = $region52
        $region51: #{transformer_forward.3} parent=11 // pred_region
          _
        $region52: #{transformer_forward.3} parent=11 // pred_fallthru
          _
      $region12: #{transformer_forward.3} parent=5 // pred_fallthru
        _
      %p440 = scmp.lt.s32.totalorder %s25, 2
      // Predicated region
      $region53: #{transformer_forward.3} parent=5 // pred_check
        %p441 = pneg %p440
      $region54: #{transformer_forward.3} parent=5 // pred_check_branch
        %443 = sbr.rel (%p441) target = $region56
      $region55: #{transformer_forward.3} parent=5 // pred_region
        // Predicated region
        $region57: #{transformer_forward.3} parent=55 // pred_check
          %p444 = pneg %p59
        $region58: #{transformer_forward.3} parent=55 // pred_check_branch
          %446 = sbr.rel (%p444) target = $region60
        $region59: #{transformer_forward.3} parent=55 // pred_region
          %s447 = smul.u32 2, %s33
          %p448 = scmp.lt.s32.totalorder %s32, 1
          %s449 = scalar_select %p448, %s32, 1
          %p450 = scmp.lt.s32.totalorder %s447, 1
          %s451 = scalar_select %p450, %s447, 1
          %s452 = smul.addr %s449, 2
          %s453 = sadd.s32 %s451, %s452
          %s454 = smul.addr %s453, 8
          %s455 = scalar_lea.vmem %s0, %s454
          %s456 = smul.u32 2, %s33
        $region60: #{transformer_forward.3} parent=55 // pred_fallthru
          _
        // Predicated region
        $region61: #{transformer_forward.3} parent=55 // pred_check
          %p457 = pneg %p85
        $region62: #{transformer_forward.3} parent=55 // pred_check_branch
          %459 = sbr.rel (%p457) target = $region64
        $region63: #{transformer_forward.3} parent=55 // pred_region
          %p460 = scmp.lt.s32.totalorder %s32, 1
          %s461 = scalar_select %p460, %s32, 1
          %s462 = smul.addr %s461, 2
          %s463 = smul.addr %s462, 8
          %s464 = scalar_lea.vmem %s1, %s463
        $region64: #{transformer_forward.3} parent=55 // pred_fallthru
          _
        // Predicated region
        $region65: #{transformer_forward.3} parent=55 // pred_check
          %p465 = pneg %p111
        $region66: #{transformer_forward.3} parent=55 // pred_check_branch
          %467 = sbr.rel (%p465) target = $region68
        $region67: #{transformer_forward.3} parent=55 // pred_region
          %p468 = scmp.lt.s32.totalorder %s32, 1
          %s469 = scalar_select %p468, %s32, 1
          %s470 = smul.addr %s469, 2
          %s471 = smul.addr %s470, 8
          %s472 = scalar_lea.vmem %s2, %s471
        $region68: #{transformer_forward.3} parent=55 // pred_fallthru
          _
      $region56: #{transformer_forward.3} parent=5 // pred_fallthru
        _
      %p473 = scmp.le.s32.totalorder 1, %s25
      %p474 = scmp.lt.s32.totalorder %s25, 3
      %p475 = pnand %p473, %p474
      %p476 = pneg %p475
      // Predicated region
      $region69: #{transformer_forward.3} parent=5 // pred_check
        _
      $region70: #{transformer_forward.3} parent=5 // pred_check_branch
        %478 = sbr.rel (%p475) target = $region72
      $region71: #{transformer_forward.3} parent=5 // pred_region
        %s479 = ssub.s32 %s25, 1
        // Predicated region
        $region73: #{transformer_forward.3} parent=71 // pred_check
          %p480 = pneg %p180
        $region74: #{transformer_forward.3} parent=71 // pred_check_branch
          %482 = sbr.rel (%p480) target = $region76
        $region75: #{transformer_forward.3} parent=71 // pred_region
          %483 = dma.done [#allocation3], 1024
        $region76: #{transformer_forward.3} parent=71 // pred_fallthru
          _
        // Predicated region
        $region77: #{transformer_forward.3} parent=71 // pred_check
          %p484 = pneg %p201
        $region78: #{transformer_forward.3} parent=71 // pred_check_branch
          %486 = sbr.rel (%p484) target = $region80
        $region79: #{transformer_forward.3} parent=71 // pred_region
          %487 = dma.done [#allocation6], 1024
        $region80: #{transformer_forward.3} parent=71 // pred_fallthru
          _
        // Predicated region
        $region81: #{transformer_forward.3} parent=71 // pred_check
          %p488 = pneg %p243
        $region82: #{transformer_forward.3} parent=71 // pred_check_branch
          %490 = sbr.rel (%p488) target = $region84
        $region83: #{transformer_forward.3} parent=71 // pred_region
          %491 = dma.done [#allocation6], 1024
        $region84: #{transformer_forward.3} parent=71 // pred_fallthru
          _
        // Predicated region
        $region85: #{transformer_forward.3} parent=71 // pred_check
          %p492 = pneg %p306
        $region86: #{transformer_forward.3} parent=71 // pred_check_branch
          %494 = sbr.rel (%p492) target = $region88
        $region87: #{transformer_forward.3} parent=71 // pred_region
          %495 = dma.done [#allocation9], 256
        $region88: #{transformer_forward.3} parent=71 // pred_fallthru
          _
        %s496 = smul.u32 2, %s35
        %p497 = scmp.lt.s32.totalorder %s34, 1
        %s498 = scalar_select %p497, %s34, 1
        %p499 = scmp.lt.s32.totalorder %s496, 1
        %s500 = scalar_select %p499, %s496, 1
        %s501 = smul.addr %s498, 2
        %s502 = sadd.s32 %s500, %s501
        %s503 = smul.addr %s502, 8
        %s504 = scalar_lea.vmem %s0, %s503
        %p505 = pneg %p65
        %p506 = pneg %p62
        %p507 = scmp.lt.s32.totalorder %s34, 1
        %s508 = scalar_select %p507, %s34, 1
        %s509 = smul.addr %s508, 2
        %s510 = smul.addr %s509, 8
        %s511 = scalar_lea.vmem %s1, %s510
        %p512 = pneg %p91
        %p513 = pneg %p88
        %p514 = scmp.lt.s32.totalorder %s34, 1
        %s515 = scalar_select %p514, %s34, 1
        %s516 = smul.addr %s515, 2
        %s517 = smul.addr %s516, 8
        %s518 = scalar_lea.vmem %s2, %s517
        %p519 = pneg %p117
        %p520 = pneg %p114
        %p521 = pneg %p138
        %p522 = pneg %p135
        %p523 = pneg %p159
        %p524 = pneg %p156
        %p525 = pneg %p180
        %p526 = pneg %p177
        %p527 = pneg %p201
        %p528 = pneg %p198
        %p529 = pneg %p222
        %p530 = pneg %p219
        %p531 = pneg %p243
        %p532 = pneg %p240
        %p533 = pneg %p264
        %p534 = pneg %p261
        %p535 = pneg %p285
        %p536 = pneg %p282
        %p537 = pneg %p306
        %p538 = pneg %p303
        %p539 = pneg %p327
        %p540 = pneg %p324
        %p541 = pneg %p355
        %p542 = pneg %p352
        %s543 = sand.u32 %s342, 1
        %s544 = scalar_lea.sflag [#allocation4], %s543
        %s545 = sand.u32 %s342, 1
        %s546 = smul.addr %s545, 16
        %s547 = scalar_lea.vmem [#allocation10], %s546
        %s548 = smul.u32 2, %s35
        %p549 = scmp.lt.s32.totalorder %s34, 1
        %s550 = scalar_select %p549, %s34, 1
        %p551 = scmp.lt.s32.totalorder %s548, 1
        %s552 = scalar_select %p551, %s548, 1
        %s553 = smul.addr %s550, 2
        %s554 = sadd.s32 %s552, %s553
        %s555 = smul.addr %s554, 8
        %s556 = scalar_lea.vmem %s0, %s555
        %s557 = smul.u32 2, %s35
        %p558 = scmp.lt.s32.totalorder %s34, 1
        %s559 = scalar_select %p558, %s34, 1
        %s560 = smul.addr %s559, 2
        %s561 = smul.addr %s560, 8
        %s562 = scalar_lea.vmem %s1, %s561
        %p563 = scmp.lt.s32.totalorder %s34, 1
        %s564 = scalar_select %p563, %s34, 1
        %s565 = smul.addr %s564, 2
        %s566 = smul.addr %s565, 8
        %s567 = scalar_lea.vmem %s2, %s566
        %s568 = smul.u32 2, %s35
        %v570 = vld [vmem:[%s556] sm:$0xff]
        %v571 = vld [vmem:[%s556 + $0x8] sm:$0xff]
        %v572 = vld [vmem:[%s562] sm:$0xff]
        %v573 = vld [vmem:[%s562 + $0x8] sm:$0xff]
        %v574 = vld [vmem:[%s567] sm:$0xff]
        %v575 = vld [vmem:[%s567 + $0x8] sm:$0xff]
        %v576 = vld [vmem:[#allocation8] sm:$0xff]
        %v577 = vld [vmem:[#allocation8 + $0x8] sm:$0x7]
        %s578 = smul.u32 %s35, 16
        %v579 = vpack.c.bf16 %v571, %v570
        %v580 = vpack.c.bf16 %v573, %v572
        %v581 = vld [vmem:[%s3] sm:$0xf]
        %v582 = vld [vmem:[%s3 + $0x4] sm:$0xf]
        %v583 = vld [vmem:[%s3 + $0x8] sm:$0xf]
        %v584 = vld [vmem:[%s3 + $0xc] sm:$0xf]
        %v585 = vld [vmem:[%s3 + $0x10] sm:$0xf]
        %v586 = vld [vmem:[%s3 + $0x14] sm:$0xf]
        %v587 = vld [vmem:[%s3 + $0x18] sm:$0xf]
        %v588 = vld [vmem:[%s3 + $0x1c] sm:$0xf]
        %v589 = vld [vmem:[%s3 + $0x20] sm:$0xf]
        %v590 = vld [vmem:[%s3 + $0x24] sm:$0xf]
        %v591 = vld [vmem:[%s3 + $0x28] sm:$0xf]
        %v592 = vld [vmem:[%s3 + $0x2c] sm:$0xf]
        %v593 = vld [vmem:[%s3 + $0x30] sm:$0xf]
        %v594 = vld [vmem:[%s3 + $0x34] sm:$0xf]
        %v595 = vld [vmem:[%s3 + $0x38] sm:$0xf]
        %v596 = vld [vmem:[%s3 + $0x3c] sm:$0xf]
        %v597 = vlaneseq
        %v598 = vshrl.u32 %v597, 7
        %v599 = vsub.s32 0, %v598
        %v600 = vrot.slane %v576, %v599
        %v617 = vunpack.c.l.b16 %v581
        %v618 = vunpack.c.l.b16 %v582
        %v619 = vunpack.c.l.b16 %v583
        %v620 = vunpack.c.l.b16 %v584
        %v621 = vunpack.c.l.b16 %v585
        %v622 = vunpack.c.l.b16 %v586
        %v623 = vunpack.c.l.b16 %v587
        %v624 = vunpack.c.l.b16 %v588
        %v625 = vunpack.c.l.b16 %v589
        %v626 = vunpack.c.l.b16 %v590
        %v627 = vunpack.c.l.b16 %v591
        %v628 = vunpack.c.l.b16 %v592
        %v629 = vunpack.c.l.b16 %v593
        %v630 = vunpack.c.l.b16 %v594
        %v631 = vunpack.c.l.b16 %v595
        %v632 = vunpack.c.l.b16 %v596
        %v633 = vpack.c.b16 %v618, %v617
        %v634 = vpack.c.b16 %v620, %v619
        %v635 = vpack.c.b16 %v622, %v621
        %v636 = vpack.c.b16 %v624, %v623
        %v637 = vpack.c.b16 %v626, %v625
        %v638 = vpack.c.b16 %v628, %v627
        %v639 = vpack.c.b16 %v630, %v629
        %v640 = vpack.c.b16 %v632, %v631
        %649 = vmatprep.subr.bf16.mxu0 0
        %650 = vmatpush1.bf16.msra.mxu0 %v640
        %651 = vmatprep.subr.bf16.mxu0 0
        %652 = vmatpush1.bf16.msra.mxu0 %v639
        %653 = vmatprep.subr.bf16.mxu0 0
        %654 = vmatpush1.bf16.msra.mxu0 %v638
        %655 = vmatprep.subr.bf16.mxu0 0
        %656 = vmatpush1.bf16.msra.mxu0 %v637
        %657 = vmatprep.subr.bf16.mxu0 0
        %658 = vmatpush1.bf16.msra.mxu0 %v636
        %659 = vmatprep.subr.bf16.mxu0 0
        %660 = vmatpush1.bf16.msra.mxu0 %v635
        %661 = vmatprep.subr.bf16.mxu0 0
        %662 = vmatpush1.bf16.msra.mxu0 %v634
        %663 = vmatprep.subr.bf16.mxu0 0
        %664 = vmatpush1.bf16.msra.mxu0 %v633
        %665 = vmatprep.subr.bf16.mxu0 0
        %666 = vmatpush2.bf16.msra.mxu0 0
        %667 = vmatprep.subr.bf16.mxu0 0
        %668 = vmatpush2.bf16.msra.mxu0 0
        %669 = vmatprep.subr.bf16.mxu0 0
        %670 = vmatpush2.bf16.msra.mxu0 0
        %671 = vmatprep.subr.bf16.mxu0 0
        %672 = vmatpush2.bf16.msra.mxu0 0
        %673 = vmatprep.subr.bf16.mxu0 0
        %674 = vmatpush2.bf16.msra.mxu0 0
        %675 = vmatprep.subr.bf16.mxu0 0
        %676 = vmatpush2.bf16.msra.mxu0 0
        %677 = vmatprep.subr.bf16.mxu0 0
        %678 = vmatpush2.bf16.msra.mxu0 0
        %679 = vmatprep.subr.bf16.mxu0 0
        %680 = vmatpush2.bf16.msra.mxu0 0
        %681 = vmatprep.mubr.bf16.mxu0 0
        %682 = vmatmul.mubr.bf16.gmra.mxu0 %v579
        %v683 = vpop.f32.mrf.mxu0
        %v684 = vadd.f32 %v600, %v683
        %v685 = vpop.f32.mrf.mxu0
        %v686 = vpop.f32.mrf.mxu0
        %v687 = vadd.f32 %v600, %v686
        %v688 = vpop.f32.mrf.mxu0
        %689 = vdwg.mxu0
        %v690 = vmul.f32 %v684, 0.17677669
        %v691 = vmul.f32 %v687, 0.17677669
        %v692 = vld [vmem:[%s4] sm:$0xff]
        %v693 = vld [vmem:[%s4 + $0x8] sm:$0xff]
        %v694 = vld [vmem:[%s4 + $0x10] sm:$0xff]
        %v695 = vld [vmem:[%s4 + $0x18] sm:$0xff]
        %v696 = vld [vmem:[%s4 + $0x20] sm:$0xff]
        %v697 = vld [vmem:[%s4 + $0x28] sm:$0xff]
        %v698 = vld [vmem:[%s4 + $0x30] sm:$0xff]
        %v699 = vld [vmem:[%s4 + $0x38] sm:$0xff]
        %v700 = vld [vmem:[%s4 + $0x40] sm:$0xff]
        %v701 = vld [vmem:[%s4 + $0x48] sm:$0xff]
        %v702 = vld [vmem:[%s4 + $0x50] sm:$0xff]
        %v703 = vld [vmem:[%s4 + $0x58] sm:$0xff]
        %v704 = vld [vmem:[%s4 + $0x60] sm:$0xff]
        %v705 = vld [vmem:[%s4 + $0x68] sm:$0xff]
        %v706 = vld [vmem:[%s4 + $0x70] sm:$0xff]
        %v707 = vld [vmem:[%s4 + $0x78] sm:$0xff]
        %v724 = vunpack.c.l.b16 %v692
        %v725 = vunpack.c.h.b16 %v692
        %v726 = vunpack.c.l.b16 %v693
        %v727 = vunpack.c.h.b16 %v693
        %v728 = vunpack.c.l.b16 %v694
        %v729 = vunpack.c.h.b16 %v694
        %v730 = vunpack.c.l.b16 %v695
        %v731 = vunpack.c.h.b16 %v695
        %v732 = vunpack.c.l.b16 %v696
        %v733 = vunpack.c.h.b16 %v696
        %v734 = vunpack.c.l.b16 %v697
        %v735 = vunpack.c.h.b16 %v697
        %v736 = vunpack.c.l.b16 %v698
        %v737 = vunpack.c.h.b16 %v698
        %v738 = vunpack.c.l.b16 %v699
        %v739 = vunpack.c.h.b16 %v699
        %v740 = vunpack.c.l.b16 %v700
        %v741 = vunpack.c.h.b16 %v700
        %v742 = vunpack.c.l.b16 %v701
        %v743 = vunpack.c.h.b16 %v701
        %v744 = vunpack.c.l.b16 %v702
        %v745 = vunpack.c.h.b16 %v702
        %v746 = vunpack.c.l.b16 %v703
        %v747 = vunpack.c.h.b16 %v703
        %v748 = vunpack.c.l.b16 %v704
        %v749 = vunpack.c.h.b16 %v704
        %v750 = vunpack.c.l.b16 %v705
        %v751 = vunpack.c.h.b16 %v705
        %v752 = vunpack.c.l.b16 %v706
        %v753 = vunpack.c.h.b16 %v706
        %v754 = vunpack.c.l.b16 %v707
        %v755 = vunpack.c.h.b16 %v707
        %v756 = vpack.c.b16 %v726, %v724
        %v757 = vpack.c.b16 %v727, %v725
        %v758 = vpack.c.b16 %v730, %v728
        %v759 = vpack.c.b16 %v731, %v729
        %v760 = vpack.c.b16 %v734, %v732
        %v761 = vpack.c.b16 %v735, %v733
        %v762 = vpack.c.b16 %v738, %v736
        %v763 = vpack.c.b16 %v739, %v737
        %v764 = vpack.c.b16 %v742, %v740
        %v765 = vpack.c.b16 %v743, %v741
        %v766 = vpack.c.b16 %v746, %v744
        %v767 = vpack.c.b16 %v747, %v745
        %v768 = vpack.c.b16 %v750, %v748
        %v769 = vpack.c.b16 %v751, %v749
        %v770 = vpack.c.b16 %v754, %v752
        %v771 = vpack.c.b16 %v755, %v753
        %788 = vmatprep.subr.bf16.mxu0 %v771
        %789 = vmatpush1.bf16.msra.mxu0 %v770
        %790 = vmatprep.subr.bf16.mxu0 %v769
        %791 = vmatpush1.bf16.msra.mxu0 %v768
        %792 = vmatprep.subr.bf16.mxu0 %v767
        %793 = vmatpush1.bf16.msra.mxu0 %v766
        %794 = vmatprep.subr.bf16.mxu0 %v765
        %795 = vmatpush1.bf16.msra.mxu0 %v764
        %796 = vmatprep.subr.bf16.mxu0 %v763
        %797 = vmatpush1.bf16.msra.mxu0 %v762
        %798 = vmatprep.subr.bf16.mxu0 %v761
        %799 = vmatpush1.bf16.msra.mxu0 %v760
        %800 = vmatprep.subr.bf16.mxu0 %v759
        %801 = vmatpush1.bf16.msra.mxu0 %v758
        %802 = vmatprep.subr.bf16.mxu0 %v757
        %803 = vmatpush1.bf16.msra.mxu0 %v756
        %804 = vmatprep.subr.bf16.mxu0 0
        %805 = vmatpush2.bf16.msra.mxu0 0
        %806 = vmatprep.subr.bf16.mxu0 0
        %807 = vmatpush2.bf16.msra.mxu0 0
        %808 = vmatprep.subr.bf16.mxu0 0
        %809 = vmatpush2.bf16.msra.mxu0 0
        %810 = vmatprep.subr.bf16.mxu0 0
        %811 = vmatpush2.bf16.msra.mxu0 0
        %812 = vmatprep.subr.bf16.mxu0 0
        %813 = vmatpush2.bf16.msra.mxu0 0
        %814 = vmatprep.subr.bf16.mxu0 0
        %815 = vmatpush2.bf16.msra.mxu0 0
        %816 = vmatprep.subr.bf16.mxu0 0
        %817 = vmatpush2.bf16.msra.mxu0 0
        %818 = vmatprep.subr.bf16.mxu0 0
        %819 = vmatpush2.bf16.msra.mxu0 0
        %820 = vmatprep.mubr.bf16.mxu0 0
        %821 = vmatmul.mubr.bf16.gmra.mxu0 %v580
        %v822 = vpop.f32.mrf.mxu0
        %v823 = vadd.f32 0.0, %v822
        %v824 = vpop.f32.mrf.mxu0
        %v825 = vadd.f32 0.0, %v824
        %v826 = vpop.f32.mrf.mxu0
        %v827 = vadd.f32 0.0, %v826
        %v828 = vpop.f32.mrf.mxu0
        %v829 = vadd.f32 0.0, %v828
        %830 = vdwg.mxu0
        %v831 = vlaneseq
        %v832 = vshrl.u32 %v831, 7
        %v833 = vsub.s32 1, %v832
        %v834 = vrot.slane %v576, %v833
        %v835 = vadd.f32 %v823, %v834
        %v836 = vadd.f32 %v827, %v834
        %v837 = vlaneseq
        %v838 = vshrl.u32 %v837, 7
        %v839 = vsub.s32 2, %v838
        %v840 = vrot.slane %v576, %v839
        %v841 = vadd.f32 %v825, %v840
        %v842 = vadd.f32 %v829, %v840
        %v843 = vpack.c.bf16 %v691, %v690
        %v844 = vpack.c.bf16 %v836, %v835
        %v845 = vpack.c.bf16 %v842, %v841
        %v846 = vlaneseq
        %v847 = vshrl.u32 %v846, 7
        %v848 = vadd.s32 %v847, 8
        %v849 = vstv %s578
        %v850 = vadd.s32 %v849, %v847
        %v851 = vadd.s32 %v849, %v848
        %v852 = vlaneseq
        %v853 = vand.u32 %v852, 127
        %vm854 = vcmp.le.s32.totalorder %v853, %v850
        %vm855 = vcmp.le.s32.totalorder %v853, %v851
        %v856 = vlaneseq
        %v857 = vshrl.u32 %v856, 7
        %v858 = vsub.s32 3, %v857
        %v859 = vrot.slane %v576, %v858
        %v860 = vadd.f32 %v859, 0.0
        %v861 = vld [vmem:[#allocation2] sm:$0xf]
        %v862 = vld [vmem:[#allocation2 + $0x4] sm:$0xf]
        %v863 = vld [vmem:[#allocation2 + $0x8] sm:$0xf]
        %v864 = vld [vmem:[#allocation2 + $0xc] sm:$0xf]
        %vm865 = vcmask 261120
        %v867 = vsel %vm865, %v843, 0
        %v870 = vsel %vm865, %v844, 0
        %872 = vmatprep.subr.bf16.mxu0 0
        %873 = vmatpush1.bf16.xpose.msra.mxu0 0
        %874 = vmatprep.subr.bf16.mxu0 0
        %875 = vmatpush1.bf16.xpose.msra.mxu0 0
        %876 = vmatprep.subr.bf16.mxu0 0
        %877 = vmatpush1.bf16.xpose.msra.mxu0 0
        %878 = vmatprep.subr.bf16.mxu0 0
        %879 = vmatpush1.bf16.xpose.msra.mxu0 0
        %880 = vmatprep.subr.bf16.mxu0 0
        %881 = vmatpush1.bf16.xpose.msra.mxu0 0
        %882 = vmatprep.subr.bf16.mxu0 0
        %883 = vmatpush1.bf16.xpose.msra.mxu0 0
        %884 = vmatprep.subr.bf16.mxu0 0
        %885 = vmatpush1.bf16.xpose.msra.mxu0 0
        %886 = vmatprep.subr.bf16.mxu0 0
        %887 = vmatpush1.bf16.xpose.msra.mxu0 %v870
        %888 = vmatprep.subr.bf16.mxu0 0
        %889 = vmatpush2.bf16.xpose.msra.mxu0 0
        %890 = vmatprep.subr.bf16.mxu0 0
        %891 = vmatpush2.bf16.xpose.msra.mxu0 0
        %892 = vmatprep.subr.bf16.mxu0 0
        %893 = vmatpush2.bf16.xpose.msra.mxu0 0
        %894 = vmatprep.subr.bf16.mxu0 0
        %895 = vmatpush2.bf16.xpose.msra.mxu0 0
        %896 = vmatprep.subr.bf16.mxu0 0
        %897 = vmatpush2.bf16.xpose.msra.mxu0 0
        %898 = vmatprep.subr.bf16.mxu0 0
        %899 = vmatpush2.bf16.xpose.msra.mxu0 0
        %900 = vmatprep.subr.bf16.mxu0 0
        %901 = vmatpush2.bf16.xpose.msra.mxu0 0
        %902 = vmatprep.subr.bf16.mxu0 0
        %903 = vmatpush2.bf16.xpose.msra.mxu0 0
        %904 = vmatprep.mubr.bf16.mxu0 0
        %905 = vmatmul.mubr.bf16.gmra.mxu0 %v867
        %v906 = vpop.f32.mrf.mxu0
        %v907 = vadd.f32 0.0, %v906
        %v908 = vpop.f32.mrf.mxu0
        %v909 = vpop.f32.mrf.mxu0
        %v910 = vadd.f32 0.0, %v909
        %v911 = vpop.f32.mrf.mxu0
        %912 = vdwg.mxu0
        %v913 = vsel %vm854, %v907, -1e+30
        %v914 = vsel %vm855, %v910, -1e+30
        %vm915 = vcmask 130048
        %v916 = vsel %vm915, %v913, -inf
        %917 = vmax.xlane.f32.xlu0 %v916
        %v918 = vpop.xlane.xlu0 %917
        %v919 = vsel %vm915, %v914, -inf
        %920 = vmax.xlane.f32.xlu0 %v919
        %v921 = vpop.xlane.xlu0 %920
        %v922 = vsub.f32 %v913, %v918
        %v923 = vsub.f32 %v914, %v921
        %v924 = vmul.f32 %v922, 1.442695
        %v925 = vpow.pop %v924
        %v926 = vmul.f32 %v923, 1.442695
        %v927 = vpow.pop %v926
        %v928 = vsel %vm915, %v925, 0.0
        %929 = vadd.xlane.f32.xlu0 %v928
        %v930 = vpop.xlane.xlu0 %929
        %v931 = vsel %vm915, %v927, 0.0
        %932 = vadd.xlane.f32.xlu0 %v931
        %v933 = vpop.xlane.xlu0 %932
        %v934 = vrcp.pop %v930
        %v935 = vrcp.pop %v933
        %v936 = vmul.f32 %v925, %v934
        %v937 = vmul.f32 %v927, %v935
        %v938 = vpack.c.bf16 %v937, %v936
        %v940 = vsel %vm915, %v938, 0
        %942 = vmatprep.subr.bf16.mxu0 0
        %943 = vmatpush1.bf16.msra.mxu0 0
        %944 = vmatprep.subr.bf16.mxu0 0
        %945 = vmatpush1.bf16.msra.mxu0 0
        %946 = vmatprep.subr.bf16.mxu0 0
        %947 = vmatpush1.bf16.msra.mxu0 0
        %948 = vmatprep.subr.bf16.mxu0 0
        %949 = vmatpush1.bf16.msra.mxu0 0
        %950 = vmatprep.subr.bf16.mxu0 0
        %951 = vmatpush1.bf16.msra.mxu0 0
        %952 = vmatprep.subr.bf16.mxu0 0
        %953 = vmatpush1.bf16.msra.mxu0 0
        %954 = vmatprep.subr.bf16.mxu0 0
        %955 = vmatpush1.bf16.msra.mxu0 0
        %956 = vmatprep.subr.bf16.mxu0 0
        %957 = vmatpush1.bf16.msra.mxu0 %v845
        %958 = vmatprep.subr.bf16.mxu0 0
        %959 = vmatpush2.bf16.msra.mxu0 0
        %960 = vmatprep.subr.bf16.mxu0 0
        %961 = vmatpush2.bf16.msra.mxu0 0
        %962 = vmatprep.subr.bf16.mxu0 0
        %963 = vmatpush2.bf16.msra.mxu0 0
        %964 = vmatprep.subr.bf16.mxu0 0
        %965 = vmatpush2.bf16.msra.mxu0 0
        %966 = vmatprep.subr.bf16.mxu0 0
        %967 = vmatpush2.bf16.msra.mxu0 0
        %968 = vmatprep.subr.bf16.mxu0 0
        %969 = vmatpush2.bf16.msra.mxu0 0
        %970 = vmatprep.subr.bf16.mxu0 0
        %971 = vmatpush2.bf16.msra.mxu0 0
        %972 = vmatprep.subr.bf16.mxu0 0
        %973 = vmatpush2.bf16.msra.mxu0 0
        %974 = vmatprep.mubr.bf16.mxu0 0
        %975 = vmatmul.mubr.bf16.gmra.mxu0 %v940
        %v976 = vpop.f32.mrf.mxu0
        %v977 = vadd.f32 0.0, %v976
        %v978 = vpop.f32.mrf.mxu0
        %v979 = vpop.f32.mrf.mxu0
        %v980 = vadd.f32 0.0, %v979
        %v981 = vpop.f32.mrf.mxu0
        %982 = vdwg.mxu0
        %v983 = vpack.c.bf16 %v980, %v977
        %v988 = vunpack.c.l.b16 %v861
        %v989 = vunpack.c.l.b16 %v862
        %v990 = vunpack.c.l.b16 %v863
        %v991 = vunpack.c.l.b16 %v864
        %v992 = vpack.c.b16 %v989, %v988
        %v993 = vpack.c.b16 %v991, %v990
        %v997 = vsel %vm865, %v983, 0
        %999 = vmatprep.subr.bf16.mxu0 0
        %1000 = vmatpush1.bf16.msra.mxu0 0
        %1001 = vmatprep.subr.bf16.mxu0 0
        %1002 = vmatpush1.bf16.msra.mxu0 0
        %1003 = vmatprep.subr.bf16.mxu0 0
        %1004 = vmatpush1.bf16.msra.mxu0 0
        %1005 = vmatprep.subr.bf16.mxu0 0
        %1006 = vmatpush1.bf16.msra.mxu0 0
        %1007 = vmatprep.subr.bf16.mxu0 0
        %1008 = vmatpush1.bf16.msra.mxu0 0
        %1009 = vmatprep.subr.bf16.mxu0 0
        %1010 = vmatpush1.bf16.msra.mxu0 0
        %1011 = vmatprep.subr.bf16.mxu0 0
        %1012 = vmatpush1.bf16.msra.mxu0 %v993
        %1013 = vmatprep.subr.bf16.mxu0 0
        %1014 = vmatpush1.bf16.msra.mxu0 %v992
        %1015 = vmatprep.subr.bf16.mxu0 0
        %1016 = vmatpush2.bf16.msra.mxu0 0
        %1017 = vmatprep.subr.bf16.mxu0 0
        %1018 = vmatpush2.bf16.msra.mxu0 0
        %1019 = vmatprep.subr.bf16.mxu0 0
        %1020 = vmatpush2.bf16.msra.mxu0 0
        %1021 = vmatprep.subr.bf16.mxu0 0
        %1022 = vmatpush2.bf16.msra.mxu0 0
        %1023 = vmatprep.subr.bf16.mxu0 0
        %1024 = vmatpush2.bf16.msra.mxu0 0
        %1025 = vmatprep.subr.bf16.mxu0 0
        %1026 = vmatpush2.bf16.msra.mxu0 0
        %1027 = vmatprep.subr.bf16.mxu0 0
        %1028 = vmatpush2.bf16.msra.mxu0 0
        %1029 = vmatprep.subr.bf16.mxu0 0
        %1030 = vmatpush2.bf16.msra.mxu0 0
        %1031 = vmatprep.mubr.bf16.mxu0 0
        %1032 = vmatmul.mubr.bf16.gmra.mxu0 %v997
        %v1033 = vpop.f32.mrf.mxu0
        %v1034 = vadd.f32 0.0, %v1033
        %v1035 = vpop.f32.mrf.mxu0
        %v1036 = vpop.f32.mrf.mxu0
        %v1037 = vadd.f32 0.0, %v1036
        %v1038 = vpop.f32.mrf.mxu0
        %1039 = vdwg.mxu0
        %v1040 = vadd.f32 %v860, %v1034
        %v1041 = vadd.f32 %v860, %v1037
        %v1042 = vld [vmem:[#allocation2 + $0x10] sm:$0xf]
        %v1043 = vld [vmem:[#allocation2 + $0x14] sm:$0xf]
        %v1044 = vld [vmem:[#allocation2 + $0x18] sm:$0xf]
        %v1045 = vld [vmem:[#allocation2 + $0x1c] sm:$0xf]
        %1047 = vrot.lane.b32.xlu0 %v843, 96
        %v1048 = vpop.permute.xlu0 %1047
        %1050 = vrot.lane.b32.xlu0 %v844, 96
        %v1051 = vpop.permute.xlu0 %1050
        %v1053 = vsel %vm865, %v1048, 0
        %v1056 = vsel %vm865, %v1051, 0
        %1058 = vmatprep.subr.bf16.mxu0 0
        %1059 = vmatpush1.bf16.xpose.msra.mxu0 0
        %1060 = vmatprep.subr.bf16.mxu0 0
        %1061 = vmatpush1.bf16.xpose.msra.mxu0 0
        %1062 = vmatprep.subr.bf16.mxu0 0
        %1063 = vmatpush1.bf16.xpose.msra.mxu0 0
        %1064 = vmatprep.subr.bf16.mxu0 0
        %1065 = vmatpush1.bf16.xpose.msra.mxu0 0
        %1066 = vmatprep.subr.bf16.mxu0 0
        %1067 = vmatpush1.bf16.xpose.msra.mxu0 0
        %1068 = vmatprep.subr.bf16.mxu0 0
        %1069 = vmatpush1.bf16.xpose.msra.mxu0 0
        %1070 = vmatprep.subr.bf16.mxu0 0
        %1071 = vmatpush1.bf16.xpose.msra.mxu0 0
        %1072 = vmatprep.subr.bf16.mxu0 0
        %1073 = vmatpush1.bf16.xpose.msra.mxu0 %v1056
        %1074 = vmatprep.subr.bf16.mxu0 0
        %1075 = vmatpush2.bf16.xpose.msra.mxu0 0
        %1076 = vmatprep.subr.bf16.mxu0 0
        %1077 = vmatpush2.bf16.xpose.msra.mxu0 0
        %1078 = vmatprep.subr.bf16.mxu0 0
        %1079 = vmatpush2.bf16.xpose.msra.mxu0 0
        %1080 = vmatprep.subr.bf16.mxu0 0
        %1081 = vmatpush2.bf16.xpose.msra.mxu0 0
        %1082 = vmatprep.subr.bf16.mxu0 0
        %1083 = vmatpush2.bf16.xpose.msra.mxu0 0
        %1084 = vmatprep.subr.bf16.mxu0 0
        %1085 = vmatpush2.bf16.xpose.msra.mxu0 0
        %1086 = vmatprep.subr.bf16.mxu0 0
        %1087 = vmatpush2.bf16.xpose.msra.mxu0 0
        %1088 = vmatprep.subr.bf16.mxu0 0
        %1089 = vmatpush2.bf16.xpose.msra.mxu0 0
        %1090 = vmatprep.mubr.bf16.mxu0 0
        %1091 = vmatmul.mubr.bf16.gmra.mxu0 %v1053
        %v1092 = vpop.f32.mrf.mxu0
        %v1093 = vadd.f32 0.0, %v1092
        %v1094 = vpop.f32.mrf.mxu0
        %v1095 = vpop.f32.mrf.mxu0
        %v1096 = vadd.f32 0.0, %v1095
        %v1097 = vpop.f32.mrf.mxu0
        %1098 = vdwg.mxu0
        %v1099 = vsel %vm854, %v1093, -1e+30
        %v1100 = vsel %vm855, %v1096, -1e+30
        %v1101 = vsel %vm915, %v1099, -inf
        %1102 = vmax.xlane.f32.xlu0 %v1101
        %v1103 = vpop.xlane.xlu0 %1102
        %v1104 = vsel %vm915, %v1100, -inf
        %1105 = vmax.xlane.f32.xlu0 %v1104
        %v1106 = vpop.xlane.xlu0 %1105
        %v1107 = vsub.f32 %v1099, %v1103
        %v1108 = vsub.f32 %v1100, %v1106
        %v1109 = vmul.f32 %v1107, 1.442695
        %v1110 = vpow.pop %v1109
        %v1111 = vmul.f32 %v1108, 1.442695
        %v1112 = vpow.pop %v1111
        %v1113 = vsel %vm915, %v1110, 0.0
        %1114 = vadd.xlane.f32.xlu0 %v1113
        %v1115 = vpop.xlane.xlu0 %1114
        %v1116 = vsel %vm915, %v1112, 0.0
        %1117 = vadd.xlane.f32.xlu0 %v1116
        %v1118 = vpop.xlane.xlu0 %1117
        %v1119 = vrcp.pop %v1115
        %v1120 = vrcp.pop %v1118
        %v1121 = vmul.f32 %v1110, %v1119
        %v1122 = vmul.f32 %v1112, %v1120
        %v1123 = vpack.c.bf16 %v1122, %v1121
        %1125 = vrot.lane.b32.xlu0 %v845, 96
        %v1126 = vpop.permute.xlu0 %1125
        %v1129 = vsel %vm915, %v1123, 0
        %1131 = vmatprep.subr.bf16.mxu0 0
        %1132 = vmatpush1.bf16.msra.mxu0 0
        %1133 = vmatprep.subr.bf16.mxu0 0
        %1134 = vmatpush1.bf16.msra.mxu0 0
        %1135 = vmatprep.subr.bf16.mxu0 0
        %1136 = vmatpush1.bf16.msra.mxu0 0
        %1137 = vmatprep.subr.bf16.mxu0 0
        %1138 = vmatpush1.bf16.msra.mxu0 0
        %1139 = vmatprep.subr.bf16.mxu0 0
        %1140 = vmatpush1.bf16.msra.mxu0 0
        %1141 = vmatprep.subr.bf16.mxu0 0
        %1142 = vmatpush1.bf16.msra.mxu0 0
        %1143 = vmatprep.subr.bf16.mxu0 0
        %1144 = vmatpush1.bf16.msra.mxu0 0
        %1145 = vmatprep.subr.bf16.mxu0 0
        %1146 = vmatpush1.bf16.msra.mxu0 %v1126
        %1147 = vmatprep.subr.bf16.mxu0 0
        %1148 = vmatpush2.bf16.msra.mxu0 0
        %1149 = vmatprep.subr.bf16.mxu0 0
        %1150 = vmatpush2.bf16.msra.mxu0 0
        %1151 = vmatprep.subr.bf16.mxu0 0
        %1152 = vmatpush2.bf16.msra.mxu0 0
        %1153 = vmatprep.subr.bf16.mxu0 0
        %1154 = vmatpush2.bf16.msra.mxu0 0
        %1155 = vmatprep.subr.bf16.mxu0 0
        %1156 = vmatpush2.bf16.msra.mxu0 0
        %1157 = vmatprep.subr.bf16.mxu0 0
        %1158 = vmatpush2.bf16.msra.mxu0 0
        %1159 = vmatprep.subr.bf16.mxu0 0
        %1160 = vmatpush2.bf16.msra.mxu0 0
        %1161 = vmatprep.subr.bf16.mxu0 0
        %1162 = vmatpush2.bf16.msra.mxu0 0
        %1163 = vmatprep.mubr.bf16.mxu0 0
        %1164 = vmatmul.mubr.bf16.gmra.mxu0 %v1129
        %v1165 = vpop.f32.mrf.mxu0
        %v1166 = vadd.f32 0.0, %v1165
        %v1167 = vpop.f32.mrf.mxu0
        %v1168 = vpop.f32.mrf.mxu0
        %v1169 = vadd.f32 0.0, %v1168
        %v1170 = vpop.f32.mrf.mxu0
        %1171 = vdwg.mxu0
        %v1172 = vpack.c.bf16 %v1169, %v1166
        %v1177 = vunpack.c.l.b16 %v1042
        %v1178 = vunpack.c.l.b16 %v1043
        %v1179 = vunpack.c.l.b16 %v1044
        %v1180 = vunpack.c.l.b16 %v1045
        %v1181 = vpack.c.b16 %v1178, %v1177
        %v1182 = vpack.c.b16 %v1180, %v1179
        %v1186 = vsel %vm865, %v1172, 0
        %1188 = vmatprep.subr.bf16.mxu0 0
        %1189 = vmatpush1.bf16.msra.mxu0 0
        %1190 = vmatprep.subr.bf16.mxu0 0
        %1191 = vmatpush1.bf16.msra.mxu0 0
        %1192 = vmatprep.subr.bf16.mxu0 0
        %1193 = vmatpush1.bf16.msra.mxu0 0
        %1194 = vmatprep.subr.bf16.mxu0 0
        %1195 = vmatpush1.bf16.msra.mxu0 0
        %1196 = vmatprep.subr.bf16.mxu0 0
        %1197 = vmatpush1.bf16.msra.mxu0 0
        %1198 = vmatprep.subr.bf16.mxu0 0
        %1199 = vmatpush1.bf16.msra.mxu0 0
        %1200 = vmatprep.subr.bf16.mxu0 0
        %1201 = vmatpush1.bf16.msra.mxu0 %v1182
        %1202 = vmatprep.subr.bf16.mxu0 0
        %1203 = vmatpush1.bf16.msra.mxu0 %v1181
        %1204 = vmatprep.subr.bf16.mxu0 0
        %1205 = vmatpush2.bf16.msra.mxu0 0
        %1206 = vmatprep.subr.bf16.mxu0 0
        %1207 = vmatpush2.bf16.msra.mxu0 0
        %1208 = vmatprep.subr.bf16.mxu0 0
        %1209 = vmatpush2.bf16.msra.mxu0 0
        %1210 = vmatprep.subr.bf16.mxu0 0
        %1211 = vmatpush2.bf16.msra.mxu0 0
        %1212 = vmatprep.subr.bf16.mxu0 0
        %1213 = vmatpush2.bf16.msra.mxu0 0
        %1214 = vmatprep.subr.bf16.mxu0 0
        %1215 = vmatpush2.bf16.msra.mxu0 0
        %1216 = vmatprep.subr.bf16.mxu0 0
        %1217 = vmatpush2.bf16.msra.mxu0 0
        %1218 = vmatprep.subr.bf16.mxu0 0
        %1219 = vmatpush2.bf16.msra.mxu0 0
        %1220 = vmatprep.mubr.bf16.mxu0 0
        %1221 = vmatmul.mubr.bf16.gmra.mxu0 %v1186
        %v1222 = vpop.f32.mrf.mxu0
        %v1223 = vadd.f32 0.0, %v1222
        %v1224 = vpop.f32.mrf.mxu0
        %v1225 = vpop.f32.mrf.mxu0
        %v1226 = vadd.f32 0.0, %v1225
        %v1227 = vpop.f32.mrf.mxu0
        %1228 = vdwg.mxu0
        %v1229 = vadd.f32 %v1040, %v1223
        %v1230 = vadd.f32 %v1041, %v1226
        %v1231 = vld [vmem:[#allocation2 + $0x20] sm:$0xf]
        %v1232 = vld [vmem:[#allocation2 + $0x24] sm:$0xf]
        %v1233 = vld [vmem:[#allocation2 + $0x28] sm:$0xf]
        %v1234 = vld [vmem:[#allocation2 + $0x2c] sm:$0xf]
        %1235 = vrot.lane.b32.xlu0 %v843, 64
        %v1236 = vpop.permute.xlu0 %1235
        %1237 = vrot.lane.b32.xlu0 %v844, 64
        %v1238 = vpop.permute.xlu0 %1237
        %v1240 = vsel %vm865, %v1236, 0
        %v1243 = vsel %vm865, %v1238, 0
        %1245 = vmatprep.subr.bf16.mxu0 0
        %1246 = vmatpush1.bf16.xpose.msra.mxu0 0
        %1247 = vmatprep.subr.bf16.mxu0 0
        %1248 = vmatpush1.bf16.xpose.msra.mxu0 0
        %1249 = vmatprep.subr.bf16.mxu0 0
        %1250 = vmatpush1.bf16.xpose.msra.mxu0 0
        %1251 = vmatprep.subr.bf16.mxu0 0
        %1252 = vmatpush1.bf16.xpose.msra.mxu0 0
        %1253 = vmatprep.subr.bf16.mxu0 0
        %1254 = vmatpush1.bf16.xpose.msra.mxu0 0
        %1255 = vmatprep.subr.bf16.mxu0 0
        %1256 = vmatpush1.bf16.xpose.msra.mxu0 0
        %1257 = vmatprep.subr.bf16.mxu0 0
        %1258 = vmatpush1.bf16.xpose.msra.mxu0 0
        %1259 = vmatprep.subr.bf16.mxu0 0
        %1260 = vmatpush1.bf16.xpose.msra.mxu0 %v1243
        %1261 = vmatprep.subr.bf16.mxu0 0
        %1262 = vmatpush2.bf16.xpose.msra.mxu0 0
        %1263 = vmatprep.subr.bf16.mxu0 0
        %1264 = vmatpush2.bf16.xpose.msra.mxu0 0
        %1265 = vmatprep.subr.bf16.mxu0 0
        %1266 = vmatpush2.bf16.xpose.msra.mxu0 0
        %1267 = vmatprep.subr.bf16.mxu0 0
        %1268 = vmatpush2.bf16.xpose.msra.mxu0 0
        %1269 = vmatprep.subr.bf16.mxu0 0
        %1270 = vmatpush2.bf16.xpose.msra.mxu0 0
        %1271 = vmatprep.subr.bf16.mxu0 0
        %1272 = vmatpush2.bf16.xpose.msra.mxu0 0
        %1273 = vmatprep.subr.bf16.mxu0 0
        %1274 = vmatpush2.bf16.xpose.msra.mxu0 0
        %1275 = vmatprep.subr.bf16.mxu0 0
        %1276 = vmatpush2.bf16.xpose.msra.mxu0 0
        %1277 = vmatprep.mubr.bf16.mxu0 0
        %1278 = vmatmul.mubr.bf16.gmra.mxu0 %v1240
        %v1279 = vpop.f32.mrf.mxu0
        %v1280 = vadd.f32 0.0, %v1279
        %v1281 = vpop.f32.mrf.mxu0
        %v1282 = vpop.f32.mrf.mxu0
        %v1283 = vadd.f32 0.0, %v1282
        %v1284 = vpop.f32.mrf.mxu0
        %1285 = vdwg.mxu0
        %v1286 = vsel %vm854, %v1280, -1e+30
        %v1287 = vsel %vm855, %v1283, -1e+30
        %v1288 = vsel %vm915, %v1286, -inf
        %1289 = vmax.xlane.f32.xlu0 %v1288
        %v1290 = vpop.xlane.xlu0 %1289
        %v1291 = vsel %vm915, %v1287, -inf
        %1292 = vmax.xlane.f32.xlu0 %v1291
        %v1293 = vpop.xlane.xlu0 %1292
        %v1294 = vsub.f32 %v1286, %v1290
        %v1295 = vsub.f32 %v1287, %v1293
        %v1296 = vmul.f32 %v1294, 1.442695
        %v1297 = vpow.pop %v1296
        %v1298 = vmul.f32 %v1295, 1.442695
        %v1299 = vpow.pop %v1298
        %v1300 = vsel %vm915, %v1297, 0.0
        %1301 = vadd.xlane.f32.xlu0 %v1300
        %v1302 = vpop.xlane.xlu0 %1301
        %v1303 = vsel %vm915, %v1299, 0.0
        %1304 = vadd.xlane.f32.xlu0 %v1303
        %v1305 = vpop.xlane.xlu0 %1304
        %v1306 = vrcp.pop %v1302
        %v1307 = vrcp.pop %v1305
        %v1308 = vmul.f32 %v1297, %v1306
        %v1309 = vmul.f32 %v1299, %v1307
        %v1310 = vpack.c.bf16 %v1309, %v1308
        %1311 = vrot.lane.b32.xlu0 %v845, 64
        %v1312 = vpop.permute.xlu0 %1311
        %v1315 = vsel %vm915, %v1310, 0
        %1317 = vmatprep.subr.bf16.mxu0 0
        %1318 = vmatpush1.bf16.msra.mxu0 0
        %1319 = vmatprep.subr.bf16.mxu0 0
        %1320 = vmatpush1.bf16.msra.mxu0 0
        %1321 = vmatprep.subr.bf16.mxu0 0
        %1322 = vmatpush1.bf16.msra.mxu0 0
        %1323 = vmatprep.subr.bf16.mxu0 0
        %1324 = vmatpush1.bf16.msra.mxu0 0
        %1325 = vmatprep.subr.bf16.mxu0 0
        %1326 = vmatpush1.bf16.msra.mxu0 0
        %1327 = vmatprep.subr.bf16.mxu0 0
        %1328 = vmatpush1.bf16.msra.mxu0 0
        %1329 = vmatprep.subr.bf16.mxu0 0
        %1330 = vmatpush1.bf16.msra.mxu0 0
        %1331 = vmatprep.subr.bf16.mxu0 0
        %1332 = vmatpush1.bf16.msra.mxu0 %v1312
        %1333 = vmatprep.subr.bf16.mxu0 0
        %1334 = vmatpush2.bf16.msra.mxu0 0
        %1335 = vmatprep.subr.bf16.mxu0 0
        %1336 = vmatpush2.bf16.msra.mxu0 0
        %1337 = vmatprep.subr.bf16.mxu0 0
        %1338 = vmatpush2.bf16.msra.mxu0 0
        %1339 = vmatprep.subr.bf16.mxu0 0
        %1340 = vmatpush2.bf16.msra.mxu0 0
        %1341 = vmatprep.subr.bf16.mxu0 0
        %1342 = vmatpush2.bf16.msra.mxu0 0
        %1343 = vmatprep.subr.bf16.mxu0 0
        %1344 = vmatpush2.bf16.msra.mxu0 0
        %1345 = vmatprep.subr.bf16.mxu0 0
        %1346 = vmatpush2.bf16.msra.mxu0 0
        %1347 = vmatprep.subr.bf16.mxu0 0
        %1348 = vmatpush2.bf16.msra.mxu0 0
        %1349 = vmatprep.mubr.bf16.mxu0 0
        %1350 = vmatmul.mubr.bf16.gmra.mxu0 %v1315
        %v1351 = vpop.f32.mrf.mxu0
        %v1352 = vadd.f32 0.0, %v1351
        %v1353 = vpop.f32.mrf.mxu0
        %v1354 = vpop.f32.mrf.mxu0
        %v1355 = vadd.f32 0.0, %v1354
        %v1356 = vpop.f32.mrf.mxu0
        %1357 = vdwg.mxu0
        %v1358 = vpack.c.bf16 %v1355, %v1352
        %v1363 = vunpack.c.l.b16 %v1231
        %v1364 = vunpack.c.l.b16 %v1232
        %v1365 = vunpack.c.l.b16 %v1233
        %v1366 = vunpack.c.l.b16 %v1234
        %v1367 = vpack.c.b16 %v1364, %v1363
        %v1368 = vpack.c.b16 %v1366, %v1365
        %v1372 = vsel %vm865, %v1358, 0
        %1374 = vmatprep.subr.bf16.mxu0 0
        %1375 = vmatpush1.bf16.msra.mxu0 0
        %1376 = vmatprep.subr.bf16.mxu0 0
        %1377 = vmatpush1.bf16.msra.mxu0 0
        %1378 = vmatprep.subr.bf16.mxu0 0
        %1379 = vmatpush1.bf16.msra.mxu0 0
        %1380 = vmatprep.subr.bf16.mxu0 0
        %1381 = vmatpush1.bf16.msra.mxu0 0
        %1382 = vmatprep.subr.bf16.mxu0 0
        %1383 = vmatpush1.bf16.msra.mxu0 0
        %1384 = vmatprep.subr.bf16.mxu0 0
        %1385 = vmatpush1.bf16.msra.mxu0 0
        %1386 = vmatprep.subr.bf16.mxu0 0
        %1387 = vmatpush1.bf16.msra.mxu0 %v1368
        %1388 = vmatprep.subr.bf16.mxu0 0
        %1389 = vmatpush1.bf16.msra.mxu0 %v1367
        %1390 = vmatprep.subr.bf16.mxu0 0
        %1391 = vmatpush2.bf16.msra.mxu0 0
        %1392 = vmatprep.subr.bf16.mxu0 0
        %1393 = vmatpush2.bf16.msra.mxu0 0
        %1394 = vmatprep.subr.bf16.mxu0 0
        %1395 = vmatpush2.bf16.msra.mxu0 0
        %1396 = vmatprep.subr.bf16.mxu0 0
        %1397 = vmatpush2.bf16.msra.mxu0 0
        %1398 = vmatprep.subr.bf16.mxu0 0
        %1399 = vmatpush2.bf16.msra.mxu0 0
        %1400 = vmatprep.subr.bf16.mxu0 0
        %1401 = vmatpush2.bf16.msra.mxu0 0
        %1402 = vmatprep.subr.bf16.mxu0 0
        %1403 = vmatpush2.bf16.msra.mxu0 0
        %1404 = vmatprep.subr.bf16.mxu0 0
        %1405 = vmatpush2.bf16.msra.mxu0 0
        %1406 = vmatprep.mubr.bf16.mxu0 0
        %1407 = vmatmul.mubr.bf16.gmra.mxu0 %v1372
        %v1408 = vpop.f32.mrf.mxu0
        %v1409 = vadd.f32 0.0, %v1408
        %v1410 = vpop.f32.mrf.mxu0
        %v1411 = vpop.f32.mrf.mxu0
        %v1412 = vadd.f32 0.0, %v1411
        %v1413 = vpop.f32.mrf.mxu0
        %1414 = vdwg.mxu0
        %v1415 = vadd.f32 %v1229, %v1409
        %v1416 = vadd.f32 %v1230, %v1412
        %v1417 = vld [vmem:[#allocation2 + $0x30] sm:$0xf]
        %v1418 = vld [vmem:[#allocation2 + $0x34] sm:$0xf]
        %v1419 = vld [vmem:[#allocation2 + $0x38] sm:$0xf]
        %v1420 = vld [vmem:[#allocation2 + $0x3c] sm:$0xf]
        %1421 = vrot.lane.b32.xlu0 %v843, 32
        %v1422 = vpop.permute.xlu0 %1421
        %1423 = vrot.lane.b32.xlu0 %v844, 32
        %v1424 = vpop.permute.xlu0 %1423
        %v1426 = vsel %vm865, %v1422, 0
        %v1429 = vsel %vm865, %v1424, 0
        %1431 = vmatprep.subr.bf16.mxu0 0
        %1432 = vmatpush1.bf16.xpose.msra.mxu0 0
        %1433 = vmatprep.subr.bf16.mxu0 0
        %1434 = vmatpush1.bf16.xpose.msra.mxu0 0
        %1435 = vmatprep.subr.bf16.mxu0 0
        %1436 = vmatpush1.bf16.xpose.msra.mxu0 0
        %1437 = vmatprep.subr.bf16.mxu0 0
        %1438 = vmatpush1.bf16.xpose.msra.mxu0 0
        %1439 = vmatprep.subr.bf16.mxu0 0
        %1440 = vmatpush1.bf16.xpose.msra.mxu0 0
        %1441 = vmatprep.subr.bf16.mxu0 0
        %1442 = vmatpush1.bf16.xpose.msra.mxu0 0
        %1443 = vmatprep.subr.bf16.mxu0 0
        %1444 = vmatpush1.bf16.xpose.msra.mxu0 0
        %1445 = vmatprep.subr.bf16.mxu0 0
        %1446 = vmatpush1.bf16.xpose.msra.mxu0 %v1429
        %1447 = vmatprep.subr.bf16.mxu0 0
        %1448 = vmatpush2.bf16.xpose.msra.mxu0 0
        %1449 = vmatprep.subr.bf16.mxu0 0
        %1450 = vmatpush2.bf16.xpose.msra.mxu0 0
        %1451 = vmatprep.subr.bf16.mxu0 0
        %1452 = vmatpush2.bf16.xpose.msra.mxu0 0
        %1453 = vmatprep.subr.bf16.mxu0 0
        %1454 = vmatpush2.bf16.xpose.msra.mxu0 0
        %1455 = vmatprep.subr.bf16.mxu0 0
        %1456 = vmatpush2.bf16.xpose.msra.mxu0 0
        %1457 = vmatprep.subr.bf16.mxu0 0
        %1458 = vmatpush2.bf16.xpose.msra.mxu0 0
        %1459 = vmatprep.subr.bf16.mxu0 0
        %1460 = vmatpush2.bf16.xpose.msra.mxu0 0
        %1461 = vmatprep.subr.bf16.mxu0 0
        %1462 = vmatpush2.bf16.xpose.msra.mxu0 0
        %1463 = vmatprep.mubr.bf16.mxu0 0
        %1464 = vmatmul.mubr.bf16.gmra.mxu0 %v1426
        %v1465 = vpop.f32.mrf.mxu0
        %v1466 = vadd.f32 0.0, %v1465
        %v1467 = vpop.f32.mrf.mxu0
        %v1468 = vpop.f32.mrf.mxu0
        %v1469 = vadd.f32 0.0, %v1468
        %v1470 = vpop.f32.mrf.mxu0
        %1471 = vdwg.mxu0
        %v1472 = vsel %vm854, %v1466, -1e+30
        %v1473 = vsel %vm855, %v1469, -1e+30
        %v1474 = vsel %vm915, %v1472, -inf
        %1475 = vmax.xlane.f32.xlu0 %v1474
        %v1476 = vpop.xlane.xlu0 %1475
        %v1477 = vsel %vm915, %v1473, -inf
        %1478 = vmax.xlane.f32.xlu0 %v1477
        %v1479 = vpop.xlane.xlu0 %1478
        %v1480 = vsub.f32 %v1472, %v1476
        %v1481 = vsub.f32 %v1473, %v1479
        %v1482 = vmul.f32 %v1480, 1.442695
        %v1483 = vpow.pop %v1482
        %v1484 = vmul.f32 %v1481, 1.442695
        %v1485 = vpow.pop %v1484
        %v1486 = vsel %vm915, %v1483, 0.0
        %1487 = vadd.xlane.f32.xlu0 %v1486
        %v1488 = vpop.xlane.xlu0 %1487
        %v1489 = vsel %vm915, %v1485, 0.0
        %1490 = vadd.xlane.f32.xlu0 %v1489
        %v1491 = vpop.xlane.xlu0 %1490
        %v1492 = vrcp.pop %v1488
        %v1493 = vrcp.pop %v1491
        %v1494 = vmul.f32 %v1483, %v1492
        %v1495 = vmul.f32 %v1485, %v1493
        %v1496 = vpack.c.bf16 %v1495, %v1494
        %1497 = vrot.lane.b32.xlu0 %v845, 32
        %v1498 = vpop.permute.xlu0 %1497
        %v1501 = vsel %vm915, %v1496, 0
        %1503 = vmatprep.subr.bf16.mxu0 0
        %1504 = vmatpush1.bf16.msra.mxu0 0
        %1505 = vmatprep.subr.bf16.mxu0 0
        %1506 = vmatpush1.bf16.msra.mxu0 0
        %1507 = vmatprep.subr.bf16.mxu0 0
        %1508 = vmatpush1.bf16.msra.mxu0 0
        %1509 = vmatprep.subr.bf16.mxu0 0
        %1510 = vmatpush1.bf16.msra.mxu0 0
        %1511 = vmatprep.subr.bf16.mxu0 0
        %1512 = vmatpush1.bf16.msra.mxu0 0
        %1513 = vmatprep.subr.bf16.mxu0 0
        %1514 = vmatpush1.bf16.msra.mxu0 0
        %1515 = vmatprep.subr.bf16.mxu0 0
        %1516 = vmatpush1.bf16.msra.mxu0 0
        %1517 = vmatprep.subr.bf16.mxu0 0
        %1518 = vmatpush1.bf16.msra.mxu0 %v1498
        %1519 = vmatprep.subr.bf16.mxu0 0
        %1520 = vmatpush2.bf16.msra.mxu0 0
        %1521 = vmatprep.subr.bf16.mxu0 0
        %1522 = vmatpush2.bf16.msra.mxu0 0
        %1523 = vmatprep.subr.bf16.mxu0 0
        %1524 = vmatpush2.bf16.msra.mxu0 0
        %1525 = vmatprep.subr.bf16.mxu0 0
        %1526 = vmatpush2.bf16.msra.mxu0 0
        %1527 = vmatprep.subr.bf16.mxu0 0
        %1528 = vmatpush2.bf16.msra.mxu0 0
        %1529 = vmatprep.subr.bf16.mxu0 0
        %1530 = vmatpush2.bf16.msra.mxu0 0
        %1531 = vmatprep.subr.bf16.mxu0 0
        %1532 = vmatpush2.bf16.msra.mxu0 0
        %1533 = vmatprep.subr.bf16.mxu0 0
        %1534 = vmatpush2.bf16.msra.mxu0 0
        %1535 = vmatprep.mubr.bf16.mxu0 0
        %1536 = vmatmul.mubr.bf16.gmra.mxu0 %v1501
        %v1537 = vpop.f32.mrf.mxu0
        %v1538 = vadd.f32 0.0, %v1537
        %v1539 = vpop.f32.mrf.mxu0
        %v1540 = vpop.f32.mrf.mxu0
        %v1541 = vadd.f32 0.0, %v1540
        %v1542 = vpop.f32.mrf.mxu0
        %1543 = vdwg.mxu0
        %v1544 = vpack.c.bf16 %v1541, %v1538
        %v1549 = vunpack.c.l.b16 %v1417
        %v1550 = vunpack.c.l.b16 %v1418
        %v1551 = vunpack.c.l.b16 %v1419
        %v1552 = vunpack.c.l.b16 %v1420
        %v1553 = vpack.c.b16 %v1550, %v1549
        %v1554 = vpack.c.b16 %v1552, %v1551
        %v1558 = vsel %vm865, %v1544, 0
        %1560 = vmatprep.subr.bf16.mxu0 0
        %1561 = vmatpush1.bf16.msra.mxu0 0
        %1562 = vmatprep.subr.bf16.mxu0 0
        %1563 = vmatpush1.bf16.msra.mxu0 0
        %1564 = vmatprep.subr.bf16.mxu0 0
        %1565 = vmatpush1.bf16.msra.mxu0 0
        %1566 = vmatprep.subr.bf16.mxu0 0
        %1567 = vmatpush1.bf16.msra.mxu0 0
        %1568 = vmatprep.subr.bf16.mxu0 0
        %1569 = vmatpush1.bf16.msra.mxu0 0
        %1570 = vmatprep.subr.bf16.mxu0 0
        %1571 = vmatpush1.bf16.msra.mxu0 0
        %1572 = vmatprep.subr.bf16.mxu0 0
        %1573 = vmatpush1.bf16.msra.mxu0 %v1554
        %1574 = vmatprep.subr.bf16.mxu0 0
        %1575 = vmatpush1.bf16.msra.mxu0 %v1553
        %1576 = vmatprep.subr.bf16.mxu0 0
        %1577 = vmatpush2.bf16.msra.mxu0 0
        %1578 = vmatprep.subr.bf16.mxu0 0
        %1579 = vmatpush2.bf16.msra.mxu0 0
        %1580 = vmatprep.subr.bf16.mxu0 0
        %1581 = vmatpush2.bf16.msra.mxu0 0
        %1582 = vmatprep.subr.bf16.mxu0 0
        %1583 = vmatpush2.bf16.msra.mxu0 0
        %1584 = vmatprep.subr.bf16.mxu0 0
        %1585 = vmatpush2.bf16.msra.mxu0 0
        %1586 = vmatprep.subr.bf16.mxu0 0
        %1587 = vmatpush2.bf16.msra.mxu0 0
        %1588 = vmatprep.subr.bf16.mxu0 0
        %1589 = vmatpush2.bf16.msra.mxu0 0
        %1590 = vmatprep.subr.bf16.mxu0 0
        %1591 = vmatpush2.bf16.msra.mxu0 0
        %1592 = vmatprep.mubr.bf16.mxu0 0
        %1593 = vmatmul.mubr.bf16.gmra.mxu0 %v1558
        %v1594 = vpop.f32.mrf.mxu0
        %v1595 = vadd.f32 0.0, %v1594
        %v1596 = vpop.f32.mrf.mxu0
        %v1597 = vpop.f32.mrf.mxu0
        %v1598 = vadd.f32 0.0, %v1597
        %v1599 = vpop.f32.mrf.mxu0
        %1600 = vdwg.mxu0
        %v1601 = vadd.f32 %v1415, %v1595
        %v1602 = vadd.f32 %v1416, %v1598
        %v1603 = vadd.f32 %v570, %v1601
        %v1604 = vadd.f32 %v571, %v1602
        %1605 = vadd.xlane.f32.xlu0 %v1603
        %v1606 = vpop.xlane.xlu0 %1605
        %1607 = vadd.xlane.f32.xlu0 %v1604
        %v1608 = vpop.xlane.xlu0 %1607
        %v1609 = vrcp.pop 128.0
        %v1610 = vmul.f32 %v1606, %v1609
        %v1611 = vmul.f32 %v1608, %v1609
        %v1612 = vsub.f32 %v1603, %v1610
        %v1613 = vsub.f32 %v1604, %v1611
        %v1614 = vmul.f32 %v1612, %v1612
        %v1615 = vmul.f32 %v1613, %v1613
        %1616 = vadd.xlane.f32.xlu0 %v1614
        %v1617 = vpop.xlane.xlu0 %1616
        %1618 = vadd.xlane.f32.xlu0 %v1615
        %v1619 = vpop.xlane.xlu0 %1618
        %v1620 = vmul.f32 %v1617, %v1609
        %v1621 = vmul.f32 %v1619, %v1609
        %v1622 = vadd.f32 %v1620, 1e-05
        %v1623 = vadd.f32 %v1621, 1e-05
        %v1624 = vrsqrt.pop %v1622
        %v1625 = vrsqrt.pop %v1623
        %v1626 = vmul.f32 %v1612, %v1624
        %v1627 = vmul.f32 %v1613, %v1625
        %v1628 = vlaneseq
        %v1629 = vshrl.u32 %v1628, 7
        %v1630 = vsub.s32 1, %v1629
        %v1631 = vrot.slane %v577, %v1630
        %v1632 = vmul.f32 %v1626, %v1631
        %v1633 = vmul.f32 %v1627, %v1631
        %v1634 = vlaneseq
        %v1635 = vshrl.u32 %v1634, 7
        %v1636 = vsub.s32 2, %v1635
        %v1637 = vrot.slane %v577, %v1636
        %v1638 = vadd.f32 %v1632, %v1637
        %v1639 = vadd.f32 %v1633, %v1637
        %v1640 = vpack.c.bf16 %v575, %v574
        %v1641 = vld [vmem:[#allocation5] sm:$0xf]
        %v1642 = vld [vmem:[#allocation5 + $0x4] sm:$0xf]
        %v1643 = vld [vmem:[#allocation5 + $0x8] sm:$0xf]
        %v1644 = vld [vmem:[#allocation5 + $0xc] sm:$0xf]
        %v1645 = vld [vmem:[#allocation5 + $0x10] sm:$0xf]
        %v1646 = vld [vmem:[#allocation5 + $0x14] sm:$0xf]
        %v1647 = vld [vmem:[#allocation5 + $0x18] sm:$0xf]
        %v1648 = vld [vmem:[#allocation5 + $0x1c] sm:$0xf]
        %v1649 = vld [vmem:[#allocation5 + $0x20] sm:$0xf]
        %v1650 = vld [vmem:[#allocation5 + $0x24] sm:$0xf]
        %v1651 = vld [vmem:[#allocation5 + $0x28] sm:$0xf]
        %v1652 = vld [vmem:[#allocation5 + $0x2c] sm:$0xf]
        %v1653 = vld [vmem:[#allocation5 + $0x30] sm:$0xf]
        %v1654 = vld [vmem:[#allocation5 + $0x34] sm:$0xf]
        %v1655 = vld [vmem:[#allocation5 + $0x38] sm:$0xf]
        %v1656 = vld [vmem:[#allocation5 + $0x3c] sm:$0xf]
        %v1657 = vlaneseq
        %v1658 = vshrl.u32 %v1657, 7
        %v1659 = vsub.s32 4, %v1658
        %v1660 = vrot.slane %v576, %v1659
        %v1677 = vunpack.c.l.b16 %v1641
        %v1678 = vunpack.c.l.b16 %v1642
        %v1679 = vunpack.c.l.b16 %v1643
        %v1680 = vunpack.c.l.b16 %v1644
        %v1681 = vunpack.c.l.b16 %v1645
        %v1682 = vunpack.c.l.b16 %v1646
        %v1683 = vunpack.c.l.b16 %v1647
        %v1684 = vunpack.c.l.b16 %v1648
        %v1685 = vunpack.c.l.b16 %v1649
        %v1686 = vunpack.c.l.b16 %v1650
        %v1687 = vunpack.c.l.b16 %v1651
        %v1688 = vunpack.c.l.b16 %v1652
        %v1689 = vunpack.c.l.b16 %v1653
        %v1690 = vunpack.c.l.b16 %v1654
        %v1691 = vunpack.c.l.b16 %v1655
        %v1692 = vunpack.c.l.b16 %v1656
        %v1693 = vpack.c.b16 %v1678, %v1677
        %v1694 = vpack.c.b16 %v1680, %v1679
        %v1695 = vpack.c.b16 %v1682, %v1681
        %v1696 = vpack.c.b16 %v1684, %v1683
        %v1697 = vpack.c.b16 %v1686, %v1685
        %v1698 = vpack.c.b16 %v1688, %v1687
        %v1699 = vpack.c.b16 %v1690, %v1689
        %v1700 = vpack.c.b16 %v1692, %v1691
        %1709 = vmatprep.subr.bf16.mxu0 0
        %1710 = vmatpush1.bf16.msra.mxu0 %v1700
        %1711 = vmatprep.subr.bf16.mxu0 0
        %1712 = vmatpush1.bf16.msra.mxu0 %v1699
        %1713 = vmatprep.subr.bf16.mxu0 0
        %1714 = vmatpush1.bf16.msra.mxu0 %v1698
        %1715 = vmatprep.subr.bf16.mxu0 0
        %1716 = vmatpush1.bf16.msra.mxu0 %v1697
        %1717 = vmatprep.subr.bf16.mxu0 0
        %1718 = vmatpush1.bf16.msra.mxu0 %v1696
        %1719 = vmatprep.subr.bf16.mxu0 0
        %1720 = vmatpush1.bf16.msra.mxu0 %v1695
        %1721 = vmatprep.subr.bf16.mxu0 0
        %1722 = vmatpush1.bf16.msra.mxu0 %v1694
        %1723 = vmatprep.subr.bf16.mxu0 0
        %1724 = vmatpush1.bf16.msra.mxu0 %v1693
        %1725 = vmatprep.subr.bf16.mxu0 0
        %1726 = vmatpush2.bf16.msra.mxu0 0
        %1727 = vmatprep.subr.bf16.mxu0 0
        %1728 = vmatpush2.bf16.msra.mxu0 0
        %1729 = vmatprep.subr.bf16.mxu0 0
        %1730 = vmatpush2.bf16.msra.mxu0 0
        %1731 = vmatprep.subr.bf16.mxu0 0
        %1732 = vmatpush2.bf16.msra.mxu0 0
        %1733 = vmatprep.subr.bf16.mxu0 0
        %1734 = vmatpush2.bf16.msra.mxu0 0
        %1735 = vmatprep.subr.bf16.mxu0 0
        %1736 = vmatpush2.bf16.msra.mxu0 0
        %1737 = vmatprep.subr.bf16.mxu0 0
        %1738 = vmatpush2.bf16.msra.mxu0 0
        %1739 = vmatprep.subr.bf16.mxu0 0
        %1740 = vmatpush2.bf16.msra.mxu0 0
        %1741 = vmatprep.mubr.bf16.mxu0 0
        %1742 = vmatmul.mubr.bf16.gmra.mxu0 %v579
        %v1743 = vpop.f32.mrf.mxu0
        %v1744 = vadd.f32 %v1660, %v1743
        %v1745 = vpop.f32.mrf.mxu0
        %v1746 = vpop.f32.mrf.mxu0
        %v1747 = vadd.f32 %v1660, %v1746
        %v1748 = vpop.f32.mrf.mxu0
        %1749 = vdwg.mxu0
        %v1750 = vmul.f32 %v1744, 0.17677669
        %v1751 = vmul.f32 %v1747, 0.17677669
        %v1752 = vld [vmem:[%s7] sm:$0xff]
        %v1753 = vld [vmem:[%s7 + $0x8] sm:$0xff]
        %v1754 = vld [vmem:[%s7 + $0x10] sm:$0xff]
        %v1755 = vld [vmem:[%s7 + $0x18] sm:$0xff]
        %v1756 = vld [vmem:[%s7 + $0x20] sm:$0xff]
        %v1757 = vld [vmem:[%s7 + $0x28] sm:$0xff]
        %v1758 = vld [vmem:[%s7 + $0x30] sm:$0xff]
        %v1759 = vld [vmem:[%s7 + $0x38] sm:$0xff]
        %v1760 = vld [vmem:[%s7 + $0x40] sm:$0xff]
        %v1761 = vld [vmem:[%s7 + $0x48] sm:$0xff]
        %v1762 = vld [vmem:[%s7 + $0x50] sm:$0xff]
        %v1763 = vld [vmem:[%s7 + $0x58] sm:$0xff]
        %v1764 = vld [vmem:[%s7 + $0x60] sm:$0xff]
        %v1765 = vld [vmem:[%s7 + $0x68] sm:$0xff]
        %v1766 = vld [vmem:[%s7 + $0x70] sm:$0xff]
        %v1767 = vld [vmem:[%s7 + $0x78] sm:$0xff]
        %v1784 = vunpack.c.l.b16 %v1752
        %v1785 = vunpack.c.h.b16 %v1752
        %v1786 = vunpack.c.l.b16 %v1753
        %v1787 = vunpack.c.h.b16 %v1753
        %v1788 = vunpack.c.l.b16 %v1754
        %v1789 = vunpack.c.h.b16 %v1754
        %v1790 = vunpack.c.l.b16 %v1755
        %v1791 = vunpack.c.h.b16 %v1755
        %v1792 = vunpack.c.l.b16 %v1756
        %v1793 = vunpack.c.h.b16 %v1756
        %v1794 = vunpack.c.l.b16 %v1757
        %v1795 = vunpack.c.h.b16 %v1757
        %v1796 = vunpack.c.l.b16 %v1758
        %v1797 = vunpack.c.h.b16 %v1758
        %v1798 = vunpack.c.l.b16 %v1759
        %v1799 = vunpack.c.h.b16 %v1759
        %v1800 = vunpack.c.l.b16 %v1760
        %v1801 = vunpack.c.h.b16 %v1760
        %v1802 = vunpack.c.l.b16 %v1761
        %v1803 = vunpack.c.h.b16 %v1761
        %v1804 = vunpack.c.l.b16 %v1762
        %v1805 = vunpack.c.h.b16 %v1762
        %v1806 = vunpack.c.l.b16 %v1763
        %v1807 = vunpack.c.h.b16 %v1763
        %v1808 = vunpack.c.l.b16 %v1764
        %v1809 = vunpack.c.h.b16 %v1764
        %v1810 = vunpack.c.l.b16 %v1765
        %v1811 = vunpack.c.h.b16 %v1765
        %v1812 = vunpack.c.l.b16 %v1766
        %v1813 = vunpack.c.h.b16 %v1766
        %v1814 = vunpack.c.l.b16 %v1767
        %v1815 = vunpack.c.h.b16 %v1767
        %v1816 = vpack.c.b16 %v1786, %v1784
        %v1817 = vpack.c.b16 %v1787, %v1785
        %v1818 = vpack.c.b16 %v1790, %v1788
        %v1819 = vpack.c.b16 %v1791, %v1789
        %v1820 = vpack.c.b16 %v1794, %v1792
        %v1821 = vpack.c.b16 %v1795, %v1793
        %v1822 = vpack.c.b16 %v1798, %v1796
        %v1823 = vpack.c.b16 %v1799, %v1797
        %v1824 = vpack.c.b16 %v1802, %v1800
        %v1825 = vpack.c.b16 %v1803, %v1801
        %v1826 = vpack.c.b16 %v1806, %v1804
        %v1827 = vpack.c.b16 %v1807, %v1805
        %v1828 = vpack.c.b16 %v1810, %v1808
        %v1829 = vpack.c.b16 %v1811, %v1809
        %v1830 = vpack.c.b16 %v1814, %v1812
        %v1831 = vpack.c.b16 %v1815, %v1813
        %1848 = vmatprep.subr.bf16.mxu0 %v1831
        %1849 = vmatpush1.bf16.msra.mxu0 %v1830
        %1850 = vmatprep.subr.bf16.mxu0 %v1829
        %1851 = vmatpush1.bf16.msra.mxu0 %v1828
        %1852 = vmatprep.subr.bf16.mxu0 %v1827
        %1853 = vmatpush1.bf16.msra.mxu0 %v1826
        %1854 = vmatprep.subr.bf16.mxu0 %v1825
        %1855 = vmatpush1.bf16.msra.mxu0 %v1824
        %1856 = vmatprep.subr.bf16.mxu0 %v1823
        %1857 = vmatpush1.bf16.msra.mxu0 %v1822
        %1858 = vmatprep.subr.bf16.mxu0 %v1821
        %1859 = vmatpush1.bf16.msra.mxu0 %v1820
        %1860 = vmatprep.subr.bf16.mxu0 %v1819
        %1861 = vmatpush1.bf16.msra.mxu0 %v1818
        %1862 = vmatprep.subr.bf16.mxu0 %v1817
        %1863 = vmatpush1.bf16.msra.mxu0 %v1816
        %1864 = vmatprep.subr.bf16.mxu0 0
        %1865 = vmatpush2.bf16.msra.mxu0 0
        %1866 = vmatprep.subr.bf16.mxu0 0
        %1867 = vmatpush2.bf16.msra.mxu0 0
        %1868 = vmatprep.subr.bf16.mxu0 0
        %1869 = vmatpush2.bf16.msra.mxu0 0
        %1870 = vmatprep.subr.bf16.mxu0 0
        %1871 = vmatpush2.bf16.msra.mxu0 0
        %1872 = vmatprep.subr.bf16.mxu0 0
        %1873 = vmatpush2.bf16.msra.mxu0 0
        %1874 = vmatprep.subr.bf16.mxu0 0
        %1875 = vmatpush2.bf16.msra.mxu0 0
        %1876 = vmatprep.subr.bf16.mxu0 0
        %1877 = vmatpush2.bf16.msra.mxu0 0
        %1878 = vmatprep.subr.bf16.mxu0 0
        %1879 = vmatpush2.bf16.msra.mxu0 0
        %1880 = vmatprep.mubr.bf16.mxu0 0
        %1881 = vmatmul.mubr.bf16.gmra.mxu0 %v1640
        %v1882 = vpop.f32.mrf.mxu0
        %v1883 = vadd.f32 0.0, %v1882
        %v1884 = vpop.f32.mrf.mxu0
        %v1885 = vadd.f32 0.0, %v1884
        %v1886 = vpop.f32.mrf.mxu0
        %v1887 = vadd.f32 0.0, %v1886
        %v1888 = vpop.f32.mrf.mxu0
        %v1889 = vadd.f32 0.0, %v1888
        %1890 = vdwg.mxu0
        %v1891 = vlaneseq
        %v1892 = vshrl.u32 %v1891, 7
        %v1893 = vsub.s32 5, %v1892
        %v1894 = vrot.slane %v576, %v1893
        %v1895 = vadd.f32 %v1883, %v1894
        %v1896 = vadd.f32 %v1887, %v1894
        %v1897 = vlaneseq
        %v1898 = vshrl.u32 %v1897, 7
        %v1899 = vsub.s32 6, %v1898
        %v1900 = vrot.slane %v576, %v1899
        %v1901 = vadd.f32 %v1885, %v1900
        %v1902 = vadd.f32 %v1889, %v1900
        %v1903 = vpack.c.bf16 %v1751, %v1750
        %v1904 = vpack.c.bf16 %v1896, %v1895
        %v1905 = vpack.c.bf16 %v1902, %v1901
        %v1906 = vlaneseq
        %v1907 = vshrl.u32 %v1906, 7
        %v1908 = vsub.s32 7, %v1907
        %v1909 = vrot.slane %v576, %v1908
        %v1910 = vadd.f32 %v1909, 0.0
        %v1911 = vld [vmem:[#allocation7] sm:$0xf]
        %v1912 = vld [vmem:[#allocation7 + $0x4] sm:$0xf]
        %v1913 = vld [vmem:[#allocation7 + $0x8] sm:$0xf]
        %v1914 = vld [vmem:[#allocation7 + $0xc] sm:$0xf]
        %v1916 = vsel %vm865, %v1903, 0
        %v1919 = vsel %vm865, %v1904, 0
        %1921 = vmatprep.subr.bf16.mxu0 0
        %1922 = vmatpush1.bf16.xpose.msra.mxu0 0
        %1923 = vmatprep.subr.bf16.mxu0 0
        %1924 = vmatpush1.bf16.xpose.msra.mxu0 0
        %1925 = vmatprep.subr.bf16.mxu0 0
        %1926 = vmatpush1.bf16.xpose.msra.mxu0 0
        %1927 = vmatprep.subr.bf16.mxu0 0
        %1928 = vmatpush1.bf16.xpose.msra.mxu0 0
        %1929 = vmatprep.subr.bf16.mxu0 0
        %1930 = vmatpush1.bf16.xpose.msra.mxu0 0
        %1931 = vmatprep.subr.bf16.mxu0 0
        %1932 = vmatpush1.bf16.xpose.msra.mxu0 0
        %1933 = vmatprep.subr.bf16.mxu0 0
        %1934 = vmatpush1.bf16.xpose.msra.mxu0 0
        %1935 = vmatprep.subr.bf16.mxu0 0
        %1936 = vmatpush1.bf16.xpose.msra.mxu0 %v1919
        %1937 = vmatprep.subr.bf16.mxu0 0
        %1938 = vmatpush2.bf16.xpose.msra.mxu0 0
        %1939 = vmatprep.subr.bf16.mxu0 0
        %1940 = vmatpush2.bf16.xpose.msra.mxu0 0
        %1941 = vmatprep.subr.bf16.mxu0 0
        %1942 = vmatpush2.bf16.xpose.msra.mxu0 0
        %1943 = vmatprep.subr.bf16.mxu0 0
        %1944 = vmatpush2.bf16.xpose.msra.mxu0 0
        %1945 = vmatprep.subr.bf16.mxu0 0
        %1946 = vmatpush2.bf16.xpose.msra.mxu0 0
        %1947 = vmatprep.subr.bf16.mxu0 0
        %1948 = vmatpush2.bf16.xpose.msra.mxu0 0
        %1949 = vmatprep.subr.bf16.mxu0 0
        %1950 = vmatpush2.bf16.xpose.msra.mxu0 0
        %1951 = vmatprep.subr.bf16.mxu0 0
        %1952 = vmatpush2.bf16.xpose.msra.mxu0 0
        %1953 = vmatprep.mubr.bf16.mxu0 0
        %1954 = vmatmul.mubr.bf16.gmra.mxu0 %v1916
        %v1955 = vpop.f32.mrf.mxu0
        %v1956 = vadd.f32 0.0, %v1955
        %v1957 = vpop.f32.mrf.mxu0
        %v1958 = vpop.f32.mrf.mxu0
        %v1959 = vadd.f32 0.0, %v1958
        %v1960 = vpop.f32.mrf.mxu0
        %1961 = vdwg.mxu0
        %v1962 = vsel %vm915, %v1956, -inf
        %1963 = vmax.xlane.f32.xlu0 %v1962
        %v1964 = vpop.xlane.xlu0 %1963
        %v1965 = vsel %vm915, %v1959, -inf
        %1966 = vmax.xlane.f32.xlu0 %v1965
        %v1967 = vpop.xlane.xlu0 %1966
        %v1968 = vsub.f32 %v1956, %v1964
        %v1969 = vsub.f32 %v1959, %v1967
        %v1970 = vmul.f32 %v1968, 1.442695
        %v1971 = vpow.pop %v1970
        %v1972 = vmul.f32 %v1969, 1.442695
        %v1973 = vpow.pop %v1972
        %v1974 = vsel %vm915, %v1971, 0.0
        %1975 = vadd.xlane.f32.xlu0 %v1974
        %v1976 = vpop.xlane.xlu0 %1975
        %v1977 = vsel %vm915, %v1973, 0.0
        %1978 = vadd.xlane.f32.xlu0 %v1977
        %v1979 = vpop.xlane.xlu0 %1978
        %v1980 = vrcp.pop %v1976
        %v1981 = vrcp.pop %v1979
        %v1982 = vmul.f32 %v1971, %v1980
        %v1983 = vmul.f32 %v1973, %v1981
        %v1984 = vpack.c.bf16 %v1983, %v1982
        %v1986 = vsel %vm915, %v1984, 0
        %1988 = vmatprep.subr.bf16.mxu0 0
        %1989 = vmatpush1.bf16.msra.mxu0 0
        %1990 = vmatprep.subr.bf16.mxu0 0
        %1991 = vmatpush1.bf16.msra.mxu0 0
        %1992 = vmatprep.subr.bf16.mxu0 0
        %1993 = vmatpush1.bf16.msra.mxu0 0
        %1994 = vmatprep.subr.bf16.mxu0 0
        %1995 = vmatpush1.bf16.msra.mxu0 0
        %1996 = vmatprep.subr.bf16.mxu0 0
        %1997 = vmatpush1.bf16.msra.mxu0 0
        %1998 = vmatprep.subr.bf16.mxu0 0
        %1999 = vmatpush1.bf16.msra.mxu0 0
        %2000 = vmatprep.subr.bf16.mxu0 0
        %2001 = vmatpush1.bf16.msra.mxu0 0
        %2002 = vmatprep.subr.bf16.mxu0 0
        %2003 = vmatpush1.bf16.msra.mxu0 %v1905
        %2004 = vmatprep.subr.bf16.mxu0 0
        %2005 = vmatpush2.bf16.msra.mxu0 0
        %2006 = vmatprep.subr.bf16.mxu0 0
        %2007 = vmatpush2.bf16.msra.mxu0 0
        %2008 = vmatprep.subr.bf16.mxu0 0
        %2009 = vmatpush2.bf16.msra.mxu0 0
        %2010 = vmatprep.subr.bf16.mxu0 0
        %2011 = vmatpush2.bf16.msra.mxu0 0
        %2012 = vmatprep.subr.bf16.mxu0 0
        %2013 = vmatpush2.bf16.msra.mxu0 0
        %2014 = vmatprep.subr.bf16.mxu0 0
        %2015 = vmatpush2.bf16.msra.mxu0 0
        %2016 = vmatprep.subr.bf16.mxu0 0
        %2017 = vmatpush2.bf16.msra.mxu0 0
        %2018 = vmatprep.subr.bf16.mxu0 0
        %2019 = vmatpush2.bf16.msra.mxu0 0
        %2020 = vmatprep.mubr.bf16.mxu0 0
        %2021 = vmatmul.mubr.bf16.gmra.mxu0 %v1986
        %v2022 = vpop.f32.mrf.mxu0
        %v2023 = vadd.f32 0.0, %v2022
        %v2024 = vpop.f32.mrf.mxu0
        %v2025 = vpop.f32.mrf.mxu0
        %v2026 = vadd.f32 0.0, %v2025
        %v2027 = vpop.f32.mrf.mxu0
        %2028 = vdwg.mxu0
        %v2029 = vpack.c.bf16 %v2026, %v2023
        %v2034 = vunpack.c.l.b16 %v1911
        %v2035 = vunpack.c.l.b16 %v1912
        %v2036 = vunpack.c.l.b16 %v1913
        %v2037 = vunpack.c.l.b16 %v1914
        %v2038 = vpack.c.b16 %v2035, %v2034
        %v2039 = vpack.c.b16 %v2037, %v2036
        %v2043 = vsel %vm865, %v2029, 0
        %2045 = vmatprep.subr.bf16.mxu0 0
        %2046 = vmatpush1.bf16.msra.mxu0 0
        %2047 = vmatprep.subr.bf16.mxu0 0
        %2048 = vmatpush1.bf16.msra.mxu0 0
        %2049 = vmatprep.subr.bf16.mxu0 0
        %2050 = vmatpush1.bf16.msra.mxu0 0
        %2051 = vmatprep.subr.bf16.mxu0 0
        %2052 = vmatpush1.bf16.msra.mxu0 0
        %2053 = vmatprep.subr.bf16.mxu0 0
        %2054 = vmatpush1.bf16.msra.mxu0 0
        %2055 = vmatprep.subr.bf16.mxu0 0
        %2056 = vmatpush1.bf16.msra.mxu0 0
        %2057 = vmatprep.subr.bf16.mxu0 0
        %2058 = vmatpush1.bf16.msra.mxu0 %v2039
        %2059 = vmatprep.subr.bf16.mxu0 0
        %2060 = vmatpush1.bf16.msra.mxu0 %v2038
        %2061 = vmatprep.subr.bf16.mxu0 0
        %2062 = vmatpush2.bf16.msra.mxu0 0
        %2063 = vmatprep.subr.bf16.mxu0 0
        %2064 = vmatpush2.bf16.msra.mxu0 0
        %2065 = vmatprep.subr.bf16.mxu0 0
        %2066 = vmatpush2.bf16.msra.mxu0 0
        %2067 = vmatprep.subr.bf16.mxu0 0
        %2068 = vmatpush2.bf16.msra.mxu0 0
        %2069 = vmatprep.subr.bf16.mxu0 0
        %2070 = vmatpush2.bf16.msra.mxu0 0
        %2071 = vmatprep.subr.bf16.mxu0 0
        %2072 = vmatpush2.bf16.msra.mxu0 0
        %2073 = vmatprep.subr.bf16.mxu0 0
        %2074 = vmatpush2.bf16.msra.mxu0 0
        %2075 = vmatprep.subr.bf16.mxu0 0
        %2076 = vmatpush2.bf16.msra.mxu0 0
        %2077 = vmatprep.mubr.bf16.mxu0 0
        %2078 = vmatmul.mubr.bf16.gmra.mxu0 %v2043
        %v2079 = vpop.f32.mrf.mxu0
        %v2080 = vadd.f32 0.0, %v2079
        %v2081 = vpop.f32.mrf.mxu0
        %v2082 = vpop.f32.mrf.mxu0
        %v2083 = vadd.f32 0.0, %v2082
        %v2084 = vpop.f32.mrf.mxu0
        %2085 = vdwg.mxu0
        %v2086 = vadd.f32 %v1910, %v2080
        %v2087 = vadd.f32 %v1910, %v2083
        %v2088 = vld [vmem:[#allocation7 + $0x10] sm:$0xf]
        %v2089 = vld [vmem:[#allocation7 + $0x14] sm:$0xf]
        %v2090 = vld [vmem:[#allocation7 + $0x18] sm:$0xf]
        %v2091 = vld [vmem:[#allocation7 + $0x1c] sm:$0xf]
        %2093 = vrot.lane.b32.xlu0 %v1903, 96
        %v2094 = vpop.permute.xlu0 %2093
        %2096 = vrot.lane.b32.xlu0 %v1904, 96
        %v2097 = vpop.permute.xlu0 %2096
        %v2099 = vsel %vm865, %v2094, 0
        %v2102 = vsel %vm865, %v2097, 0
        %2104 = vmatprep.subr.bf16.mxu0 0
        %2105 = vmatpush1.bf16.xpose.msra.mxu0 0
        %2106 = vmatprep.subr.bf16.mxu0 0
        %2107 = vmatpush1.bf16.xpose.msra.mxu0 0
        %2108 = vmatprep.subr.bf16.mxu0 0
        %2109 = vmatpush1.bf16.xpose.msra.mxu0 0
        %2110 = vmatprep.subr.bf16.mxu0 0
        %2111 = vmatpush1.bf16.xpose.msra.mxu0 0
        %2112 = vmatprep.subr.bf16.mxu0 0
        %2113 = vmatpush1.bf16.xpose.msra.mxu0 0
        %2114 = vmatprep.subr.bf16.mxu0 0
        %2115 = vmatpush1.bf16.xpose.msra.mxu0 0
        %2116 = vmatprep.subr.bf16.mxu0 0
        %2117 = vmatpush1.bf16.xpose.msra.mxu0 0
        %2118 = vmatprep.subr.bf16.mxu0 0
        %2119 = vmatpush1.bf16.xpose.msra.mxu0 %v2102
        %2120 = vmatprep.subr.bf16.mxu0 0
        %2121 = vmatpush2.bf16.xpose.msra.mxu0 0
        %2122 = vmatprep.subr.bf16.mxu0 0
        %2123 = vmatpush2.bf16.xpose.msra.mxu0 0
        %2124 = vmatprep.subr.bf16.mxu0 0
        %2125 = vmatpush2.bf16.xpose.msra.mxu0 0
        %2126 = vmatprep.subr.bf16.mxu0 0
        %2127 = vmatpush2.bf16.xpose.msra.mxu0 0
        %2128 = vmatprep.subr.bf16.mxu0 0
        %2129 = vmatpush2.bf16.xpose.msra.mxu0 0
        %2130 = vmatprep.subr.bf16.mxu0 0
        %2131 = vmatpush2.bf16.xpose.msra.mxu0 0
        %2132 = vmatprep.subr.bf16.mxu0 0
        %2133 = vmatpush2.bf16.xpose.msra.mxu0 0
        %2134 = vmatprep.subr.bf16.mxu0 0
        %2135 = vmatpush2.bf16.xpose.msra.mxu0 0
        %2136 = vmatprep.mubr.bf16.mxu0 0
        %2137 = vmatmul.mubr.bf16.gmra.mxu0 %v2099
        %v2138 = vpop.f32.mrf.mxu0
        %v2139 = vadd.f32 0.0, %v2138
        %v2140 = vpop.f32.mrf.mxu0
        %v2141 = vpop.f32.mrf.mxu0
        %v2142 = vadd.f32 0.0, %v2141
        %v2143 = vpop.f32.mrf.mxu0
        %2144 = vdwg.mxu0
        %v2145 = vsel %vm915, %v2139, -inf
        %2146 = vmax.xlane.f32.xlu0 %v2145
        %v2147 = vpop.xlane.xlu0 %2146
        %v2148 = vsel %vm915, %v2142, -inf
        %2149 = vmax.xlane.f32.xlu0 %v2148
        %v2150 = vpop.xlane.xlu0 %2149
        %v2151 = vsub.f32 %v2139, %v2147
        %v2152 = vsub.f32 %v2142, %v2150
        %v2153 = vmul.f32 %v2151, 1.442695
        %v2154 = vpow.pop %v2153
        %v2155 = vmul.f32 %v2152, 1.442695
        %v2156 = vpow.pop %v2155
        %v2157 = vsel %vm915, %v2154, 0.0
        %2158 = vadd.xlane.f32.xlu0 %v2157
        %v2159 = vpop.xlane.xlu0 %2158
        %v2160 = vsel %vm915, %v2156, 0.0
        %2161 = vadd.xlane.f32.xlu0 %v2160
        %v2162 = vpop.xlane.xlu0 %2161
        %v2163 = vrcp.pop %v2159
        %v2164 = vrcp.pop %v2162
        %v2165 = vmul.f32 %v2154, %v2163
        %v2166 = vmul.f32 %v2156, %v2164
        %v2167 = vpack.c.bf16 %v2166, %v2165
        %2169 = vrot.lane.b32.xlu0 %v1905, 96
        %v2170 = vpop.permute.xlu0 %2169
        %v2173 = vsel %vm915, %v2167, 0
        %2175 = vmatprep.subr.bf16.mxu0 0
        %2176 = vmatpush1.bf16.msra.mxu0 0
        %2177 = vmatprep.subr.bf16.mxu0 0
        %2178 = vmatpush1.bf16.msra.mxu0 0
        %2179 = vmatprep.subr.bf16.mxu0 0
        %2180 = vmatpush1.bf16.msra.mxu0 0
        %2181 = vmatprep.subr.bf16.mxu0 0
        %2182 = vmatpush1.bf16.msra.mxu0 0
        %2183 = vmatprep.subr.bf16.mxu0 0
        %2184 = vmatpush1.bf16.msra.mxu0 0
        %2185 = vmatprep.subr.bf16.mxu0 0
        %2186 = vmatpush1.bf16.msra.mxu0 0
        %2187 = vmatprep.subr.bf16.mxu0 0
        %2188 = vmatpush1.bf16.msra.mxu0 0
        %2189 = vmatprep.subr.bf16.mxu0 0
        %2190 = vmatpush1.bf16.msra.mxu0 %v2170
        %2191 = vmatprep.subr.bf16.mxu0 0
        %2192 = vmatpush2.bf16.msra.mxu0 0
        %2193 = vmatprep.subr.bf16.mxu0 0
        %2194 = vmatpush2.bf16.msra.mxu0 0
        %2195 = vmatprep.subr.bf16.mxu0 0
        %2196 = vmatpush2.bf16.msra.mxu0 0
        %2197 = vmatprep.subr.bf16.mxu0 0
        %2198 = vmatpush2.bf16.msra.mxu0 0
        %2199 = vmatprep.subr.bf16.mxu0 0
        %2200 = vmatpush2.bf16.msra.mxu0 0
        %2201 = vmatprep.subr.bf16.mxu0 0
        %2202 = vmatpush2.bf16.msra.mxu0 0
        %2203 = vmatprep.subr.bf16.mxu0 0
        %2204 = vmatpush2.bf16.msra.mxu0 0
        %2205 = vmatprep.subr.bf16.mxu0 0
        %2206 = vmatpush2.bf16.msra.mxu0 0
        %2207 = vmatprep.mubr.bf16.mxu0 0
        %2208 = vmatmul.mubr.bf16.gmra.mxu0 %v2173
        %v2209 = vpop.f32.mrf.mxu0
        %v2210 = vadd.f32 0.0, %v2209
        %v2211 = vpop.f32.mrf.mxu0
        %v2212 = vpop.f32.mrf.mxu0
        %v2213 = vadd.f32 0.0, %v2212
        %v2214 = vpop.f32.mrf.mxu0
        %2215 = vdwg.mxu0
        %v2216 = vpack.c.bf16 %v2213, %v2210
        %v2221 = vunpack.c.l.b16 %v2088
        %v2222 = vunpack.c.l.b16 %v2089
        %v2223 = vunpack.c.l.b16 %v2090
        %v2224 = vunpack.c.l.b16 %v2091
        %v2225 = vpack.c.b16 %v2222, %v2221
        %v2226 = vpack.c.b16 %v2224, %v2223
        %v2230 = vsel %vm865, %v2216, 0
        %2232 = vmatprep.subr.bf16.mxu0 0
        %2233 = vmatpush1.bf16.msra.mxu0 0
        %2234 = vmatprep.subr.bf16.mxu0 0
        %2235 = vmatpush1.bf16.msra.mxu0 0
        %2236 = vmatprep.subr.bf16.mxu0 0
        %2237 = vmatpush1.bf16.msra.mxu0 0
        %2238 = vmatprep.subr.bf16.mxu0 0
        %2239 = vmatpush1.bf16.msra.mxu0 0
        %2240 = vmatprep.subr.bf16.mxu0 0
        %2241 = vmatpush1.bf16.msra.mxu0 0
        %2242 = vmatprep.subr.bf16.mxu0 0
        %2243 = vmatpush1.bf16.msra.mxu0 0
        %2244 = vmatprep.subr.bf16.mxu0 0
        %2245 = vmatpush1.bf16.msra.mxu0 %v2226
        %2246 = vmatprep.subr.bf16.mxu0 0
        %2247 = vmatpush1.bf16.msra.mxu0 %v2225
        %2248 = vmatprep.subr.bf16.mxu0 0
        %2249 = vmatpush2.bf16.msra.mxu0 0
        %2250 = vmatprep.subr.bf16.mxu0 0
        %2251 = vmatpush2.bf16.msra.mxu0 0
        %2252 = vmatprep.subr.bf16.mxu0 0
        %2253 = vmatpush2.bf16.msra.mxu0 0
        %2254 = vmatprep.subr.bf16.mxu0 0
        %2255 = vmatpush2.bf16.msra.mxu0 0
        %2256 = vmatprep.subr.bf16.mxu0 0
        %2257 = vmatpush2.bf16.msra.mxu0 0
        %2258 = vmatprep.subr.bf16.mxu0 0
        %2259 = vmatpush2.bf16.msra.mxu0 0
        %2260 = vmatprep.subr.bf16.mxu0 0
        %2261 = vmatpush2.bf16.msra.mxu0 0
        %2262 = vmatprep.subr.bf16.mxu0 0
        %2263 = vmatpush2.bf16.msra.mxu0 0
        %2264 = vmatprep.mubr.bf16.mxu0 0
        %2265 = vmatmul.mubr.bf16.gmra.mxu0 %v2230
        %v2266 = vpop.f32.mrf.mxu0
        %v2267 = vadd.f32 0.0, %v2266
        %v2268 = vpop.f32.mrf.mxu0
        %v2269 = vpop.f32.mrf.mxu0
        %v2270 = vadd.f32 0.0, %v2269
        %v2271 = vpop.f32.mrf.mxu0
        %2272 = vdwg.mxu0
        %v2273 = vadd.f32 %v2086, %v2267
        %v2274 = vadd.f32 %v2087, %v2270
        %v2275 = vld [vmem:[#allocation7 + $0x20] sm:$0xf]
        %v2276 = vld [vmem:[#allocation7 + $0x24] sm:$0xf]
        %v2277 = vld [vmem:[#allocation7 + $0x28] sm:$0xf]
        %v2278 = vld [vmem:[#allocation7 + $0x2c] sm:$0xf]
        %2279 = vrot.lane.b32.xlu0 %v1903, 64
        %v2280 = vpop.permute.xlu0 %2279
        %2281 = vrot.lane.b32.xlu0 %v1904, 64
        %v2282 = vpop.permute.xlu0 %2281
        %v2284 = vsel %vm865, %v2280, 0
        %v2287 = vsel %vm865, %v2282, 0
        %2289 = vmatprep.subr.bf16.mxu0 0
        %2290 = vmatpush1.bf16.xpose.msra.mxu0 0
        %2291 = vmatprep.subr.bf16.mxu0 0
        %2292 = vmatpush1.bf16.xpose.msra.mxu0 0
        %2293 = vmatprep.subr.bf16.mxu0 0
        %2294 = vmatpush1.bf16.xpose.msra.mxu0 0
        %2295 = vmatprep.subr.bf16.mxu0 0
        %2296 = vmatpush1.bf16.xpose.msra.mxu0 0
        %2297 = vmatprep.subr.bf16.mxu0 0
        %2298 = vmatpush1.bf16.xpose.msra.mxu0 0
        %2299 = vmatprep.subr.bf16.mxu0 0
        %2300 = vmatpush1.bf16.xpose.msra.mxu0 0
        %2301 = vmatprep.subr.bf16.mxu0 0
        %2302 = vmatpush1.bf16.xpose.msra.mxu0 0
        %2303 = vmatprep.subr.bf16.mxu0 0
        %2304 = vmatpush1.bf16.xpose.msra.mxu0 %v2287
        %2305 = vmatprep.subr.bf16.mxu0 0
        %2306 = vmatpush2.bf16.xpose.msra.mxu0 0
        %2307 = vmatprep.subr.bf16.mxu0 0
        %2308 = vmatpush2.bf16.xpose.msra.mxu0 0
        %2309 = vmatprep.subr.bf16.mxu0 0
        %2310 = vmatpush2.bf16.xpose.msra.mxu0 0
        %2311 = vmatprep.subr.bf16.mxu0 0
        %2312 = vmatpush2.bf16.xpose.msra.mxu0 0
        %2313 = vmatprep.subr.bf16.mxu0 0
        %2314 = vmatpush2.bf16.xpose.msra.mxu0 0
        %2315 = vmatprep.subr.bf16.mxu0 0
        %2316 = vmatpush2.bf16.xpose.msra.mxu0 0
        %2317 = vmatprep.subr.bf16.mxu0 0
        %2318 = vmatpush2.bf16.xpose.msra.mxu0 0
        %2319 = vmatprep.subr.bf16.mxu0 0
        %2320 = vmatpush2.bf16.xpose.msra.mxu0 0
        %2321 = vmatprep.mubr.bf16.mxu0 0
        %2322 = vmatmul.mubr.bf16.gmra.mxu0 %v2284
        %v2323 = vpop.f32.mrf.mxu0
        %v2324 = vadd.f32 0.0, %v2323
        %v2325 = vpop.f32.mrf.mxu0
        %v2326 = vpop.f32.mrf.mxu0
        %v2327 = vadd.f32 0.0, %v2326
        %v2328 = vpop.f32.mrf.mxu0
        %2329 = vdwg.mxu0
        %v2330 = vsel %vm915, %v2324, -inf
        %2331 = vmax.xlane.f32.xlu0 %v2330
        %v2332 = vpop.xlane.xlu0 %2331
        %v2333 = vsel %vm915, %v2327, -inf
        %2334 = vmax.xlane.f32.xlu0 %v2333
        %v2335 = vpop.xlane.xlu0 %2334
        %v2336 = vsub.f32 %v2324, %v2332
        %v2337 = vsub.f32 %v2327, %v2335
        %v2338 = vmul.f32 %v2336, 1.442695
        %v2339 = vpow.pop %v2338
        %v2340 = vmul.f32 %v2337, 1.442695
        %v2341 = vpow.pop %v2340
        %v2342 = vsel %vm915, %v2339, 0.0
        %2343 = vadd.xlane.f32.xlu0 %v2342
        %v2344 = vpop.xlane.xlu0 %2343
        %v2345 = vsel %vm915, %v2341, 0.0
        %2346 = vadd.xlane.f32.xlu0 %v2345
        %v2347 = vpop.xlane.xlu0 %2346
        %v2348 = vrcp.pop %v2344
        %v2349 = vrcp.pop %v2347
        %v2350 = vmul.f32 %v2339, %v2348
        %v2351 = vmul.f32 %v2341, %v2349
        %v2352 = vpack.c.bf16 %v2351, %v2350
        %2353 = vrot.lane.b32.xlu0 %v1905, 64
        %v2354 = vpop.permute.xlu0 %2353
        %v2357 = vsel %vm915, %v2352, 0
        %2359 = vmatprep.subr.bf16.mxu0 0
        %2360 = vmatpush1.bf16.msra.mxu0 0
        %2361 = vmatprep.subr.bf16.mxu0 0
        %2362 = vmatpush1.bf16.msra.mxu0 0
        %2363 = vmatprep.subr.bf16.mxu0 0
        %2364 = vmatpush1.bf16.msra.mxu0 0
        %2365 = vmatprep.subr.bf16.mxu0 0
        %2366 = vmatpush1.bf16.msra.mxu0 0
        %2367 = vmatprep.subr.bf16.mxu0 0
        %2368 = vmatpush1.bf16.msra.mxu0 0
        %2369 = vmatprep.subr.bf16.mxu0 0
        %2370 = vmatpush1.bf16.msra.mxu0 0
        %2371 = vmatprep.subr.bf16.mxu0 0
        %2372 = vmatpush1.bf16.msra.mxu0 0
        %2373 = vmatprep.subr.bf16.mxu0 0
        %2374 = vmatpush1.bf16.msra.mxu0 %v2354
        %2375 = vmatprep.subr.bf16.mxu0 0
        %2376 = vmatpush2.bf16.msra.mxu0 0
        %2377 = vmatprep.subr.bf16.mxu0 0
        %2378 = vmatpush2.bf16.msra.mxu0 0
        %2379 = vmatprep.subr.bf16.mxu0 0
        %2380 = vmatpush2.bf16.msra.mxu0 0
        %2381 = vmatprep.subr.bf16.mxu0 0
        %2382 = vmatpush2.bf16.msra.mxu0 0
        %2383 = vmatprep.subr.bf16.mxu0 0
        %2384 = vmatpush2.bf16.msra.mxu0 0
        %2385 = vmatprep.subr.bf16.mxu0 0
        %2386 = vmatpush2.bf16.msra.mxu0 0
        %2387 = vmatprep.subr.bf16.mxu0 0
        %2388 = vmatpush2.bf16.msra.mxu0 0
        %2389 = vmatprep.subr.bf16.mxu0 0
        %2390 = vmatpush2.bf16.msra.mxu0 0
        %2391 = vmatprep.mubr.bf16.mxu0 0
        %2392 = vmatmul.mubr.bf16.gmra.mxu0 %v2357
        %v2393 = vpop.f32.mrf.mxu0
        %v2394 = vadd.f32 0.0, %v2393
        %v2395 = vpop.f32.mrf.mxu0
        %v2396 = vpop.f32.mrf.mxu0
        %v2397 = vadd.f32 0.0, %v2396
        %v2398 = vpop.f32.mrf.mxu0
        %2399 = vdwg.mxu0
        %v2400 = vpack.c.bf16 %v2397, %v2394
        %v2405 = vunpack.c.l.b16 %v2275
        %v2406 = vunpack.c.l.b16 %v2276
        %v2407 = vunpack.c.l.b16 %v2277
        %v2408 = vunpack.c.l.b16 %v2278
        %v2409 = vpack.c.b16 %v2406, %v2405
        %v2410 = vpack.c.b16 %v2408, %v2407
        %v2414 = vsel %vm865, %v2400, 0
        %2416 = vmatprep.subr.bf16.mxu0 0
        %2417 = vmatpush1.bf16.msra.mxu0 0
        %2418 = vmatprep.subr.bf16.mxu0 0
        %2419 = vmatpush1.bf16.msra.mxu0 0
        %2420 = vmatprep.subr.bf16.mxu0 0
        %2421 = vmatpush1.bf16.msra.mxu0 0
        %2422 = vmatprep.subr.bf16.mxu0 0
        %2423 = vmatpush1.bf16.msra.mxu0 0
        %2424 = vmatprep.subr.bf16.mxu0 0
        %2425 = vmatpush1.bf16.msra.mxu0 0
        %2426 = vmatprep.subr.bf16.mxu0 0
        %2427 = vmatpush1.bf16.msra.mxu0 0
        %2428 = vmatprep.subr.bf16.mxu0 0
        %2429 = vmatpush1.bf16.msra.mxu0 %v2410
        %2430 = vmatprep.subr.bf16.mxu0 0
        %2431 = vmatpush1.bf16.msra.mxu0 %v2409
        %2432 = vmatprep.subr.bf16.mxu0 0
        %2433 = vmatpush2.bf16.msra.mxu0 0
        %2434 = vmatprep.subr.bf16.mxu0 0
        %2435 = vmatpush2.bf16.msra.mxu0 0
        %2436 = vmatprep.subr.bf16.mxu0 0
        %2437 = vmatpush2.bf16.msra.mxu0 0
        %2438 = vmatprep.subr.bf16.mxu0 0
        %2439 = vmatpush2.bf16.msra.mxu0 0
        %2440 = vmatprep.subr.bf16.mxu0 0
        %2441 = vmatpush2.bf16.msra.mxu0 0
        %2442 = vmatprep.subr.bf16.mxu0 0
        %2443 = vmatpush2.bf16.msra.mxu0 0
        %2444 = vmatprep.subr.bf16.mxu0 0
        %2445 = vmatpush2.bf16.msra.mxu0 0
        %2446 = vmatprep.subr.bf16.mxu0 0
        %2447 = vmatpush2.bf16.msra.mxu0 0
        %2448 = vmatprep.mubr.bf16.mxu0 0
        %2449 = vmatmul.mubr.bf16.gmra.mxu0 %v2414
        %v2450 = vpop.f32.mrf.mxu0
        %v2451 = vadd.f32 0.0, %v2450
        %v2452 = vpop.f32.mrf.mxu0
        %v2453 = vpop.f32.mrf.mxu0
        %v2454 = vadd.f32 0.0, %v2453
        %v2455 = vpop.f32.mrf.mxu0
        %2456 = vdwg.mxu0
        %v2457 = vadd.f32 %v2273, %v2451
        %v2458 = vadd.f32 %v2274, %v2454
        %v2459 = vld [vmem:[#allocation7 + $0x30] sm:$0xf]
        %v2460 = vld [vmem:[#allocation7 + $0x34] sm:$0xf]
        %v2461 = vld [vmem:[#allocation7 + $0x38] sm:$0xf]
        %v2462 = vld [vmem:[#allocation7 + $0x3c] sm:$0xf]
        %2463 = vrot.lane.b32.xlu0 %v1903, 32
        %v2464 = vpop.permute.xlu0 %2463
        %2465 = vrot.lane.b32.xlu0 %v1904, 32
        %v2466 = vpop.permute.xlu0 %2465
        %v2468 = vsel %vm865, %v2464, 0
        %v2471 = vsel %vm865, %v2466, 0
        %2473 = vmatprep.subr.bf16.mxu0 0
        %2474 = vmatpush1.bf16.xpose.msra.mxu0 0
        %2475 = vmatprep.subr.bf16.mxu0 0
        %2476 = vmatpush1.bf16.xpose.msra.mxu0 0
        %2477 = vmatprep.subr.bf16.mxu0 0
        %2478 = vmatpush1.bf16.xpose.msra.mxu0 0
        %2479 = vmatprep.subr.bf16.mxu0 0
        %2480 = vmatpush1.bf16.xpose.msra.mxu0 0
        %2481 = vmatprep.subr.bf16.mxu0 0
        %2482 = vmatpush1.bf16.xpose.msra.mxu0 0
        %2483 = vmatprep.subr.bf16.mxu0 0
        %2484 = vmatpush1.bf16.xpose.msra.mxu0 0
        %2485 = vmatprep.subr.bf16.mxu0 0
        %2486 = vmatpush1.bf16.xpose.msra.mxu0 0
        %2487 = vmatprep.subr.bf16.mxu0 0
        %2488 = vmatpush1.bf16.xpose.msra.mxu0 %v2471
        %2489 = vmatprep.subr.bf16.mxu0 0
        %2490 = vmatpush2.bf16.xpose.msra.mxu0 0
        %2491 = vmatprep.subr.bf16.mxu0 0
        %2492 = vmatpush2.bf16.xpose.msra.mxu0 0
        %2493 = vmatprep.subr.bf16.mxu0 0
        %2494 = vmatpush2.bf16.xpose.msra.mxu0 0
        %2495 = vmatprep.subr.bf16.mxu0 0
        %2496 = vmatpush2.bf16.xpose.msra.mxu0 0
        %2497 = vmatprep.subr.bf16.mxu0 0
        %2498 = vmatpush2.bf16.xpose.msra.mxu0 0
        %2499 = vmatprep.subr.bf16.mxu0 0
        %2500 = vmatpush2.bf16.xpose.msra.mxu0 0
        %2501 = vmatprep.subr.bf16.mxu0 0
        %2502 = vmatpush2.bf16.xpose.msra.mxu0 0
        %2503 = vmatprep.subr.bf16.mxu0 0
        %2504 = vmatpush2.bf16.xpose.msra.mxu0 0
        %2505 = vmatprep.mubr.bf16.mxu0 0
        %2506 = vmatmul.mubr.bf16.gmra.mxu0 %v2468
        %v2507 = vpop.f32.mrf.mxu0
        %v2508 = vadd.f32 0.0, %v2507
        %v2509 = vpop.f32.mrf.mxu0
        %v2510 = vpop.f32.mrf.mxu0
        %v2511 = vadd.f32 0.0, %v2510
        %v2512 = vpop.f32.mrf.mxu0
        %2513 = vdwg.mxu0
        %v2514 = vsel %vm915, %v2508, -inf
        %2515 = vmax.xlane.f32.xlu0 %v2514
        %v2516 = vpop.xlane.xlu0 %2515
        %v2517 = vsel %vm915, %v2511, -inf
        %2518 = vmax.xlane.f32.xlu0 %v2517
        %v2519 = vpop.xlane.xlu0 %2518
        %v2520 = vsub.f32 %v2508, %v2516
        %v2521 = vsub.f32 %v2511, %v2519
        %v2522 = vmul.f32 %v2520, 1.442695
        %v2523 = vpow.pop %v2522
        %v2524 = vmul.f32 %v2521, 1.442695
        %v2525 = vpow.pop %v2524
        %v2526 = vsel %vm915, %v2523, 0.0
        %2527 = vadd.xlane.f32.xlu0 %v2526
        %v2528 = vpop.xlane.xlu0 %2527
        %v2529 = vsel %vm915, %v2525, 0.0
        %2530 = vadd.xlane.f32.xlu0 %v2529
        %v2531 = vpop.xlane.xlu0 %2530
        %v2532 = vrcp.pop %v2528
        %v2533 = vrcp.pop %v2531
        %v2534 = vmul.f32 %v2523, %v2532
        %v2535 = vmul.f32 %v2525, %v2533
        %v2536 = vpack.c.bf16 %v2535, %v2534
        %2537 = vrot.lane.b32.xlu0 %v1905, 32
        %v2538 = vpop.permute.xlu0 %2537
        %v2541 = vsel %vm915, %v2536, 0
        %2543 = vmatprep.subr.bf16.mxu0 0
        %2544 = vmatpush1.bf16.msra.mxu0 0
        %2545 = vmatprep.subr.bf16.mxu0 0
        %2546 = vmatpush1.bf16.msra.mxu0 0
        %2547 = vmatprep.subr.bf16.mxu0 0
        %2548 = vmatpush1.bf16.msra.mxu0 0
        %2549 = vmatprep.subr.bf16.mxu0 0
        %2550 = vmatpush1.bf16.msra.mxu0 0
        %2551 = vmatprep.subr.bf16.mxu0 0
        %2552 = vmatpush1.bf16.msra.mxu0 0
        %2553 = vmatprep.subr.bf16.mxu0 0
        %2554 = vmatpush1.bf16.msra.mxu0 0
        %2555 = vmatprep.subr.bf16.mxu0 0
        %2556 = vmatpush1.bf16.msra.mxu0 0
        %2557 = vmatprep.subr.bf16.mxu0 0
        %2558 = vmatpush1.bf16.msra.mxu0 %v2538
        %2559 = vmatprep.subr.bf16.mxu0 0
        %2560 = vmatpush2.bf16.msra.mxu0 0
        %2561 = vmatprep.subr.bf16.mxu0 0
        %2562 = vmatpush2.bf16.msra.mxu0 0
        %2563 = vmatprep.subr.bf16.mxu0 0
        %2564 = vmatpush2.bf16.msra.mxu0 0
        %2565 = vmatprep.subr.bf16.mxu0 0
        %2566 = vmatpush2.bf16.msra.mxu0 0
        %2567 = vmatprep.subr.bf16.mxu0 0
        %2568 = vmatpush2.bf16.msra.mxu0 0
        %2569 = vmatprep.subr.bf16.mxu0 0
        %2570 = vmatpush2.bf16.msra.mxu0 0
        %2571 = vmatprep.subr.bf16.mxu0 0
        %2572 = vmatpush2.bf16.msra.mxu0 0
        %2573 = vmatprep.subr.bf16.mxu0 0
        %2574 = vmatpush2.bf16.msra.mxu0 0
        %2575 = vmatprep.mubr.bf16.mxu0 0
        %2576 = vmatmul.mubr.bf16.gmra.mxu0 %v2541
        %v2577 = vpop.f32.mrf.mxu0
        %v2578 = vadd.f32 0.0, %v2577
        %v2579 = vpop.f32.mrf.mxu0
        %v2580 = vpop.f32.mrf.mxu0
        %v2581 = vadd.f32 0.0, %v2580
        %v2582 = vpop.f32.mrf.mxu0
        %2583 = vdwg.mxu0
        %v2584 = vpack.c.bf16 %v2581, %v2578
        %v2589 = vunpack.c.l.b16 %v2459
        %v2590 = vunpack.c.l.b16 %v2460
        %v2591 = vunpack.c.l.b16 %v2461
        %v2592 = vunpack.c.l.b16 %v2462
        %v2593 = vpack.c.b16 %v2590, %v2589
        %v2594 = vpack.c.b16 %v2592, %v2591
        %v2598 = vsel %vm865, %v2584, 0
        %2600 = vmatprep.subr.bf16.mxu0 0
        %2601 = vmatpush1.bf16.msra.mxu0 0
        %2602 = vmatprep.subr.bf16.mxu0 0
        %2603 = vmatpush1.bf16.msra.mxu0 0
        %2604 = vmatprep.subr.bf16.mxu0 0
        %2605 = vmatpush1.bf16.msra.mxu0 0
        %2606 = vmatprep.subr.bf16.mxu0 0
        %2607 = vmatpush1.bf16.msra.mxu0 0
        %2608 = vmatprep.subr.bf16.mxu0 0
        %2609 = vmatpush1.bf16.msra.mxu0 0
        %2610 = vmatprep.subr.bf16.mxu0 0
        %2611 = vmatpush1.bf16.msra.mxu0 0
        %2612 = vmatprep.subr.bf16.mxu0 0
        %2613 = vmatpush1.bf16.msra.mxu0 %v2594
        %2614 = vmatprep.subr.bf16.mxu0 0
        %2615 = vmatpush1.bf16.msra.mxu0 %v2593
        %2616 = vmatprep.subr.bf16.mxu0 0
        %2617 = vmatpush2.bf16.msra.mxu0 0
        %2618 = vmatprep.subr.bf16.mxu0 0
        %2619 = vmatpush2.bf16.msra.mxu0 0
        %2620 = vmatprep.subr.bf16.mxu0 0
        %2621 = vmatpush2.bf16.msra.mxu0 0
        %2622 = vmatprep.subr.bf16.mxu0 0
        %2623 = vmatpush2.bf16.msra.mxu0 0
        %2624 = vmatprep.subr.bf16.mxu0 0
        %2625 = vmatpush2.bf16.msra.mxu0 0
        %2626 = vmatprep.subr.bf16.mxu0 0
        %2627 = vmatpush2.bf16.msra.mxu0 0
        %2628 = vmatprep.subr.bf16.mxu0 0
        %2629 = vmatpush2.bf16.msra.mxu0 0
        %2630 = vmatprep.subr.bf16.mxu0 0
        %2631 = vmatpush2.bf16.msra.mxu0 0
        %2632 = vmatprep.mubr.bf16.mxu0 0
        %2633 = vmatmul.mubr.bf16.gmra.mxu0 %v2598
        %v2634 = vpop.f32.mrf.mxu0
        %v2635 = vadd.f32 0.0, %v2634
        %v2636 = vpop.f32.mrf.mxu0
        %v2637 = vpop.f32.mrf.mxu0
        %v2638 = vadd.f32 0.0, %v2637
        %v2639 = vpop.f32.mrf.mxu0
        %2640 = vdwg.mxu0
        %v2641 = vadd.f32 %v2457, %v2635
        %v2642 = vadd.f32 %v2458, %v2638
        %v2643 = vadd.f32 %v1638, %v2641
        %v2644 = vadd.f32 %v1639, %v2642
        %2645 = vadd.xlane.f32.xlu0 %v2643
        %v2646 = vpop.xlane.xlu0 %2645
        %2647 = vadd.xlane.f32.xlu0 %v2644
        %v2648 = vpop.xlane.xlu0 %2647
        %v2649 = vmul.f32 %v2646, %v1609
        %v2650 = vmul.f32 %v2648, %v1609
        %v2651 = vsub.f32 %v2643, %v2649
        %v2652 = vsub.f32 %v2644, %v2650
        %v2653 = vmul.f32 %v2651, %v2651
        %v2654 = vmul.f32 %v2652, %v2652
        %2655 = vadd.xlane.f32.xlu0 %v2653
        %v2656 = vpop.xlane.xlu0 %2655
        %2657 = vadd.xlane.f32.xlu0 %v2654
        %v2658 = vpop.xlane.xlu0 %2657
        %v2659 = vmul.f32 %v2656, %v1609
        %v2660 = vmul.f32 %v2658, %v1609
        %v2661 = vadd.f32 %v2659, 1e-05
        %v2662 = vadd.f32 %v2660, 1e-05
        %v2663 = vrsqrt.pop %v2661
        %v2664 = vrsqrt.pop %v2662
        %v2665 = vmul.f32 %v2651, %v2663
        %v2666 = vmul.f32 %v2652, %v2664
        %v2667 = vmul.f32 %v2665, %v1631
        %v2668 = vmul.f32 %v2666, %v1631
        %v2669 = vadd.f32 %v2667, %v1637
        %v2670 = vadd.f32 %v2668, %v1637
        %v2671 = vld [vmem:[%s12] sm:$0x3]
        %v2672 = vpack.c.bf16 %v2670, %v2669
        %v2673 = vld [vmem:[%s9] sm:$0xff]
        %v2674 = vld [vmem:[%s9 + $0x8] sm:$0xff]
        %v2675 = vld [vmem:[%s9 + $0x10] sm:$0xff]
        %v2676 = vld [vmem:[%s9 + $0x18] sm:$0xff]
        %v2677 = vld [vmem:[%s9 + $0x20] sm:$0xff]
        %v2678 = vld [vmem:[%s9 + $0x28] sm:$0xff]
        %v2679 = vld [vmem:[%s9 + $0x30] sm:$0xff]
        %v2680 = vld [vmem:[%s9 + $0x38] sm:$0xff]
        %v2681 = vld [vmem:[%s9 + $0x40] sm:$0xff]
        %v2682 = vld [vmem:[%s9 + $0x48] sm:$0xff]
        %v2683 = vld [vmem:[%s9 + $0x50] sm:$0xff]
        %v2684 = vld [vmem:[%s9 + $0x58] sm:$0xff]
        %v2685 = vld [vmem:[%s9 + $0x60] sm:$0xff]
        %v2686 = vld [vmem:[%s9 + $0x68] sm:$0xff]
        %v2687 = vld [vmem:[%s9 + $0x70] sm:$0xff]
        %v2688 = vld [vmem:[%s9 + $0x78] sm:$0xff]
        %v2690 = vlaneseq
        %v2691 = vshrl.u32 %v2690, 7
        %v2692 = vsub.s32 0, %v2691
        %v2693 = vrot.slane %v2671, %v2692
        %v2694 = vlaneseq
        %v2695 = vshrl.u32 %v2694, 7
        %v2696 = vsub.s32 1, %v2695
        %v2697 = vrot.slane %v2671, %v2696
        %v2716 = vunpack.c.l.b16 %v2673
        %v2717 = vunpack.c.h.b16 %v2673
        %v2718 = vunpack.c.l.b16 %v2674
        %v2719 = vunpack.c.h.b16 %v2674
        %v2720 = vunpack.c.l.b16 %v2675
        %v2721 = vunpack.c.h.b16 %v2675
        %v2722 = vunpack.c.l.b16 %v2676
        %v2723 = vunpack.c.h.b16 %v2676
        %v2724 = vunpack.c.l.b16 %v2677
        %v2725 = vunpack.c.h.b16 %v2677
        %v2726 = vunpack.c.l.b16 %v2678
        %v2727 = vunpack.c.h.b16 %v2678
        %v2728 = vunpack.c.l.b16 %v2679
        %v2729 = vunpack.c.h.b16 %v2679
        %v2730 = vunpack.c.l.b16 %v2680
        %v2731 = vunpack.c.h.b16 %v2680
        %v2732 = vunpack.c.l.b16 %v2681
        %v2733 = vunpack.c.h.b16 %v2681
        %v2734 = vunpack.c.l.b16 %v2682
        %v2735 = vunpack.c.h.b16 %v2682
        %v2736 = vunpack.c.l.b16 %v2683
        %v2737 = vunpack.c.h.b16 %v2683
        %v2738 = vunpack.c.l.b16 %v2684
        %v2739 = vunpack.c.h.b16 %v2684
        %v2740 = vunpack.c.l.b16 %v2685
        %v2741 = vunpack.c.h.b16 %v2685
        %v2742 = vunpack.c.l.b16 %v2686
        %v2743 = vunpack.c.h.b16 %v2686
        %v2744 = vunpack.c.l.b16 %v2687
        %v2745 = vunpack.c.h.b16 %v2687
        %v2746 = vunpack.c.l.b16 %v2688
        %v2747 = vunpack.c.h.b16 %v2688
        %v2748 = vpack.c.b16 %v2718, %v2716
        %v2749 = vpack.c.b16 %v2719, %v2717
        %v2750 = vpack.c.b16 %v2722, %v2720
        %v2751 = vpack.c.b16 %v2723, %v2721
        %v2752 = vpack.c.b16 %v2726, %v2724
        %v2753 = vpack.c.b16 %v2727, %v2725
        %v2754 = vpack.c.b16 %v2730, %v2728
        %v2755 = vpack.c.b16 %v2731, %v2729
        %v2756 = vpack.c.b16 %v2734, %v2732
        %v2757 = vpack.c.b16 %v2735, %v2733
        %v2758 = vpack.c.b16 %v2738, %v2736
        %v2759 = vpack.c.b16 %v2739, %v2737
        %v2760 = vpack.c.b16 %v2742, %v2740
        %v2761 = vpack.c.b16 %v2743, %v2741
        %v2762 = vpack.c.b16 %v2746, %v2744
        %v2763 = vpack.c.b16 %v2747, %v2745
        %2780 = vmatprep.subr.bf16.mxu0 %v2763
        %2781 = vmatpush1.bf16.msra.mxu0 %v2762
        %2782 = vmatprep.subr.bf16.mxu0 %v2761
        %2783 = vmatpush1.bf16.msra.mxu0 %v2760
        %2784 = vmatprep.subr.bf16.mxu0 %v2759
        %2785 = vmatpush1.bf16.msra.mxu0 %v2758
        %2786 = vmatprep.subr.bf16.mxu0 %v2757
        %2787 = vmatpush1.bf16.msra.mxu0 %v2756
        %2788 = vmatprep.subr.bf16.mxu0 %v2755
        %2789 = vmatpush1.bf16.msra.mxu0 %v2754
        %2790 = vmatprep.subr.bf16.mxu0 %v2753
        %2791 = vmatpush1.bf16.msra.mxu0 %v2752
        %2792 = vmatprep.subr.bf16.mxu0 %v2751
        %2793 = vmatpush1.bf16.msra.mxu0 %v2750
        %2794 = vmatprep.subr.bf16.mxu0 %v2749
        %2795 = vmatpush1.bf16.msra.mxu0 %v2748
        %2796 = vmatprep.subr.bf16.mxu0 0
        %2797 = vmatpush2.bf16.msra.mxu0 0
        %2798 = vmatprep.subr.bf16.mxu0 0
        %2799 = vmatpush2.bf16.msra.mxu0 0
        %2800 = vmatprep.subr.bf16.mxu0 0
        %2801 = vmatpush2.bf16.msra.mxu0 0
        %2802 = vmatprep.subr.bf16.mxu0 0
        %2803 = vmatpush2.bf16.msra.mxu0 0
        %2804 = vmatprep.subr.bf16.mxu0 0
        %2805 = vmatpush2.bf16.msra.mxu0 0
        %2806 = vmatprep.subr.bf16.mxu0 0
        %2807 = vmatpush2.bf16.msra.mxu0 0
        %2808 = vmatprep.subr.bf16.mxu0 0
        %2809 = vmatpush2.bf16.msra.mxu0 0
        %2810 = vmatprep.subr.bf16.mxu0 0
        %2811 = vmatpush2.bf16.msra.mxu0 0
        %2812 = vmatprep.mubr.bf16.mxu0 0
        %2813 = vmatmul.mubr.bf16.gmra.mxu0 %v2672
        %v2814 = vpop.f32.mrf.mxu0
        %v2815 = vadd.f32 %v2693, %v2814
        %v2816 = vpop.f32.mrf.mxu0
        %v2817 = vadd.f32 %v2697, %v2816
        %v2818 = vpop.f32.mrf.mxu0
        %v2819 = vadd.f32 %v2693, %v2818
        %v2820 = vpop.f32.mrf.mxu0
        %v2821 = vadd.f32 %v2697, %v2820
        %2822 = vdwg.mxu0
        %v2823 = vmax.f32 %v2815, 0.0
        %v2824 = vmax.f32 %v2817, 0.0
        %v2825 = vmax.f32 %v2819, 0.0
        %v2826 = vmax.f32 %v2821, 0.0
        %v2827 = vpack.c.bf16 %v2825, %v2823
        %v2828 = vpack.c.bf16 %v2826, %v2824
        %v2829 = vld [vmem:[%s10] sm:$0xf]
        %v2830 = vld [vmem:[%s10 + $0x4] sm:$0xf]
        %v2831 = vld [vmem:[%s10 + $0x8] sm:$0xf]
        %v2832 = vld [vmem:[%s10 + $0xc] sm:$0xf]
        %v2833 = vld [vmem:[%s10 + $0x10] sm:$0xf]
        %v2834 = vld [vmem:[%s10 + $0x14] sm:$0xf]
        %v2835 = vld [vmem:[%s10 + $0x18] sm:$0xf]
        %v2836 = vld [vmem:[%s10 + $0x1c] sm:$0xf]
        %v2837 = vld [vmem:[%s10 + $0x20] sm:$0xf]
        %v2838 = vld [vmem:[%s10 + $0x24] sm:$0xf]
        %v2839 = vld [vmem:[%s10 + $0x28] sm:$0xf]
        %v2840 = vld [vmem:[%s10 + $0x2c] sm:$0xf]
        %v2841 = vld [vmem:[%s10 + $0x30] sm:$0xf]
        %v2842 = vld [vmem:[%s10 + $0x34] sm:$0xf]
        %v2843 = vld [vmem:[%s10 + $0x38] sm:$0xf]
        %v2844 = vld [vmem:[%s10 + $0x3c] sm:$0xf]
        %v2845 = vld [vmem:[%s10 + $0x40] sm:$0xf]
        %v2846 = vld [vmem:[%s10 + $0x44] sm:$0xf]
        %v2847 = vld [vmem:[%s10 + $0x48] sm:$0xf]
        %v2848 = vld [vmem:[%s10 + $0x4c] sm:$0xf]
        %v2849 = vld [vmem:[%s10 + $0x50] sm:$0xf]
        %v2850 = vld [vmem:[%s10 + $0x54] sm:$0xf]
        %v2851 = vld [vmem:[%s10 + $0x58] sm:$0xf]
        %v2852 = vld [vmem:[%s10 + $0x5c] sm:$0xf]
        %v2853 = vld [vmem:[%s10 + $0x60] sm:$0xf]
        %v2854 = vld [vmem:[%s10 + $0x64] sm:$0xf]
        %v2855 = vld [vmem:[%s10 + $0x68] sm:$0xf]
        %v2856 = vld [vmem:[%s10 + $0x6c] sm:$0xf]
        %v2857 = vld [vmem:[%s10 + $0x70] sm:$0xf]
        %v2858 = vld [vmem:[%s10 + $0x74] sm:$0xf]
        %v2859 = vld [vmem:[%s10 + $0x78] sm:$0xf]
        %v2860 = vld [vmem:[%s10 + $0x7c] sm:$0xf]
        %v2861 = vlaneseq
        %v2862 = vshrl.u32 %v2861, 7
        %v2863 = vsub.s32 0, %v2862
        %v2864 = vrot.slane %v577, %v2863
        %v2897 = vunpack.c.l.b16 %v2829
        %v2898 = vunpack.c.l.b16 %v2830
        %v2899 = vunpack.c.l.b16 %v2831
        %v2900 = vunpack.c.l.b16 %v2832
        %v2901 = vunpack.c.l.b16 %v2833
        %v2902 = vunpack.c.l.b16 %v2834
        %v2903 = vunpack.c.l.b16 %v2835
        %v2904 = vunpack.c.l.b16 %v2836
        %v2905 = vunpack.c.l.b16 %v2837
        %v2906 = vunpack.c.l.b16 %v2838
        %v2907 = vunpack.c.l.b16 %v2839
        %v2908 = vunpack.c.l.b16 %v2840
        %v2909 = vunpack.c.l.b16 %v2841
        %v2910 = vunpack.c.l.b16 %v2842
        %v2911 = vunpack.c.l.b16 %v2843
        %v2912 = vunpack.c.l.b16 %v2844
        %v2913 = vunpack.c.l.b16 %v2845
        %v2914 = vunpack.c.l.b16 %v2846
        %v2915 = vunpack.c.l.b16 %v2847
        %v2916 = vunpack.c.l.b16 %v2848
        %v2917 = vunpack.c.l.b16 %v2849
        %v2918 = vunpack.c.l.b16 %v2850
        %v2919 = vunpack.c.l.b16 %v2851
        %v2920 = vunpack.c.l.b16 %v2852
        %v2921 = vunpack.c.l.b16 %v2853
        %v2922 = vunpack.c.l.b16 %v2854
        %v2923 = vunpack.c.l.b16 %v2855
        %v2924 = vunpack.c.l.b16 %v2856
        %v2925 = vunpack.c.l.b16 %v2857
        %v2926 = vunpack.c.l.b16 %v2858
        %v2927 = vunpack.c.l.b16 %v2859
        %v2928 = vunpack.c.l.b16 %v2860
        %v2929 = vpack.c.b16 %v2898, %v2897
        %v2930 = vpack.c.b16 %v2900, %v2899
        %v2931 = vpack.c.b16 %v2902, %v2901
        %v2932 = vpack.c.b16 %v2904, %v2903
        %v2933 = vpack.c.b16 %v2906, %v2905
        %v2934 = vpack.c.b16 %v2908, %v2907
        %v2935 = vpack.c.b16 %v2910, %v2909
        %v2936 = vpack.c.b16 %v2912, %v2911
        %v2937 = vpack.c.b16 %v2914, %v2913
        %v2938 = vpack.c.b16 %v2916, %v2915
        %v2939 = vpack.c.b16 %v2918, %v2917
        %v2940 = vpack.c.b16 %v2920, %v2919
        %v2941 = vpack.c.b16 %v2922, %v2921
        %v2942 = vpack.c.b16 %v2924, %v2923
        %v2943 = vpack.c.b16 %v2926, %v2925
        %v2944 = vpack.c.b16 %v2928, %v2927
        %2961 = vmatprep.subr.bf16.mxu0 0
        %2962 = vmatpush1.bf16.msra.mxu0 %v2936
        %2963 = vmatprep.subr.bf16.mxu0 0
        %2964 = vmatpush1.bf16.msra.mxu0 %v2935
        %2965 = vmatprep.subr.bf16.mxu0 0
        %2966 = vmatpush1.bf16.msra.mxu0 %v2934
        %2967 = vmatprep.subr.bf16.mxu0 0
        %2968 = vmatpush1.bf16.msra.mxu0 %v2933
        %2969 = vmatprep.subr.bf16.mxu0 0
        %2970 = vmatpush1.bf16.msra.mxu0 %v2932
        %2971 = vmatprep.subr.bf16.mxu0 0
        %2972 = vmatpush1.bf16.msra.mxu0 %v2931
        %2973 = vmatprep.subr.bf16.mxu0 0
        %2974 = vmatpush1.bf16.msra.mxu0 %v2930
        %2975 = vmatprep.subr.bf16.mxu0 0
        %2976 = vmatpush1.bf16.msra.mxu0 %v2929
        %2977 = vmatprep.subr.bf16.mxu0 0
        %2978 = vmatpush2.bf16.msra.mxu0 %v2944
        %2979 = vmatprep.subr.bf16.mxu0 0
        %2980 = vmatpush2.bf16.msra.mxu0 %v2943
        %2981 = vmatprep.subr.bf16.mxu0 0
        %2982 = vmatpush2.bf16.msra.mxu0 %v2942
        %2983 = vmatprep.subr.bf16.mxu0 0
        %2984 = vmatpush2.bf16.msra.mxu0 %v2941
        %2985 = vmatprep.subr.bf16.mxu0 0
        %2986 = vmatpush2.bf16.msra.mxu0 %v2940
        %2987 = vmatprep.subr.bf16.mxu0 0
        %2988 = vmatpush2.bf16.msra.mxu0 %v2939
        %2989 = vmatprep.subr.bf16.mxu0 0
        %2990 = vmatpush2.bf16.msra.mxu0 %v2938
        %2991 = vmatprep.subr.bf16.mxu0 0
        %2992 = vmatpush2.bf16.msra.mxu0 %v2937
        %2993 = vmatprep.mubr.bf16.mxu0 %v2828
        %2994 = vmatmul.mubr.bf16.gmra.mxu0 %v2827
        %v2995 = vpop.f32.mrf.mxu0
        %v2996 = vadd.f32 %v2864, %v2995
        %v2997 = vpop.f32.mrf.mxu0
        %v2998 = vpop.f32.mrf.mxu0
        %v2999 = vadd.f32 %v2864, %v2998
        %v3000 = vpop.f32.mrf.mxu0
        %3001 = vdwg.mxu0
        %v3002 = vadd.f32 %v2669, %v2996
        %v3003 = vadd.f32 %v2670, %v2999
        %3004 = vadd.xlane.f32.xlu0 %v3002
        %v3005 = vpop.xlane.xlu0 %3004
        %3006 = vadd.xlane.f32.xlu0 %v3003
        %v3007 = vpop.xlane.xlu0 %3006
        %v3008 = vmul.f32 %v3005, %v1609
        %v3009 = vmul.f32 %v3007, %v1609
        %v3010 = vsub.f32 %v3002, %v3008
        %v3011 = vsub.f32 %v3003, %v3009
        %v3012 = vmul.f32 %v3010, %v3010
        %v3013 = vmul.f32 %v3011, %v3011
        %3014 = vadd.xlane.f32.xlu0 %v3012
        %v3015 = vpop.xlane.xlu0 %3014
        %3016 = vadd.xlane.f32.xlu0 %v3013
        %v3017 = vpop.xlane.xlu0 %3016
        %v3018 = vmul.f32 %v3015, %v1609
        %v3019 = vmul.f32 %v3017, %v1609
        %v3020 = vadd.f32 %v3018, 1e-05
        %v3021 = vadd.f32 %v3019, 1e-05
        %v3022 = vrsqrt.pop %v3020
        %v3023 = vrsqrt.pop %v3021
        %v3024 = vmul.f32 %v3010, %v3022
        %v3025 = vmul.f32 %v3011, %v3023
        %v3026 = vmul.f32 %v3024, %v1631
        %v3027 = vmul.f32 %v3025, %v1631
        %v3028 = vadd.f32 %v3026, %v1637
        %v3029 = vadd.f32 %v3027, %v1637
        %3030 = vst [vmem:[%s547] sm:$0xff] %v3028
        %3031 = vst [vmem:[%s547 + $0x8] sm:$0xff] %v3029
        %s3032 = sand.u32 %s342, 1
        %s3033 = scalar_lea.sflag [#allocation4], %s3032
        %s3034 = sand.u32 %s342, 1
        %s3035 = smul.addr %s3034, 16
        %s3036 = scalar_lea.vmem [#allocation10], %s3035
        // Predicated region
        $region89: #{transformer_forward.3} parent=71 // pred_check
          %p3037 = pneg %p352
        $region90: #{transformer_forward.3} parent=71 // pred_check_branch
          %3039 = sbr.rel (%p3037) target = $region92
        $region91: #{transformer_forward.3} parent=71 // pred_region
          %s3040 = smul.u32 2, %s35
          %s3042 = ssub.s32 256, 256
          %3043 = vsyncadd %s3033, %s3042
          %s3044 = smul.addr %s34, 2
          %s3045 = sadd.s32 %s3040, %s3044
          %s3046 = smul.addr %s3045, 128
          %s3047 = scalar_lea.hbm %s13, %s3046
          %s3048 = sshll.u32 %s3036, 4
          %s3049 = int_to_ptr.vmem [resolvable:$true] %s3048
          %3054 = dma.vmem_to_hbm [thread:$0]  %s3049, 256, %s3047, %s3033, 128, 128, 8
        $region92: #{transformer_forward.3} parent=71 // pred_fallthru
          _
      $region72: #{transformer_forward.3} parent=5 // pred_fallthru
        _
      %p3055 = scmp.le.s32.totalorder 2, %s25
      // Predicated region
      $region93: #{transformer_forward.3} parent=5 // pred_check
        %p3056 = pneg %p3055
      $region94: #{transformer_forward.3} parent=5 // pred_check_branch
        %3058 = sbr.rel (%p3056) target = $region96
      $region95: #{transformer_forward.3} parent=5 // pred_region
        %s3059 = ssub.s32 %s25, 2
        // Predicated region
        $region97: #{transformer_forward.3} parent=95 // pred_check
          %p3060 = pneg %p358
        $region98: #{transformer_forward.3} parent=95 // pred_check_branch
          %3062 = sbr.rel (%p3060) target = $region100
        $region99: #{transformer_forward.3} parent=95 // pred_region
          %s3063 = sand.u32 %s343, 1
          %s3064 = scalar_lea.sflag [#allocation4], %s3063
          %s3065 = sand.u32 %s343, 1
          %s3066 = smul.addr %s3065, 16
          %s3067 = scalar_lea.vmem [#allocation10], %s3066
          %3068 = dma.done %s3064, 256
        $region100: #{transformer_forward.3} parent=95 // pred_fallthru
          _
      $region96: #{transformer_forward.3} parent=5 // pred_fallthru
        _
    $region6: #{transformer_forward.3} parent=1 // loop_footer
      %s29 = sadd.s32 1, %s25
    $region7: #{transformer_forward.3} parent=1 // loop_footer_branch
      %24 = sbr.rel target = $region3
    $region8: #{transformer_forward.3} parent=1 // loop_exit
      _
    %3069 = vsyncpa [#allocation3], 1
    %s3070 = scalar_lea.sflag [#allocation3], 1
    %3071 = vsyncpa %s3070, 1
    %3072 = vsyncpa [#allocation6], 1
    %3073 = vsyncpa [#allocation9], 1
    %3074 = vsyncpa [#allocation4], 1
    %s3075 = scalar_lea.sflag [#allocation4], 1
    %3076 = vsyncpa %s3075, 1

</llo_original>
